<compile_context>
chip_gen: v7x
topology: tpu7x:2x2x1
jax: 0.10.0
libtpu: 0.0.40
codegen_flags: <defaults>
</compile_context>

<pallas_src>
import functools

import numpy as np
import jax
import jax.numpy as jnp
from jax.experimental import pallas as pl
from jax.experimental.pallas import tpu as pltpu

NUM_GAUSSIANS = 8
POSE_DIM = 69          # SMPL body_pose dim (random_var_dim)
EPSILON = 1e-16        # kept for parity; merged path does not use it
LANE = 128


def _round_up(x, m):
    return (x + m - 1) // m * m


# ----------------------------- kernels --------------------------------------

def _min_nll_block(pose_ref, q_ref, aug_ref, *, num_mix, d, d_pad):
    """(tb, d) pose tile + (d_pad, num_mix*d_pad) slab -> (tb, 1) min_m ll_m."""
    tb = aug_ref.shape[0]
    # Build the homogeneous lane-padded tile [pose | 1 | 0...] in VMEM scratch
    # (no wrapper-side HBM pose_aug materialization).
    lane = jax.lax.broadcasted_iota(jnp.int32, (tb, d_pad), 1)
    aug_ref[...] = jnp.where(lane == d, 1.0, 0.0).astype(jnp.float32)
    aug_ref[:, :d] = pose_ref[...].astype(jnp.float32)
    pose_aug = aug_ref[...]                                    # (tb, d_pad)

    # One fused lane-aligned MXU call for all mixtures; precision pinned so the
    # f32 operands are never silently lowered to a single bf16 pass.
    pd = jnp.dot(pose_aug, q_ref[...],
                 preferred_element_type=jnp.float32,
                 precision=jax.lax.Precision.HIGHEST)          # (tb, M*d_pad)

    # Per-mixture quadratic forms.  0.5 and -log(nll_weights) are folded into
    # the slab, so each reduce yields ll_m directly.
    # NOTE(v6e/v7x): if a bundle dump shows the vext slot saturated by these 8
    # lane reductions, they can be traded for a block-diag selector matmul;
    # left on the XLU here since that rebalance regresses v5e.
    lls = []
    for m in range(num_mix):                                   # static unroll
        lls.append(jnp.sum(pd[:, m * d_pad:(m + 1) * d_pad] * pose_aug,
                           axis=-1, keepdims=True))            # (tb, 1)
    # Tree-reduce the 8-way min (depth 3 instead of a 7-deep chain).
    while len(lls) > 1:
        nxt = [jnp.minimum(lls[i], lls[i + 1])
               for i in range(0, len(lls) - 1, 2)]
        if len(lls) % 2:
            nxt.append(lls[-1])
        lls = nxt
    return lls[0]


def _gmm_sum_kernel(pose_ref, q_ref, out_ref, aug_ref, *, num_mix, d, d_pad,
                    valid_rows, tb, scale):
    """Masked, pre-scaled partial sum of min-NLL into a (1, 1) slot."""
    i = pl.program_id(0)
    min_ll = _min_nll_block(pose_ref, q_ref, aug_ref,
                            num_mix=num_mix, d=d, d_pad=d_pad)
    row = i * tb + jax.lax.broadcasted_iota(jnp.int32, min_ll.shape, 0)
    min_ll = jnp.where(row < valid_rows, min_ll, 0.0)          # mask row padding
    out_ref[0] = scale * jnp.sum(min_ll, axis=0, keepdims=True)


def _gmm_persample_kernel(pose_ref, q_ref, out_ref, aug_ref, *, num_mix, d,
                          d_pad, scale):
    """Per-sample scaled min-NLL (reduction='none' path only)."""
    out_ref[...] = scale * _min_nll_block(pose_ref, q_ref, aug_ref,
                                          num_mix=num_mix, d=d, d_pad=d_pad)


# --------------------------- module wrapper ----------------------------------

class MaxMixturePriorLoss:
    """JAX/Pallas port of SMPLify-X MaxMixturePriorLoss.forward (use_merged=True).

    GMM parameters (means, precisions, nll_weights) are passed directly instead
    of being unpickled from gmm_08.pkl (no file I/O in this script).
    """

    def __init__(self, means, precisions, nll_weights, epsilon=EPSILON,
                 reduction='mean', loss_weight=1.0, block_batch=2048):
        assert reduction in (None, 'none', 'mean', 'sum')
        self.reduction = reduction
        self.loss_weight = loss_weight
        self.epsilon = epsilon

        means_np = np.asarray(means, np.float64)
        prec_np = np.asarray(precisions, np.float64)
        nllw_np = np.asarray(nll_weights, np.float64).reshape(-1)
        self.num_gaussians, self.random_var_dim = means_np.shape
        d = self.random_var_dim
        self.d_pad = _round_up(d + 1, LANE)          # pose dims + homogeneous 1
        self.block_batch = max(8, _round_up(int(block_batch), 8))

        # ---- one-time prior prep (hoisted out of forward) -------------------
        # Homogeneous slab Q'_m so that, with x_aug = [x | 1 | 0...]:
        #   x_aug^T Q'_m x_aug == 0.5*(x-mu_m)^T P_m (x-mu_m) - log(w_m) == ll_m
        c = np.einsum('mij,mj->mi', prec_np, means_np)          # P_m mu_m
        k = np.einsum('mi,mi->m', c, means_np)                  # mu^T P mu
        q = np.zeros((self.num_gaussians, self.d_pad, self.d_pad), np.float64)
        q[:, :d, :d] = 0.5 * prec_np                            # symmetric
        q[:, :d, d] = -0.5 * c
        q[:, d, :d] = -0.5 * c
        q[:, d, d] = 0.5 * k - np.log(nllw_np)                  # const + log w fold
        # q_cat[j, m*d_pad + i] = Q'_m[j, i]  (zero padding elsewhere)
        q_cat = np.transpose(q, (1, 0, 2)).reshape(
            self.d_pad, self.num_gaussians * self.d_pad)
        self.q_cat = jnp.asarray(q_cat, jnp.float32)

    def __call__(self, body_pose, loss_weight_override=None,
                 reduction_override=None):
        assert reduction_override in (None, 'none', 'mean', 'sum')
        reduction = (reduction_override if reduction_override is not None
                     else self.reduction)
        loss_weight = float(loss_weight_override
                            if loss_weight_override is not None
                            else self.loss_weight)

        b, d = body_pose.shape
        assert d == self.random_var_dim
        d_pad = self.d_pad

        # Tile selection: >= 2 grid steps whenever b > 8 so the "parallel"
        # batch axis shards across v7x's two TensorCores; cap at block_batch.
        b_rows = _round_up(b, 8)
        if b_rows <= 8:
            tb = b_rows
        else:
            n_blocks = max(2, pl.cdiv(b_rows, self.block_batch))
            tb = _round_up(pl.cdiv(b_rows, n_blocks), 8)
        g = pl.cdiv(b, tb)
        b_pad = g * tb

        # No lane padding and no HBM pose_aug copy; only row-pad when the
        # batch does not divide into full tiles.
        if b_pad != b:
            pose_in = jnp.zeros((b_pad, d), body_pose.dtype).at[:b, :].set(
                body_pose)
        else:
            pose_in = body_pose

        in_specs = [
            pl.BlockSpec((tb, d), lambda i: (i, 0)),            # pose tile
            # Constant slab: block index never changes -> stays VMEM-resident.
            pl.BlockSpec((d_pad, self.num_gaussians * d_pad), lambda i: (0, 0)),
        ]
        scratch = [pltpu.VMEM((tb, d_pad), jnp.float32)]        # pose_aug staging
        params = pltpu.CompilerParams(
            dimension_semantics=("parallel",),
            vmem_limit_bytes=32 * 1024 * 1024)

        if reduction in ('mean', 'sum'):
            scale = loss_weight / b if reduction == 'mean' else loss_weight
            kernel = functools.partial(
                _gmm_sum_kernel, num_mix=self.num_gaussians, d=d, d_pad=d_pad,
                valid_rows=b, tb=tb, scale=scale)
            partials = pl.pallas_call(
                kernel,
                out_shape=jax.ShapeDtypeStruct((g, 1, 1), jnp.float32),
                grid_spec=pltpu.PrefetchScalarGridSpec(
                    num_scalar_prefetch=0, grid=(g,),
                    in_specs=in_specs,
                    out_specs=pl.BlockSpec((1, 1, 1), lambda i: (i, 0, 0)),
                    scratch_shapes=scratch),
                compiler_params=params,
            )(pose_in, self.q_cat)
            # loss_weight and 1/b already folded in-kernel; one combine op.
            return jnp.sum(partials)

        # reduction in (None, 'none'): per-sample values are required.
        kernel = functools.partial(
            _gmm_persample_kernel, num_mix=self.num_gaussians, d=d,
            d_pad=d_pad, scale=loss_weight)
        per_sample = pl.pallas_call(
            kernel,
            out_shape=jax.ShapeDtypeStruct((b_pad, 1), jnp.float32),
            grid_spec=pltpu.PrefetchScalarGridSpec(
                num_scalar_prefetch=0, grid=(g,),
                in_specs=in_specs,
                out_specs=pl.BlockSpec((tb, 1), lambda i: (i, 0)),
                scratch_shapes=scratch),
            compiler_params=params,
        )(pose_in, self.q_cat)
        return per_sample[:b, 0]


# ----------------------- synthetic prior + reference -------------------------

def _build_synthetic_gmm(key, num_gaussians=NUM_GAUSSIANS, dim=POSE_DIM):
    """Deterministic synthetic stand-in for gmm_08.pkl (no file I/O)."""
    k1, k2, k3 = jax.random.split(key, 3)
    means = np.asarray(jax.random.normal(k1, (num_gaussians, dim)), np.float64) * 0.1
    A = np.asarray(jax.random.normal(k2, (num_gaussians, dim, dim)), np.float64) * 0.05
    covs = np.einsum("mik,mjk->mij", A, A) + 0.5 * np.eye(dim)[None]   # SPD
    precisions = np.stack([np.linalg.inv(c) for c in covs])
    w_raw = np.asarray(jax.random.uniform(k3, (num_gaussians,)), np.float64) + 0.5
    weights = w_raw / w_raw.sum()
    sqrdets = np.array([np.sqrt(np.linalg.det(c)) for c in covs])
    const = (2 * np.pi) ** (69 / 2.0)
    nll_weights = (weights / (const * (sqrdets / sqrdets.min())))[None, :]  # (1, M)
    return (jnp.asarray(means, jnp.float32),
            jnp.asarray(covs, jnp.float32),
            jnp.asarray(precisions, jnp.float32),
            jnp.asarray(nll_weights, jnp.float32))


def _reference_loss(body_pose, means, precisions, nll_weights,
                    loss_weight=1.0, reduction="mean"):
    """Pure-JAX reference mirroring merged_log_likelihood (verification only)."""
    diff = body_pose[:, None, :] - means[None, :, :]                    # (B,M,D)
    pd = jnp.einsum("mij,bmj->bmi", precisions, diff,
                    precision=jax.lax.Precision.HIGHEST)                # (B,M,D)
    quad = jnp.sum(pd * diff, axis=-1)                                  # (B,M)
    ll = 0.5 * quad - jnp.log(nll_weights)                              # (B,M)
    loss = loss_weight * jnp.min(ll, axis=1)
    if reduction == "mean":
        loss = loss.mean()
    elif reduction == "sum":
        loss = loss.sum()
    return loss


if __name__ == "__main__":
    key = jax.random.PRNGKey(0)
    k_prior, k_pose = jax.random.split(key)

    means, covs, precisions, nll_weights = _build_synthetic_gmm(k_prior)

    prior = MaxMixturePriorLoss(means=means, precisions=precisions,
                                nll_weights=nll_weights,
                                loss_weight=1.0, reduction='mean')

    B = 2
    body_pose = jax.random.normal(k_pose, (B, POSE_DIM), dtype=jnp.float32) * 0.3

    # Default 'mean' path (partial-sum kernel, scale folded in-kernel).
    out = jax.block_until_ready(prior(body_pose))
    ref = _reference_loss(body_pose, means, precisions, nll_weights)
    assert np.allclose(np.asarray(out), np.asarray(ref),
                       rtol=1e-4, atol=1e-4), (out, ref)

    # 'none' path (per-sample kernel).
    out_none = jax.block_until_ready(prior(body_pose, reduction_override='none'))
    ref_none = _reference_loss(body_pose, means, precisions, nll_weights,
                               reduction='none')
    assert np.allclose(np.asarray(out_none), np.asarray(ref_none),
                       rtol=1e-4, atol=1e-4), (out_none, ref_none)

    # Multi-block grid + batch row-padding mask (small tile forces several steps).
    prior_tiled = MaxMixturePriorLoss(means=means, precisions=precisions,
                                      nll_weights=nll_weights,
                                      block_batch=8, reduction='sum')
    B2 = 20
    body_pose2 = jax.random.normal(jax.random.PRNGKey(3), (B2, POSE_DIM),
                                   dtype=jnp.float32) * 0.3
    out2 = jax.block_until_ready(prior_tiled(body_pose2))
    ref2 = _reference_loss(body_pose2, means, precisions, nll_weights,
                           reduction='sum')
    assert np.allclose(np.asarray(out2), np.asarray(ref2),
                       rtol=1e-4, atol=1e-4), (out2, ref2)

    print("KERNEL_OK")
</pallas_src>

<mosaic_0001>
module attributes {stable_mosaic.version = 11 : i64} {
  func.func @_gmm_sum_kernel(%arg0: i32, %arg1: memref<8x69xf32, #tpu.memory_space<vmem>>, %arg2: memref<128x1024xf32, #tpu.memory_space<vmem>>, %arg3: memref<1x1x1xf32, #tpu.memory_space<vmem>>, %arg4: memref<8x128xf32, #tpu.memory_space<vmem>>) attributes {dimension_semantics = [#tpu.dimension_semantics<parallel>], iteration_bounds = array<i64: 1>, scalar_prefetch = 0 : i64, scratch_operands = 1 : i64, tpu.core_type = #tpu.core_type<tc>, window_params = [{transform_indices = @transform_0, window_bounds = array<i64: 8, 69>}, {pipeline_mode = #tpu.pipeline_mode<synchronous>, transform_indices = @transform_1, window_bounds = array<i64: 128, 1024>}, {transform_indices = @transform_2, window_bounds = array<i64: 1, 1, 1>}]} {
    %0 = tpu.iota {dimensions = array<i32: 1>} : vector<8x128xi32>
    %c69_i32 = arith.constant 69 : i32
    %1 = vector.broadcast %c69_i32 : i32 to vector<8x128xi32>
    %2 = arith.cmpi eq, %0, %1 : vector<8x128xi32>
    %cst = arith.constant 1.000000e+00 : f32
    %cst_0 = arith.constant 0.000000e+00 : f32
    %3 = vector.broadcast %cst : f32 to vector<8x128xf32>
    %4 = vector.broadcast %cst_0 : f32 to vector<8x128xf32>
    %5 = arith.select %2, %3, %4 : vector<8x128xi1>, vector<8x128xf32>
    %c0 = arith.constant 0 : index
    %c0_1 = arith.constant 0 : index
    %6 = vector.load %arg4[%c0, %c0_1] : memref<8x128xf32, #tpu.memory_space<vmem>>, vector<8x128xf32>
    tpu.vector_store %arg4[%c0, %c0_1], %5 {strides = array<i32>} : memref<8x128xf32, #tpu.memory_space<vmem>>, vector<8x128xf32>,
    %c0_2 = arith.constant 0 : index
    %c0_3 = arith.constant 0 : index
    %7 = vector.load %arg1[%c0_2, %c0_3] : memref<8x69xf32, #tpu.memory_space<vmem>>, vector<8x69xf32>
    %c0_4 = arith.constant 0 : index
    %c0_5 = arith.constant 0 : index
    %8 = vector.load %arg4[%c0_4, %c0_5] : memref<8x128xf32, #tpu.memory_space<vmem>>, vector<8x69xf32>
    tpu.vector_store %arg4[%c0_4, %c0_5], %7 {strides = array<i32>} : memref<8x128xf32, #tpu.memory_space<vmem>>, vector<8x69xf32>,
    %c0_6 = arith.constant 0 : index
    %c0_7 = arith.constant 0 : index
    %9 = vector.load %arg4[%c0_6, %c0_7] : memref<8x128xf32, #tpu.memory_space<vmem>>, vector<8x128xf32>
    %c0_8 = arith.constant 0 : index
    %c0_9 = arith.constant 0 : index
    %10 = vector.load %arg2[%c0_8, %c0_9] : memref<128x1024xf32, #tpu.memory_space<vmem>>, vector<128x1024xf32>
    %cst_10 = arith.constant dense<0.000000e+00> : vector<8x1024xf32>
    %11 = tpu.matmul %9, %10, %cst_10 {dimension_numbers = #tpu.dot_dimension_numbers<[1], [0], [0], [1], [0, 0, 1, 1], [], []>, precision = #tpu.contract_precision<fp32>} : vector<8x128xf32>, vector<128x1024xf32>, vector<8x1024xf32> -> vector<8x1024xf32>
    %12 = vector.extract_strided_slice %11 {offsets = [0, 0], sizes = [8, 128], strides = [1, 1]} : vector<8x1024xf32> to vector<8x128xf32>
    %13 = arith.mulf %12, %9 : vector<8x128xf32>
    %cst_11 = arith.constant dense<0.000000e+00> : vector<8xf32>
    %14 = vector.multi_reduction <add>, %13, %cst_11 [1] : vector<8x128xf32> to vector<8xf32>
    %15 = vector.shape_cast %14 : vector<8xf32> to vector<8x1xf32>
    %16 = vector.extract_strided_slice %11 {offsets = [0, 128], sizes = [8, 128], strides = [1, 1]} : vector<8x1024xf32> to vector<8x128xf32>
    %17 = arith.mulf %16, %9 : vector<8x128xf32>
    %cst_12 = arith.constant dense<0.000000e+00> : vector<8xf32>
    %18 = vector.multi_reduction <add>, %17, %cst_12 [1] : vector<8x128xf32> to vector<8xf32>
    %19 = vector.shape_cast %18 : vector<8xf32> to vector<8x1xf32>
    %20 = vector.extract_strided_slice %11 {offsets = [0, 256], sizes = [8, 128], strides = [1, 1]} : vector<8x1024xf32> to vector<8x128xf32>
    %21 = arith.mulf %20, %9 : vector<8x128xf32>
    %cst_13 = arith.constant dense<0.000000e+00> : vector<8xf32>
    %22 = vector.multi_reduction <add>, %21, %cst_13 [1] : vector<8x128xf32> to vector<8xf32>
    %23 = vector.shape_cast %22 : vector<8xf32> to vector<8x1xf32>
    %24 = vector.extract_strided_slice %11 {offsets = [0, 384], sizes = [8, 128], strides = [1, 1]} : vector<8x1024xf32> to vector<8x128xf32>
    %25 = arith.mulf %24, %9 : vector<8x128xf32>
    %cst_14 = arith.constant dense<0.000000e+00> : vector<8xf32>
    %26 = vector.multi_reduction <add>, %25, %cst_14 [1] : vector<8x128xf32> to vector<8xf32>
    %27 = vector.shape_cast %26 : vector<8xf32> to vector<8x1xf32>
    %28 = vector.extract_strided_slice %11 {offsets = [0, 512], sizes = [8, 128], strides = [1, 1]} : vector<8x1024xf32> to vector<8x128xf32>
    %29 = arith.mulf %28, %9 : vector<8x128xf32>
    %cst_15 = arith.constant dense<0.000000e+00> : vector<8xf32>
    %30 = vector.multi_reduction <add>, %29, %cst_15 [1] : vector<8x128xf32> to vector<8xf32>
    %31 = vector.shape_cast %30 : vector<8xf32> to vector<8x1xf32>
    %32 = vector.extract_strided_slice %11 {offsets = [0, 640], sizes = [8, 128], strides = [1, 1]} : vector<8x1024xf32> to vector<8x128xf32>
    %33 = arith.mulf %32, %9 : vector<8x128xf32>
    %cst_16 = arith.constant dense<0.000000e+00> : vector<8xf32>
    %34 = vector.multi_reduction <add>, %33, %cst_16 [1] : vector<8x128xf32> to vector<8xf32>
    %35 = vector.shape_cast %34 : vector<8xf32> to vector<8x1xf32>
    %36 = vector.extract_strided_slice %11 {offsets = [0, 768], sizes = [8, 128], strides = [1, 1]} : vector<8x1024xf32> to vector<8x128xf32>
    %37 = arith.mulf %36, %9 : vector<8x128xf32>
    %cst_17 = arith.constant dense<0.000000e+00> : vector<8xf32>
    %38 = vector.multi_reduction <add>, %37, %cst_17 [1] : vector<8x128xf32> to vector<8xf32>
    %39 = vector.shape_cast %38 : vector<8xf32> to vector<8x1xf32>
    %40 = vector.extract_strided_slice %11 {offsets = [0, 896], sizes = [8, 128], strides = [1, 1]} : vector<8x1024xf32> to vector<8x128xf32>
    %41 = arith.mulf %40, %9 : vector<8x128xf32>
    %cst_18 = arith.constant dense<0.000000e+00> : vector<8xf32>
    %42 = vector.multi_reduction <add>, %41, %cst_18 [1] : vector<8x128xf32> to vector<8xf32>
    %43 = vector.shape_cast %42 : vector<8xf32> to vector<8x1xf32>
    %44 = arith.minimumf %15, %19 : vector<8x1xf32>
    %45 = arith.minimumf %23, %27 : vector<8x1xf32>
    %46 = arith.minimumf %31, %35 : vector<8x1xf32>
    %47 = arith.minimumf %39, %43 : vector<8x1xf32>
    %48 = arith.minimumf %44, %45 : vector<8x1xf32>
    %49 = arith.minimumf %46, %47 : vector<8x1xf32>
    %50 = arith.minimumf %48, %49 : vector<8x1xf32>
    %c8_i32 = arith.constant 8 : i32
    %51 = arith.muli %arg0, %c8_i32 : i32
    %52 = tpu.iota {dimensions = array<i32: 0>} : vector<8x1xi32>
    %53 = vector.broadcast %51 : i32 to vector<8x1xi32>
    %54 = arith.addi %53, %52 : vector<8x1xi32>
    %c2_i32 = arith.constant 2 : i32
    %55 = vector.broadcast %c2_i32 : i32 to vector<8x1xi32>
    %56 = arith.cmpi slt, %54, %55 : vector<8x1xi32>
    %cst_19 = arith.constant 0.000000e+00 : f32
    %57 = vector.broadcast %cst_19 : f32 to vector<8x1xf32>
    %58 = arith.select %56, %50, %57 : vector<8x1xi1>, vector<8x1xf32>
    %cst_20 = arith.constant dense<0.000000e+00> : vector<1xf32>
    %59 = vector.multi_reduction <add>, %58, %cst_20 [0] : vector<8x1xf32> to vector<1xf32>
    %60 = vector.shape_cast %59 : vector<1xf32> to vector<1x1xf32>
    %cst_21 = arith.constant 5.000000e-01 : f32
    %61 = vector.broadcast %cst_21 : f32 to vector<1x1xf32>
    %62 = arith.mulf %61, %60 : vector<1x1xf32>
    %c0_22 = arith.constant 0 : index
    %c0_23 = arith.constant 0 : index
    %c0_24 = arith.constant 0 : index
    %63 = vector.load %arg3[%c0_22, %c0_23, %c0_24] : memref<1x1x1xf32, #tpu.memory_space<vmem>>, vector<1x1x1xf32>
    %64 = vector.shape_cast %63 : vector<1x1x1xf32> to vector<1x1xf32>
    %65 = vector.shape_cast %62 : vector<1x1xf32> to vector<1x1x1xf32>
    tpu.vector_store %arg3[%c0_22, %c0_23, %c0_24], %65 {strides = array<i32>} : memref<1x1x1xf32, #tpu.memory_space<vmem>>, vector<1x1x1xf32>,
    return
  }
  func.func @transform_0(%arg0: i32) -> (i32, i32) {
    %c0_i32 = arith.constant 0 : i32
    %c0_i32_0 = arith.constant 0 : i32
    return %arg0, %c0_i32 : i32, i32
  }
  func.func @transform_1(%arg0: i32) -> (i32, i32) {
    %c0_i32 = arith.constant 0 : i32
    %c0_i32_0 = arith.constant 0 : i32
    %c0_i32_1 = arith.constant 0 : i32
    return %c0_i32, %c0_i32_0 : i32, i32
  }
  func.func @transform_2(%arg0: i32) -> (i32, i32, i32) {
    %c0_i32 = arith.constant 0 : i32
    %c0_i32_0 = arith.constant 0 : i32
    %c0_i32_1 = arith.constant 0 : i32
    return %arg0, %c0_i32, %c0_i32_0 : i32, i32, i32
  }
}

</mosaic_0001>

<llo_original>
// kernel: tpu_custom_call.1
$region0: #{tpu_custom_call.1}
  #allocation0 [shape = 'u32[]', space=smem, size = 0x4, offset = 0x4, fixed_abs, tag = 'smem constant byte address 0x4 - core index']
  #allocation1 [shape = 'u32[144,128]{1,0:T(1,128)}', space=vmem, size = 0x12000, scoped, tag = 'internal scratch']
  #allocation2 [shape = 'f32[8,128]{1,0:T(8,128)}', space=vmem, size = 0x1000, scoped, tag = 'scratch operand']
  %s0 = inlined_call_operand.hbm [shape: f32[8,69], index: 0, kind: input, shape index: {}]
  %s1 = inlined_call_operand.hbm [shape: f32[128,1024], index: 1, kind: input, shape index: {}]
  %s2 = inlined_call_operand.hbm [shape: f32[1,1,1], index: 2, kind: output, shape index: {}]
  %s3 = sld [smem:[#allocation0]]
  $region26: #{tpu_custom_call.1} parent=0
    _
  %s5 = ssub.s32 1, %s3
  %s6 = scalar_select 0, %s5, %s3
  $region1: #{tpu_custom_call.1} parent=0
    #allocation3 [shape = 'u8[4096]{0}', space=vmem, size = 0x1000, scoped, tag = 'input window, operand 0, single buffered']
    #allocation4 [shape = 's32[1]{0}', space=sflag, size = 0x4, scoped, tag = 'scoped memory for tpu_custom_call.1']
    #allocation5 [shape = 's32[1]{0}', space=sflag, size = 0x4, scoped, tag = 'scoped memory for tpu_custom_call.1']
    #allocation6 [shape = 'u8[524288]{0}', space=vmem, size = 0x80000, scoped, tag = 'input window, operand 1, single buffered']
    #allocation7 [shape = 's32[1]{0}', space=sflag, size = 0x4, scoped, tag = 'scoped memory for tpu_custom_call.1']
    #allocation8 [shape = 'u8[512]{0}', space=vmem, size = 0x400, scoped, tag = 'output window, operand 0, single buffered']
    %7 = vsyncpa [#allocation4], 0
    %8 = vsyncpa [#allocation7], 0
    %9 = vsyncpa [#allocation5], 0
    // Predicated region
    $region2: #{tpu_custom_call.1} parent=1 // pred_check
      _
    $region3: #{tpu_custom_call.1} parent=1 // pred_check_branch
      %11 = sbr.rel (0) target = $region5
    $region4: #{tpu_custom_call.1} parent=1 // pred_region
      %s13 = ssub.s32 128, 128
      %14 = vsyncadd [#allocation4], %s13
      %s16 = sshll.u32 [#allocation3], 4
      %s17 = int_to_ptr.vmem [resolvable:$true] %s16
      %19 = dma.hbm_to_vmem [thread:$0]  %s0, 128, %s17, [#allocation4]
    $region5: #{tpu_custom_call.1} parent=1 // pred_fallthru
      _
    // Predicated region
    $region6: #{tpu_custom_call.1} parent=1 // pred_check
      _
    $region7: #{tpu_custom_call.1} parent=1 // pred_check_branch
      %21 = sbr.rel (0) target = $region9
    $region8: #{tpu_custom_call.1} parent=1 // pred_region
      %s23 = ssub.s32 16384, 16384
      %24 = vsyncadd [#allocation7], %s23
      %s25 = sshll.u32 [#allocation6], 4
      %s26 = int_to_ptr.vmem [resolvable:$true] %s25
      %31 = dma.hbm_to_vmem [thread:$0]  %s1, 16384, %s26, [#allocation7], 1024, 1024, 64
    $region9: #{tpu_custom_call.1} parent=1 // pred_fallthru
      _
    // Predicated region
    $region10: #{tpu_custom_call.1} parent=1 // pred_check
      _
    $region11: #{tpu_custom_call.1} parent=1 // pred_check_branch
      %33 = sbr.rel (0) target = $region13
    $region12: #{tpu_custom_call.1} parent=1 // pred_region
      %34 = dma.done [#allocation4], 128
    $region13: #{tpu_custom_call.1} parent=1 // pred_fallthru
      _
    // Predicated region
    $region14: #{tpu_custom_call.1} parent=1 // pred_check
      _
    $region15: #{tpu_custom_call.1} parent=1 // pred_check_branch
      %36 = sbr.rel (0) target = $region17
    $region16: #{tpu_custom_call.1} parent=1 // pred_region
      %37 = dma.done [#allocation7], 16384
    $region17: #{tpu_custom_call.1} parent=1 // pred_fallthru
      _
    %v38 = vlaneseq
    %v39 = vand.u32 %v38, 127
    %vm40 = vcmp.eq.s32.totalorder %v39, 69
    %v41 = vsel %vm40, 1.0, 0.0
    %42 = vst [vmem:[#allocation2] sm:$0xff] %v41
    %v43 = vld [vmem:[#allocation3] sm:$0xff]
    %vm44 = vcmask 564224
    %45 = vst.msk [vmem:[#allocation2] sm:$0xff] %vm44, %v43
    %v46 = vld [vmem:[#allocation2] sm:$0xff]
    %v47 = vld [vmem:[#allocation6] sm:$0xff]
    %v48 = vld [vmem:[#allocation6 + $0x8] sm:$0xff]
    %v49 = vld [vmem:[#allocation6 + $0x10] sm:$0xff]
    %v50 = vld [vmem:[#allocation6 + $0x18] sm:$0xff]
    %v51 = vld [vmem:[#allocation6 + $0x20] sm:$0xff]
    %v52 = vld [vmem:[#allocation6 + $0x28] sm:$0xff]
    %v53 = vld [vmem:[#allocation6 + $0x30] sm:$0xff]
    %v54 = vld [vmem:[#allocation6 + $0x38] sm:$0xff]
    %v55 = vld [vmem:[#allocation6 + $0x40] sm:$0xff]
    %v56 = vld [vmem:[#allocation6 + $0x48] sm:$0xff]
    %v57 = vld [vmem:[#allocation6 + $0x50] sm:$0xff]
    %v58 = vld [vmem:[#allocation6 + $0x58] sm:$0xff]
    %v59 = vld [vmem:[#allocation6 + $0x60] sm:$0xff]
    %v60 = vld [vmem:[#allocation6 + $0x68] sm:$0xff]
    %v61 = vld [vmem:[#allocation6 + $0x70] sm:$0xff]
    %v62 = vld [vmem:[#allocation6 + $0x78] sm:$0xff]
    %v63 = vld [vmem:[#allocation6 + $0x80] sm:$0xff]
    %v64 = vld [vmem:[#allocation6 + $0x88] sm:$0xff]
    %v65 = vld [vmem:[#allocation6 + $0x90] sm:$0xff]
    %v66 = vld [vmem:[#allocation6 + $0x98] sm:$0xff]
    %v67 = vld [vmem:[#allocation6 + $0xa0] sm:$0xff]
    %v68 = vld [vmem:[#allocation6 + $0xa8] sm:$0xff]
    %v69 = vld [vmem:[#allocation6 + $0xb0] sm:$0xff]
    %v70 = vld [vmem:[#allocation6 + $0xb8] sm:$0xff]
    %v71 = vld [vmem:[#allocation6 + $0xc0] sm:$0xff]
    %v72 = vld [vmem:[#allocation6 + $0xc8] sm:$0xff]
    %v73 = vld [vmem:[#allocation6 + $0xd0] sm:$0xff]
    %v74 = vld [vmem:[#allocation6 + $0xd8] sm:$0xff]
    %v75 = vld [vmem:[#allocation6 + $0xe0] sm:$0xff]
    %v76 = vld [vmem:[#allocation6 + $0xe8] sm:$0xff]
    %v77 = vld [vmem:[#allocation6 + $0xf0] sm:$0xff]
    %v78 = vld [vmem:[#allocation6 + $0xf8] sm:$0xff]
    %v79 = vld [vmem:[#allocation6 + $0x100] sm:$0xff]
    %v80 = vld [vmem:[#allocation6 + $0x108] sm:$0xff]
    %v81 = vld [vmem:[#allocation6 + $0x110] sm:$0xff]
    %v82 = vld [vmem:[#allocation6 + $0x118] sm:$0xff]
    %v83 = vld [vmem:[#allocation6 + $0x120] sm:$0xff]
    %v84 = vld [vmem:[#allocation6 + $0x128] sm:$0xff]
    %v85 = vld [vmem:[#allocation6 + $0x130] sm:$0xff]
    %v86 = vld [vmem:[#allocation6 + $0x138] sm:$0xff]
    %v87 = vld [vmem:[#allocation6 + $0x140] sm:$0xff]
    %v88 = vld [vmem:[#allocation6 + $0x148] sm:$0xff]
    %v89 = vld [vmem:[#allocation6 + $0x150] sm:$0xff]
    %v90 = vld [vmem:[#allocation6 + $0x158] sm:$0xff]
    %v91 = vld [vmem:[#allocation6 + $0x160] sm:$0xff]
    %v92 = vld [vmem:[#allocation6 + $0x168] sm:$0xff]
    %v93 = vld [vmem:[#allocation6 + $0x170] sm:$0xff]
    %v94 = vld [vmem:[#allocation6 + $0x178] sm:$0xff]
    %v95 = vld [vmem:[#allocation6 + $0x180] sm:$0xff]
    %v96 = vld [vmem:[#allocation6 + $0x188] sm:$0xff]
    %v97 = vld [vmem:[#allocation6 + $0x190] sm:$0xff]
    %v98 = vld [vmem:[#allocation6 + $0x198] sm:$0xff]
    %v99 = vld [vmem:[#allocation6 + $0x1a0] sm:$0xff]
    %v100 = vld [vmem:[#allocation6 + $0x1a8] sm:$0xff]
    %v101 = vld [vmem:[#allocation6 + $0x1b0] sm:$0xff]
    %v102 = vld [vmem:[#allocation6 + $0x1b8] sm:$0xff]
    %v103 = vld [vmem:[#allocation6 + $0x1c0] sm:$0xff]
    %v104 = vld [vmem:[#allocation6 + $0x1c8] sm:$0xff]
    %v105 = vld [vmem:[#allocation6 + $0x1d0] sm:$0xff]
    %v106 = vld [vmem:[#allocation6 + $0x1d8] sm:$0xff]
    %v107 = vld [vmem:[#allocation6 + $0x1e0] sm:$0xff]
    %v108 = vld [vmem:[#allocation6 + $0x1e8] sm:$0xff]
    %v109 = vld [vmem:[#allocation6 + $0x1f0] sm:$0xff]
    %v110 = vld [vmem:[#allocation6 + $0x1f8] sm:$0xff]
    %v111 = vld [vmem:[#allocation6 + $0x200] sm:$0xff]
    %v112 = vld [vmem:[#allocation6 + $0x208] sm:$0xff]
    %v113 = vld [vmem:[#allocation6 + $0x210] sm:$0xff]
    %v114 = vld [vmem:[#allocation6 + $0x218] sm:$0xff]
    %v115 = vld [vmem:[#allocation6 + $0x220] sm:$0xff]
    %v116 = vld [vmem:[#allocation6 + $0x228] sm:$0xff]
    %v117 = vld [vmem:[#allocation6 + $0x230] sm:$0xff]
    %v118 = vld [vmem:[#allocation6 + $0x238] sm:$0xff]
    %v119 = vld [vmem:[#allocation6 + $0x240] sm:$0xff]
    %v120 = vld [vmem:[#allocation6 + $0x248] sm:$0xff]
    %v121 = vld [vmem:[#allocation6 + $0x250] sm:$0xff]
    %v122 = vld [vmem:[#allocation6 + $0x258] sm:$0xff]
    %v123 = vld [vmem:[#allocation6 + $0x260] sm:$0xff]
    %v124 = vld [vmem:[#allocation6 + $0x268] sm:$0xff]
    %v125 = vld [vmem:[#allocation6 + $0x270] sm:$0xff]
    %v126 = vld [vmem:[#allocation6 + $0x278] sm:$0xff]
    %v127 = vld [vmem:[#allocation6 + $0x280] sm:$0xff]
    %v128 = vld [vmem:[#allocation6 + $0x288] sm:$0xff]
    %v129 = vld [vmem:[#allocation6 + $0x290] sm:$0xff]
    %v130 = vld [vmem:[#allocation6 + $0x298] sm:$0xff]
    %v131 = vld [vmem:[#allocation6 + $0x2a0] sm:$0xff]
    %v132 = vld [vmem:[#allocation6 + $0x2a8] sm:$0xff]
    %v133 = vld [vmem:[#allocation6 + $0x2b0] sm:$0xff]
    %v134 = vld [vmem:[#allocation6 + $0x2b8] sm:$0xff]
    %v135 = vld [vmem:[#allocation6 + $0x2c0] sm:$0xff]
    %v136 = vld [vmem:[#allocation6 + $0x2c8] sm:$0xff]
    %v137 = vld [vmem:[#allocation6 + $0x2d0] sm:$0xff]
    %v138 = vld [vmem:[#allocation6 + $0x2d8] sm:$0xff]
    %v139 = vld [vmem:[#allocation6 + $0x2e0] sm:$0xff]
    %v140 = vld [vmem:[#allocation6 + $0x2e8] sm:$0xff]
    %v141 = vld [vmem:[#allocation6 + $0x2f0] sm:$0xff]
    %v142 = vld [vmem:[#allocation6 + $0x2f8] sm:$0xff]
    %v143 = vld [vmem:[#allocation6 + $0x300] sm:$0xff]
    %v144 = vld [vmem:[#allocation6 + $0x308] sm:$0xff]
    %v145 = vld [vmem:[#allocation6 + $0x310] sm:$0xff]
    %v146 = vld [vmem:[#allocation6 + $0x318] sm:$0xff]
    %v147 = vld [vmem:[#allocation6 + $0x320] sm:$0xff]
    %v148 = vld [vmem:[#allocation6 + $0x328] sm:$0xff]
    %v149 = vld [vmem:[#allocation6 + $0x330] sm:$0xff]
    %v150 = vld [vmem:[#allocation6 + $0x338] sm:$0xff]
    %v151 = vld [vmem:[#allocation6 + $0x340] sm:$0xff]
    %v152 = vld [vmem:[#allocation6 + $0x348] sm:$0xff]
    %v153 = vld [vmem:[#allocation6 + $0x350] sm:$0xff]
    %v154 = vld [vmem:[#allocation6 + $0x358] sm:$0xff]
    %v155 = vld [vmem:[#allocation6 + $0x360] sm:$0xff]
    %v156 = vld [vmem:[#allocation6 + $0x368] sm:$0xff]
    %v157 = vld [vmem:[#allocation6 + $0x370] sm:$0xff]
    %v158 = vld [vmem:[#allocation6 + $0x378] sm:$0xff]
    %v159 = vld [vmem:[#allocation6 + $0x380] sm:$0xff]
    %v160 = vld [vmem:[#allocation6 + $0x388] sm:$0xff]
    %v161 = vld [vmem:[#allocation6 + $0x390] sm:$0xff]
    %v162 = vld [vmem:[#allocation6 + $0x398] sm:$0xff]
    %v163 = vld [vmem:[#allocation6 + $0x3a0] sm:$0xff]
    %v164 = vld [vmem:[#allocation6 + $0x3a8] sm:$0xff]
    %v165 = vld [vmem:[#allocation6 + $0x3b0] sm:$0xff]
    %v166 = vld [vmem:[#allocation6 + $0x3b8] sm:$0xff]
    %v167 = vld [vmem:[#allocation6 + $0x3c0] sm:$0xff]
    %v168 = vld [vmem:[#allocation6 + $0x3c8] sm:$0xff]
    %v169 = vld [vmem:[#allocation6 + $0x3d0] sm:$0xff]
    %v170 = vld [vmem:[#allocation6 + $0x3d8] sm:$0xff]
    %v171 = vld [vmem:[#allocation6 + $0x3e0] sm:$0xff]
    %v172 = vld [vmem:[#allocation6 + $0x3e8] sm:$0xff]
    %v173 = vld [vmem:[#allocation6 + $0x3f0] sm:$0xff]
    %v174 = vld [vmem:[#allocation6 + $0x3f8] sm:$0xff]
    %v175 = vand.u32 %v48, 4294901760
    %176 = vmatprep.subr.mxu0 %v175
    %v177 = vand.u32 %v47, 4294901760
    %178 = vmatpush1.msra.mxu0 %v177
    %v179 = vand.u32 %v56, 4294901760
    %180 = vmatprep.subr.mxu0 %v179
    %v181 = vand.u32 %v55, 4294901760
    %182 = vmatpush1.msra.mxu0 %v181
    %v183 = vand.u32 %v64, 4294901760
    %184 = vmatprep.subr.mxu0 %v183
    %v185 = vand.u32 %v63, 4294901760
    %186 = vmatpush1.msra.mxu0 %v185
    %v187 = vand.u32 %v72, 4294901760
    %188 = vmatprep.subr.mxu0 %v187
    %v189 = vand.u32 %v71, 4294901760
    %190 = vmatpush1.msra.mxu0 %v189
    %v191 = vand.u32 %v80, 4294901760
    %192 = vmatprep.subr.mxu0 %v191
    %v193 = vand.u32 %v79, 4294901760
    %194 = vmatpush1.msra.mxu0 %v193
    %v195 = vand.u32 %v88, 4294901760
    %196 = vmatprep.subr.mxu0 %v195
    %v197 = vand.u32 %v87, 4294901760
    %198 = vmatpush1.msra.mxu0 %v197
    %v199 = vand.u32 %v96, 4294901760
    %200 = vmatprep.subr.mxu0 %v199
    %v201 = vand.u32 %v95, 4294901760
    %202 = vmatpush1.msra.mxu0 %v201
    %v203 = vand.u32 %v104, 4294901760
    %204 = vmatprep.subr.mxu0 %v203
    %v205 = vand.u32 %v103, 4294901760
    %206 = vmatpush1.msra.mxu0 %v205
    %v207 = vand.u32 %v112, 4294901760
    %208 = vmatprep.subr.mxu0 %v207
    %v209 = vand.u32 %v111, 4294901760
    %210 = vmatpush1.msra.mxu0 %v209
    %v211 = vand.u32 %v120, 4294901760
    %212 = vmatprep.subr.mxu0 %v211
    %v213 = vand.u32 %v119, 4294901760
    %214 = vmatpush1.msra.mxu0 %v213
    %v215 = vand.u32 %v128, 4294901760
    %216 = vmatprep.subr.mxu0 %v215
    %v217 = vand.u32 %v127, 4294901760
    %218 = vmatpush1.msra.mxu0 %v217
    %v219 = vand.u32 %v136, 4294901760
    %220 = vmatprep.subr.mxu0 %v219
    %v221 = vand.u32 %v135, 4294901760
    %222 = vmatpush1.msra.mxu0 %v221
    %v223 = vand.u32 %v144, 4294901760
    %224 = vmatprep.subr.mxu0 %v223
    %v225 = vand.u32 %v143, 4294901760
    %226 = vmatpush1.msra.mxu0 %v225
    %v227 = vand.u32 %v152, 4294901760
    %228 = vmatprep.subr.mxu0 %v227
    %v229 = vand.u32 %v151, 4294901760
    %230 = vmatpush1.msra.mxu0 %v229
    %v231 = vand.u32 %v160, 4294901760
    %232 = vmatprep.subr.mxu0 %v231
    %v233 = vand.u32 %v159, 4294901760
    %234 = vmatpush1.msra.mxu0 %v233
    %v235 = vand.u32 %v168, 4294901760
    %236 = vmatprep.subr.mxu0 %v235
    %v237 = vand.u32 %v167, 4294901760
    %238 = vmatpush1.msra.mxu0 %v237
    %239 = vmatprep.subr.mxu0 0.0
    %240 = vmatpush1.msra.mxu0 0.0
    %241 = vmatprep.subr.mxu0 0.0
    %242 = vmatpush1.msra.mxu0 0.0
    %243 = vmatprep.subr.mxu0 0.0
    %244 = vmatpush1.msra.mxu0 0.0
    %245 = vmatprep.subr.mxu0 0.0
    %246 = vmatpush1.msra.mxu0 0.0
    %247 = vmatprep.subr.mxu0 0.0
    %248 = vmatpush1.msra.mxu0 0.0
    %249 = vmatprep.subr.mxu0 0.0
    %250 = vmatpush1.msra.mxu0 0.0
    %251 = vmatprep.subr.mxu0 0.0
    %252 = vmatpush1.msra.mxu0 0.0
    %253 = vmatprep.subr.mxu0 0.0
    %254 = vmatpush1.msra.mxu0 0.0
    %255 = vmatprep.subr.mxu0 0.0
    %256 = vmatpush1.msra.mxu0 0.0
    %257 = vmatprep.subr.mxu0 0.0
    %258 = vmatpush1.msra.mxu0 0.0
    %259 = vmatprep.subr.mxu0 0.0
    %260 = vmatpush1.msra.mxu0 0.0
    %261 = vmatprep.subr.mxu0 0.0
    %262 = vmatpush1.msra.mxu0 0.0
    %263 = vmatprep.subr.mxu0 0.0
    %264 = vmatpush1.msra.mxu0 0.0
    %265 = vmatprep.subr.mxu0 0.0
    %266 = vmatpush1.msra.mxu0 0.0
    %267 = vmatprep.subr.mxu0 0.0
    %268 = vmatpush1.msra.mxu0 0.0
    %269 = vmatprep.subr.mxu0 0.0
    %270 = vmatpush1.msra.mxu0 0.0
    %271 = vmatprep.mubr.f32.mxu0 0.0
    %v272 = vand.u32 %v46, 4294901760
    %v273 = vsub.f32 %v46, %v272
    %v274 = vand.u32 %v273, 4294901760
    %v275 = vsub.f32 %v273, %v274
    %v276 = vand.u32 %v275, 4294901760
    %277 = vmatmul.mubr.f32.gmra.mrb[0].mxu0 %v276
    %v278 = vpop.f32.mrb[0].mxu0
    %v279 = vadd.f32 0.0, %v278
    %v280 = vpop.f32.mrb[0].mxu0
    %v281 = vadd.f32 0.0, %v280
    %282 = vdwg.mxu0
    %v283 = vand.u32 %v48, 4294901760
    %v284 = vsub.f32 %v48, %v283
    %v285 = vand.u32 %v284, 4294901760
    %v286 = vsub.f32 %v284, %v285
    %v287 = vand.u32 %v286, 4294901760
    %288 = vmatprep.subr.mxu0 %v287
    %v289 = vand.u32 %v47, 4294901760
    %v290 = vsub.f32 %v47, %v289
    %v291 = vand.u32 %v290, 4294901760
    %v292 = vsub.f32 %v290, %v291
    %v293 = vand.u32 %v292, 4294901760
    %294 = vmatpush1.msra.mxu0 %v293
    %v295 = vand.u32 %v56, 4294901760
    %v296 = vsub.f32 %v56, %v295
    %v297 = vand.u32 %v296, 4294901760
    %v298 = vsub.f32 %v296, %v297
    %v299 = vand.u32 %v298, 4294901760
    %300 = vmatprep.subr.mxu0 %v299
    %v301 = vand.u32 %v55, 4294901760
    %v302 = vsub.f32 %v55, %v301
    %v303 = vand.u32 %v302, 4294901760
    %v304 = vsub.f32 %v302, %v303
    %v305 = vand.u32 %v304, 4294901760
    %306 = vmatpush1.msra.mxu0 %v305
    %v307 = vand.u32 %v64, 4294901760
    %v308 = vsub.f32 %v64, %v307
    %v309 = vand.u32 %v308, 4294901760
    %v310 = vsub.f32 %v308, %v309
    %v311 = vand.u32 %v310, 4294901760
    %312 = vmatprep.subr.mxu0 %v311
    %v313 = vand.u32 %v63, 4294901760
    %v314 = vsub.f32 %v63, %v313
    %v315 = vand.u32 %v314, 4294901760
    %v316 = vsub.f32 %v314, %v315
    %v317 = vand.u32 %v316, 4294901760
    %318 = vmatpush1.msra.mxu0 %v317
    %v319 = vand.u32 %v72, 4294901760
    %v320 = vsub.f32 %v72, %v319
    %v321 = vand.u32 %v320, 4294901760
    %v322 = vsub.f32 %v320, %v321
    %v323 = vand.u32 %v322, 4294901760
    %324 = vmatprep.subr.mxu0 %v323
    %v325 = vand.u32 %v71, 4294901760
    %v326 = vsub.f32 %v71, %v325
    %v327 = vand.u32 %v326, 4294901760
    %v328 = vsub.f32 %v326, %v327
    %v329 = vand.u32 %v328, 4294901760
    %330 = vmatpush1.msra.mxu0 %v329
    %v331 = vand.u32 %v80, 4294901760
    %v332 = vsub.f32 %v80, %v331
    %v333 = vand.u32 %v332, 4294901760
    %v334 = vsub.f32 %v332, %v333
    %v335 = vand.u32 %v334, 4294901760
    %336 = vmatprep.subr.mxu0 %v335
    %v337 = vand.u32 %v79, 4294901760
    %v338 = vsub.f32 %v79, %v337
    %v339 = vand.u32 %v338, 4294901760
    %v340 = vsub.f32 %v338, %v339
    %v341 = vand.u32 %v340, 4294901760
    %342 = vmatpush1.msra.mxu0 %v341
    %v343 = vand.u32 %v88, 4294901760
    %v344 = vsub.f32 %v88, %v343
    %v345 = vand.u32 %v344, 4294901760
    %v346 = vsub.f32 %v344, %v345
    %v347 = vand.u32 %v346, 4294901760
    %348 = vmatprep.subr.mxu0 %v347
    %v349 = vand.u32 %v87, 4294901760
    %v350 = vsub.f32 %v87, %v349
    %v351 = vand.u32 %v350, 4294901760
    %v352 = vsub.f32 %v350, %v351
    %v353 = vand.u32 %v352, 4294901760
    %354 = vmatpush1.msra.mxu0 %v353
    %v355 = vand.u32 %v96, 4294901760
    %v356 = vsub.f32 %v96, %v355
    %v357 = vand.u32 %v356, 4294901760
    %v358 = vsub.f32 %v356, %v357
    %v359 = vand.u32 %v358, 4294901760
    %360 = vmatprep.subr.mxu0 %v359
    %v361 = vand.u32 %v95, 4294901760
    %v362 = vsub.f32 %v95, %v361
    %v363 = vand.u32 %v362, 4294901760
    %v364 = vsub.f32 %v362, %v363
    %v365 = vand.u32 %v364, 4294901760
    %366 = vmatpush1.msra.mxu0 %v365
    %v367 = vand.u32 %v104, 4294901760
    %v368 = vsub.f32 %v104, %v367
    %v369 = vand.u32 %v368, 4294901760
    %v370 = vsub.f32 %v368, %v369
    %v371 = vand.u32 %v370, 4294901760
    %372 = vmatprep.subr.mxu0 %v371
    %v373 = vand.u32 %v103, 4294901760
    %v374 = vsub.f32 %v103, %v373
    %v375 = vand.u32 %v374, 4294901760
    %v376 = vsub.f32 %v374, %v375
    %v377 = vand.u32 %v376, 4294901760
    %378 = vmatpush1.msra.mxu0 %v377
    %v379 = vand.u32 %v112, 4294901760
    %v380 = vsub.f32 %v112, %v379
    %v381 = vand.u32 %v380, 4294901760
    %v382 = vsub.f32 %v380, %v381
    %v383 = vand.u32 %v382, 4294901760
    %384 = vmatprep.subr.mxu0 %v383
    %v385 = vand.u32 %v111, 4294901760
    %v386 = vsub.f32 %v111, %v385
    %v387 = vand.u32 %v386, 4294901760
    %v388 = vsub.f32 %v386, %v387
    %v389 = vand.u32 %v388, 4294901760
    %390 = vmatpush1.msra.mxu0 %v389
    %v391 = vand.u32 %v120, 4294901760
    %v392 = vsub.f32 %v120, %v391
    %v393 = vand.u32 %v392, 4294901760
    %v394 = vsub.f32 %v392, %v393
    %v395 = vand.u32 %v394, 4294901760
    %396 = vmatprep.subr.mxu0 %v395
    %v397 = vand.u32 %v119, 4294901760
    %v398 = vsub.f32 %v119, %v397
    %v399 = vand.u32 %v398, 4294901760
    %v400 = vsub.f32 %v398, %v399
    %v401 = vand.u32 %v400, 4294901760
    %402 = vmatpush1.msra.mxu0 %v401
    %v403 = vand.u32 %v128, 4294901760
    %v404 = vsub.f32 %v128, %v403
    %v405 = vand.u32 %v404, 4294901760
    %v406 = vsub.f32 %v404, %v405
    %v407 = vand.u32 %v406, 4294901760
    %408 = vmatprep.subr.mxu0 %v407
    %v409 = vand.u32 %v127, 4294901760
    %v410 = vsub.f32 %v127, %v409
    %v411 = vand.u32 %v410, 4294901760
    %v412 = vsub.f32 %v410, %v411
    %v413 = vand.u32 %v412, 4294901760
    %414 = vmatpush1.msra.mxu0 %v413
    %v415 = vand.u32 %v136, 4294901760
    %v416 = vsub.f32 %v136, %v415
    %v417 = vand.u32 %v416, 4294901760
    %v418 = vsub.f32 %v416, %v417
    %v419 = vand.u32 %v418, 4294901760
    %420 = vmatprep.subr.mxu0 %v419
    %v421 = vand.u32 %v135, 4294901760
    %v422 = vsub.f32 %v135, %v421
    %v423 = vand.u32 %v422, 4294901760
    %v424 = vsub.f32 %v422, %v423
    %v425 = vand.u32 %v424, 4294901760
    %426 = vmatpush1.msra.mxu0 %v425
    %v427 = vand.u32 %v144, 4294901760
    %v428 = vsub.f32 %v144, %v427
    %v429 = vand.u32 %v428, 4294901760
    %v430 = vsub.f32 %v428, %v429
    %v431 = vand.u32 %v430, 4294901760
    %432 = vmatprep.subr.mxu0 %v431
    %v433 = vand.u32 %v143, 4294901760
    %v434 = vsub.f32 %v143, %v433
    %v435 = vand.u32 %v434, 4294901760
    %v436 = vsub.f32 %v434, %v435
    %v437 = vand.u32 %v436, 4294901760
    %438 = vmatpush1.msra.mxu0 %v437
    %v439 = vand.u32 %v152, 4294901760
    %v440 = vsub.f32 %v152, %v439
    %v441 = vand.u32 %v440, 4294901760
    %v442 = vsub.f32 %v440, %v441
    %v443 = vand.u32 %v442, 4294901760
    %444 = vmatprep.subr.mxu0 %v443
    %v445 = vand.u32 %v151, 4294901760
    %v446 = vsub.f32 %v151, %v445
    %v447 = vand.u32 %v446, 4294901760
    %v448 = vsub.f32 %v446, %v447
    %v449 = vand.u32 %v448, 4294901760
    %450 = vmatpush1.msra.mxu0 %v449
    %v451 = vand.u32 %v160, 4294901760
    %v452 = vsub.f32 %v160, %v451
    %v453 = vand.u32 %v452, 4294901760
    %v454 = vsub.f32 %v452, %v453
    %v455 = vand.u32 %v454, 4294901760
    %456 = vmatprep.subr.mxu0 %v455
    %v457 = vand.u32 %v159, 4294901760
    %v458 = vsub.f32 %v159, %v457
    %v459 = vand.u32 %v458, 4294901760
    %v460 = vsub.f32 %v458, %v459
    %v461 = vand.u32 %v460, 4294901760
    %462 = vmatpush1.msra.mxu0 %v461
    %v463 = vand.u32 %v168, 4294901760
    %v464 = vsub.f32 %v168, %v463
    %v465 = vand.u32 %v464, 4294901760
    %v466 = vsub.f32 %v464, %v465
    %v467 = vand.u32 %v466, 4294901760
    %468 = vmatprep.subr.mxu0 %v467
    %v469 = vand.u32 %v167, 4294901760
    %v470 = vsub.f32 %v167, %v469
    %v471 = vand.u32 %v470, 4294901760
    %v472 = vsub.f32 %v470, %v471
    %v473 = vand.u32 %v472, 4294901760
    %474 = vmatpush1.msra.mxu0 %v473
    %475 = vmatprep.subr.mxu0 0.0
    %476 = vmatpush1.msra.mxu0 0.0
    %477 = vmatprep.subr.mxu0 0.0
    %478 = vmatpush1.msra.mxu0 0.0
    %479 = vmatprep.subr.mxu0 0.0
    %480 = vmatpush1.msra.mxu0 0.0
    %481 = vmatprep.subr.mxu0 0.0
    %482 = vmatpush1.msra.mxu0 0.0
    %483 = vmatprep.subr.mxu0 0.0
    %484 = vmatpush1.msra.mxu0 0.0
    %485 = vmatprep.subr.mxu0 0.0
    %486 = vmatpush1.msra.mxu0 0.0
    %487 = vmatprep.subr.mxu0 0.0
    %488 = vmatpush1.msra.mxu0 0.0
    %489 = vmatprep.subr.mxu0 0.0
    %490 = vmatpush1.msra.mxu0 0.0
    %491 = vmatprep.subr.mxu0 0.0
    %492 = vmatpush1.msra.mxu0 0.0
    %493 = vmatprep.subr.mxu0 0.0
    %494 = vmatpush1.msra.mxu0 0.0
    %495 = vmatprep.subr.mxu0 0.0
    %496 = vmatpush1.msra.mxu0 0.0
    %497 = vmatprep.subr.mxu0 0.0
    %498 = vmatpush1.msra.mxu0 0.0
    %499 = vmatprep.subr.mxu0 0.0
    %500 = vmatpush1.msra.mxu0 0.0
    %501 = vmatprep.subr.mxu0 0.0
    %502 = vmatpush1.msra.mxu0 0.0
    %503 = vmatprep.subr.mxu0 0.0
    %504 = vmatpush1.msra.mxu0 0.0
    %505 = vmatprep.subr.mxu0 0.0
    %506 = vmatpush1.msra.mxu0 0.0
    %507 = vmatprep.mubr.f32.mxu0 0.0
    %v508 = vand.u32 %v46, 4294901760
    %509 = vmatmul.mubr.f32.gmra.mrb[0].mxu0 %v508
    %v510 = vpop.f32.mrb[0].mxu0
    %v511 = vadd.f32 %v279, %v510
    %v512 = vpop.f32.mrb[0].mxu0
    %v513 = vadd.f32 %v281, %v512
    %514 = vdwg.mxu0
    %v515 = vand.u32 %v48, 4294901760
    %v516 = vsub.f32 %v48, %v515
    %517 = vmatprep.subr.mxu0 %v516
    %v518 = vand.u32 %v47, 4294901760
    %v519 = vsub.f32 %v47, %v518
    %520 = vmatpush1.msra.mxu0 %v519
    %v521 = vand.u32 %v56, 4294901760
    %v522 = vsub.f32 %v56, %v521
    %523 = vmatprep.subr.mxu0 %v522
    %v524 = vand.u32 %v55, 4294901760
    %v525 = vsub.f32 %v55, %v524
    %526 = vmatpush1.msra.mxu0 %v525
    %v527 = vand.u32 %v64, 4294901760
    %v528 = vsub.f32 %v64, %v527
    %529 = vmatprep.subr.mxu0 %v528
    %v530 = vand.u32 %v63, 4294901760
    %v531 = vsub.f32 %v63, %v530
    %532 = vmatpush1.msra.mxu0 %v531
    %v533 = vand.u32 %v72, 4294901760
    %v534 = vsub.f32 %v72, %v533
    %535 = vmatprep.subr.mxu0 %v534
    %v536 = vand.u32 %v71, 4294901760
    %v537 = vsub.f32 %v71, %v536
    %538 = vmatpush1.msra.mxu0 %v537
    %v539 = vand.u32 %v80, 4294901760
    %v540 = vsub.f32 %v80, %v539
    %541 = vmatprep.subr.mxu0 %v540
    %v542 = vand.u32 %v79, 4294901760
    %v543 = vsub.f32 %v79, %v542
    %544 = vmatpush1.msra.mxu0 %v543
    %v545 = vand.u32 %v88, 4294901760
    %v546 = vsub.f32 %v88, %v545
    %547 = vmatprep.subr.mxu0 %v546
    %v548 = vand.u32 %v87, 4294901760
    %v549 = vsub.f32 %v87, %v548
    %550 = vmatpush1.msra.mxu0 %v549
    %v551 = vand.u32 %v96, 4294901760
    %v552 = vsub.f32 %v96, %v551
    %553 = vmatprep.subr.mxu0 %v552
    %v554 = vand.u32 %v95, 4294901760
    %v555 = vsub.f32 %v95, %v554
    %556 = vmatpush1.msra.mxu0 %v555
    %v557 = vand.u32 %v104, 4294901760
    %v558 = vsub.f32 %v104, %v557
    %559 = vmatprep.subr.mxu0 %v558
    %v560 = vand.u32 %v103, 4294901760
    %v561 = vsub.f32 %v103, %v560
    %562 = vmatpush1.msra.mxu0 %v561
    %v563 = vand.u32 %v112, 4294901760
    %v564 = vsub.f32 %v112, %v563
    %565 = vmatprep.subr.mxu0 %v564
    %v566 = vand.u32 %v111, 4294901760
    %v567 = vsub.f32 %v111, %v566
    %568 = vmatpush1.msra.mxu0 %v567
    %v569 = vand.u32 %v120, 4294901760
    %v570 = vsub.f32 %v120, %v569
    %571 = vmatprep.subr.mxu0 %v570
    %v572 = vand.u32 %v119, 4294901760
    %v573 = vsub.f32 %v119, %v572
    %574 = vmatpush1.msra.mxu0 %v573
    %v575 = vand.u32 %v128, 4294901760
    %v576 = vsub.f32 %v128, %v575
    %577 = vmatprep.subr.mxu0 %v576
    %v578 = vand.u32 %v127, 4294901760
    %v579 = vsub.f32 %v127, %v578
    %580 = vmatpush1.msra.mxu0 %v579
    %v581 = vand.u32 %v136, 4294901760
    %v582 = vsub.f32 %v136, %v581
    %583 = vmatprep.subr.mxu0 %v582
    %v584 = vand.u32 %v135, 4294901760
    %v585 = vsub.f32 %v135, %v584
    %586 = vmatpush1.msra.mxu0 %v585
    %v587 = vand.u32 %v144, 4294901760
    %v588 = vsub.f32 %v144, %v587
    %589 = vmatprep.subr.mxu0 %v588
    %v590 = vand.u32 %v143, 4294901760
    %v591 = vsub.f32 %v143, %v590
    %592 = vmatpush1.msra.mxu0 %v591
    %v593 = vand.u32 %v152, 4294901760
    %v594 = vsub.f32 %v152, %v593
    %595 = vmatprep.subr.mxu0 %v594
    %v596 = vand.u32 %v151, 4294901760
    %v597 = vsub.f32 %v151, %v596
    %598 = vmatpush1.msra.mxu0 %v597
    %v599 = vand.u32 %v160, 4294901760
    %v600 = vsub.f32 %v160, %v599
    %601 = vmatprep.subr.mxu0 %v600
    %v602 = vand.u32 %v159, 4294901760
    %v603 = vsub.f32 %v159, %v602
    %604 = vmatpush1.msra.mxu0 %v603
    %v605 = vand.u32 %v168, 4294901760
    %v606 = vsub.f32 %v168, %v605
    %607 = vmatprep.subr.mxu0 %v606
    %v608 = vand.u32 %v167, 4294901760
    %v609 = vsub.f32 %v167, %v608
    %610 = vmatpush1.msra.mxu0 %v609
    %611 = vmatprep.subr.mxu0 0.0
    %612 = vmatpush1.msra.mxu0 0.0
    %613 = vmatprep.subr.mxu0 0.0
    %614 = vmatpush1.msra.mxu0 0.0
    %615 = vmatprep.subr.mxu0 0.0
    %616 = vmatpush1.msra.mxu0 0.0
    %617 = vmatprep.subr.mxu0 0.0
    %618 = vmatpush1.msra.mxu0 0.0
    %619 = vmatprep.subr.mxu0 0.0
    %620 = vmatpush1.msra.mxu0 0.0
    %621 = vmatprep.subr.mxu0 0.0
    %622 = vmatpush1.msra.mxu0 0.0
    %623 = vmatprep.subr.mxu0 0.0
    %624 = vmatpush1.msra.mxu0 0.0
    %625 = vmatprep.subr.mxu0 0.0
    %626 = vmatpush1.msra.mxu0 0.0
    %627 = vmatprep.subr.mxu0 0.0
    %628 = vmatpush1.msra.mxu0 0.0
    %629 = vmatprep.subr.mxu0 0.0
    %630 = vmatpush1.msra.mxu0 0.0
    %631 = vmatprep.subr.mxu0 0.0
    %632 = vmatpush1.msra.mxu0 0.0
    %633 = vmatprep.subr.mxu0 0.0
    %634 = vmatpush1.msra.mxu0 0.0
    %635 = vmatprep.subr.mxu0 0.0
    %636 = vmatpush1.msra.mxu0 0.0
    %637 = vmatprep.subr.mxu0 0.0
    %638 = vmatpush1.msra.mxu0 0.0
    %639 = vmatprep.subr.mxu0 0.0
    %640 = vmatpush1.msra.mxu0 0.0
    %641 = vmatprep.subr.mxu0 0.0
    %642 = vmatpush1.msra.mxu0 0.0
    %643 = vmatprep.mubr.f32.mxu0 0.0
    %v644 = vand.u32 %v46, 4294901760
    %v645 = vsub.f32 %v46, %v644
    %646 = vmatmul.mubr.f32.gmra.mrb[0].mxu0 %v645
    %v647 = vpop.f32.mrb[0].mxu0
    %v648 = vadd.f32 %v511, %v647
    %v649 = vpop.f32.mrb[0].mxu0
    %v650 = vadd.f32 %v513, %v649
    %651 = vdwg.mxu0
    %v652 = vand.u32 %v48, 4294901760
    %653 = vmatprep.subr.mxu0 %v652
    %v654 = vand.u32 %v47, 4294901760
    %655 = vmatpush1.msra.mxu0 %v654
    %v656 = vand.u32 %v56, 4294901760
    %657 = vmatprep.subr.mxu0 %v656
    %v658 = vand.u32 %v55, 4294901760
    %659 = vmatpush1.msra.mxu0 %v658
    %v660 = vand.u32 %v64, 4294901760
    %661 = vmatprep.subr.mxu0 %v660
    %v662 = vand.u32 %v63, 4294901760
    %663 = vmatpush1.msra.mxu0 %v662
    %v664 = vand.u32 %v72, 4294901760
    %665 = vmatprep.subr.mxu0 %v664
    %v666 = vand.u32 %v71, 4294901760
    %667 = vmatpush1.msra.mxu0 %v666
    %v668 = vand.u32 %v80, 4294901760
    %669 = vmatprep.subr.mxu0 %v668
    %v670 = vand.u32 %v79, 4294901760
    %671 = vmatpush1.msra.mxu0 %v670
    %v672 = vand.u32 %v88, 4294901760
    %673 = vmatprep.subr.mxu0 %v672
    %v674 = vand.u32 %v87, 4294901760
    %675 = vmatpush1.msra.mxu0 %v674
    %v676 = vand.u32 %v96, 4294901760
    %677 = vmatprep.subr.mxu0 %v676
    %v678 = vand.u32 %v95, 4294901760
    %679 = vmatpush1.msra.mxu0 %v678
    %v680 = vand.u32 %v104, 4294901760
    %681 = vmatprep.subr.mxu0 %v680
    %v682 = vand.u32 %v103, 4294901760
    %683 = vmatpush1.msra.mxu0 %v682
    %v684 = vand.u32 %v112, 4294901760
    %685 = vmatprep.subr.mxu0 %v684
    %v686 = vand.u32 %v111, 4294901760
    %687 = vmatpush1.msra.mxu0 %v686
    %v688 = vand.u32 %v120, 4294901760
    %689 = vmatprep.subr.mxu0 %v688
    %v690 = vand.u32 %v119, 4294901760
    %691 = vmatpush1.msra.mxu0 %v690
    %v692 = vand.u32 %v128, 4294901760
    %693 = vmatprep.subr.mxu0 %v692
    %v694 = vand.u32 %v127, 4294901760
    %695 = vmatpush1.msra.mxu0 %v694
    %v696 = vand.u32 %v136, 4294901760
    %697 = vmatprep.subr.mxu0 %v696
    %v698 = vand.u32 %v135, 4294901760
    %699 = vmatpush1.msra.mxu0 %v698
    %v700 = vand.u32 %v144, 4294901760
    %701 = vmatprep.subr.mxu0 %v700
    %v702 = vand.u32 %v143, 4294901760
    %703 = vmatpush1.msra.mxu0 %v702
    %v704 = vand.u32 %v152, 4294901760
    %705 = vmatprep.subr.mxu0 %v704
    %v706 = vand.u32 %v151, 4294901760
    %707 = vmatpush1.msra.mxu0 %v706
    %v708 = vand.u32 %v160, 4294901760
    %709 = vmatprep.subr.mxu0 %v708
    %v710 = vand.u32 %v159, 4294901760
    %711 = vmatpush1.msra.mxu0 %v710
    %v712 = vand.u32 %v168, 4294901760
    %713 = vmatprep.subr.mxu0 %v712
    %v714 = vand.u32 %v167, 4294901760
    %715 = vmatpush1.msra.mxu0 %v714
    %716 = vmatprep.subr.mxu0 0.0
    %717 = vmatpush1.msra.mxu0 0.0
    %718 = vmatprep.subr.mxu0 0.0
    %719 = vmatpush1.msra.mxu0 0.0
    %720 = vmatprep.subr.mxu0 0.0
    %721 = vmatpush1.msra.mxu0 0.0
    %722 = vmatprep.subr.mxu0 0.0
    %723 = vmatpush1.msra.mxu0 0.0
    %724 = vmatprep.subr.mxu0 0.0
    %725 = vmatpush1.msra.mxu0 0.0
    %726 = vmatprep.subr.mxu0 0.0
    %727 = vmatpush1.msra.mxu0 0.0
    %728 = vmatprep.subr.mxu0 0.0
    %729 = vmatpush1.msra.mxu0 0.0
    %730 = vmatprep.subr.mxu0 0.0
    %731 = vmatpush1.msra.mxu0 0.0
    %732 = vmatprep.subr.mxu0 0.0
    %733 = vmatpush1.msra.mxu0 0.0
    %734 = vmatprep.subr.mxu0 0.0
    %735 = vmatpush1.msra.mxu0 0.0
    %736 = vmatprep.subr.mxu0 0.0
    %737 = vmatpush1.msra.mxu0 0.0
    %738 = vmatprep.subr.mxu0 0.0
    %739 = vmatpush1.msra.mxu0 0.0
    %740 = vmatprep.subr.mxu0 0.0
    %741 = vmatpush1.msra.mxu0 0.0
    %742 = vmatprep.subr.mxu0 0.0
    %743 = vmatpush1.msra.mxu0 0.0
    %744 = vmatprep.subr.mxu0 0.0
    %745 = vmatpush1.msra.mxu0 0.0
    %746 = vmatprep.subr.mxu0 0.0
    %747 = vmatpush1.msra.mxu0 0.0
    %748 = vmatprep.mubr.f32.mxu0 0.0
    %v749 = vand.u32 %v46, 4294901760
    %v750 = vsub.f32 %v46, %v749
    %v751 = vand.u32 %v750, 4294901760
    %752 = vmatmul.mubr.f32.gmra.mrb[0].mxu0 %v751
    %v753 = vpop.f32.mrb[0].mxu0
    %v754 = vadd.f32 %v648, %v753
    %v755 = vpop.f32.mrb[0].mxu0
    %v756 = vadd.f32 %v650, %v755
    %757 = vdwg.mxu0
    %v758 = vand.u32 %v48, 4294901760
    %v759 = vsub.f32 %v48, %v758
    %v760 = vand.u32 %v759, 4294901760
    %761 = vmatprep.subr.mxu0 %v760
    %v762 = vand.u32 %v47, 4294901760
    %v763 = vsub.f32 %v47, %v762
    %v764 = vand.u32 %v763, 4294901760
    %765 = vmatpush1.msra.mxu0 %v764
    %v766 = vand.u32 %v56, 4294901760
    %v767 = vsub.f32 %v56, %v766
    %v768 = vand.u32 %v767, 4294901760
    %769 = vmatprep.subr.mxu0 %v768
    %v770 = vand.u32 %v55, 4294901760
    %v771 = vsub.f32 %v55, %v770
    %v772 = vand.u32 %v771, 4294901760
    %773 = vmatpush1.msra.mxu0 %v772
    %v774 = vand.u32 %v64, 4294901760
    %v775 = vsub.f32 %v64, %v774
    %v776 = vand.u32 %v775, 4294901760
    %777 = vmatprep.subr.mxu0 %v776
    %v778 = vand.u32 %v63, 4294901760
    %v779 = vsub.f32 %v63, %v778
    %v780 = vand.u32 %v779, 4294901760
    %781 = vmatpush1.msra.mxu0 %v780
    %v782 = vand.u32 %v72, 4294901760
    %v783 = vsub.f32 %v72, %v782
    %v784 = vand.u32 %v783, 4294901760
    %785 = vmatprep.subr.mxu0 %v784
    %v786 = vand.u32 %v71, 4294901760
    %v787 = vsub.f32 %v71, %v786
    %v788 = vand.u32 %v787, 4294901760
    %789 = vmatpush1.msra.mxu0 %v788
    %v790 = vand.u32 %v80, 4294901760
    %v791 = vsub.f32 %v80, %v790
    %v792 = vand.u32 %v791, 4294901760
    %793 = vmatprep.subr.mxu0 %v792
    %v794 = vand.u32 %v79, 4294901760
    %v795 = vsub.f32 %v79, %v794
    %v796 = vand.u32 %v795, 4294901760
    %797 = vmatpush1.msra.mxu0 %v796
    %v798 = vand.u32 %v88, 4294901760
    %v799 = vsub.f32 %v88, %v798
    %v800 = vand.u32 %v799, 4294901760
    %801 = vmatprep.subr.mxu0 %v800
    %v802 = vand.u32 %v87, 4294901760
    %v803 = vsub.f32 %v87, %v802
    %v804 = vand.u32 %v803, 4294901760
    %805 = vmatpush1.msra.mxu0 %v804
    %v806 = vand.u32 %v96, 4294901760
    %v807 = vsub.f32 %v96, %v806
    %v808 = vand.u32 %v807, 4294901760
    %809 = vmatprep.subr.mxu0 %v808
    %v810 = vand.u32 %v95, 4294901760
    %v811 = vsub.f32 %v95, %v810
    %v812 = vand.u32 %v811, 4294901760
    %813 = vmatpush1.msra.mxu0 %v812
    %v814 = vand.u32 %v104, 4294901760
    %v815 = vsub.f32 %v104, %v814
    %v816 = vand.u32 %v815, 4294901760
    %817 = vmatprep.subr.mxu0 %v816
    %v818 = vand.u32 %v103, 4294901760
    %v819 = vsub.f32 %v103, %v818
    %v820 = vand.u32 %v819, 4294901760
    %821 = vmatpush1.msra.mxu0 %v820
    %v822 = vand.u32 %v112, 4294901760
    %v823 = vsub.f32 %v112, %v822
    %v824 = vand.u32 %v823, 4294901760
    %825 = vmatprep.subr.mxu0 %v824
    %v826 = vand.u32 %v111, 4294901760
    %v827 = vsub.f32 %v111, %v826
    %v828 = vand.u32 %v827, 4294901760
    %829 = vmatpush1.msra.mxu0 %v828
    %v830 = vand.u32 %v120, 4294901760
    %v831 = vsub.f32 %v120, %v830
    %v832 = vand.u32 %v831, 4294901760
    %833 = vmatprep.subr.mxu0 %v832
    %v834 = vand.u32 %v119, 4294901760
    %v835 = vsub.f32 %v119, %v834
    %v836 = vand.u32 %v835, 4294901760
    %837 = vmatpush1.msra.mxu0 %v836
    %v838 = vand.u32 %v128, 4294901760
    %v839 = vsub.f32 %v128, %v838
    %v840 = vand.u32 %v839, 4294901760
    %841 = vmatprep.subr.mxu0 %v840
    %v842 = vand.u32 %v127, 4294901760
    %v843 = vsub.f32 %v127, %v842
    %v844 = vand.u32 %v843, 4294901760
    %845 = vmatpush1.msra.mxu0 %v844
    %v846 = vand.u32 %v136, 4294901760
    %v847 = vsub.f32 %v136, %v846
    %v848 = vand.u32 %v847, 4294901760
    %849 = vmatprep.subr.mxu0 %v848
    %v850 = vand.u32 %v135, 4294901760
    %v851 = vsub.f32 %v135, %v850
    %v852 = vand.u32 %v851, 4294901760
    %853 = vmatpush1.msra.mxu0 %v852
    %v854 = vand.u32 %v144, 4294901760
    %v855 = vsub.f32 %v144, %v854
    %v856 = vand.u32 %v855, 4294901760
    %857 = vmatprep.subr.mxu0 %v856
    %v858 = vand.u32 %v143, 4294901760
    %v859 = vsub.f32 %v143, %v858
    %v860 = vand.u32 %v859, 4294901760
    %861 = vmatpush1.msra.mxu0 %v860
    %v862 = vand.u32 %v152, 4294901760
    %v863 = vsub.f32 %v152, %v862
    %v864 = vand.u32 %v863, 4294901760
    %865 = vmatprep.subr.mxu0 %v864
    %v866 = vand.u32 %v151, 4294901760
    %v867 = vsub.f32 %v151, %v866
    %v868 = vand.u32 %v867, 4294901760
    %869 = vmatpush1.msra.mxu0 %v868
    %v870 = vand.u32 %v160, 4294901760
    %v871 = vsub.f32 %v160, %v870
    %v872 = vand.u32 %v871, 4294901760
    %873 = vmatprep.subr.mxu0 %v872
    %v874 = vand.u32 %v159, 4294901760
    %v875 = vsub.f32 %v159, %v874
    %v876 = vand.u32 %v875, 4294901760
    %877 = vmatpush1.msra.mxu0 %v876
    %v878 = vand.u32 %v168, 4294901760
    %v879 = vsub.f32 %v168, %v878
    %v880 = vand.u32 %v879, 4294901760
    %881 = vmatprep.subr.mxu0 %v880
    %v882 = vand.u32 %v167, 4294901760
    %v883 = vsub.f32 %v167, %v882
    %v884 = vand.u32 %v883, 4294901760
    %885 = vmatpush1.msra.mxu0 %v884
    %886 = vmatprep.subr.mxu0 0.0
    %887 = vmatpush1.msra.mxu0 0.0
    %888 = vmatprep.subr.mxu0 0.0
    %889 = vmatpush1.msra.mxu0 0.0
    %890 = vmatprep.subr.mxu0 0.0
    %891 = vmatpush1.msra.mxu0 0.0
    %892 = vmatprep.subr.mxu0 0.0
    %893 = vmatpush1.msra.mxu0 0.0
    %894 = vmatprep.subr.mxu0 0.0
    %895 = vmatpush1.msra.mxu0 0.0
    %896 = vmatprep.subr.mxu0 0.0
    %897 = vmatpush1.msra.mxu0 0.0
    %898 = vmatprep.subr.mxu0 0.0
    %899 = vmatpush1.msra.mxu0 0.0
    %900 = vmatprep.subr.mxu0 0.0
    %901 = vmatpush1.msra.mxu0 0.0
    %902 = vmatprep.subr.mxu0 0.0
    %903 = vmatpush1.msra.mxu0 0.0
    %904 = vmatprep.subr.mxu0 0.0
    %905 = vmatpush1.msra.mxu0 0.0
    %906 = vmatprep.subr.mxu0 0.0
    %907 = vmatpush1.msra.mxu0 0.0
    %908 = vmatprep.subr.mxu0 0.0
    %909 = vmatpush1.msra.mxu0 0.0
    %910 = vmatprep.subr.mxu0 0.0
    %911 = vmatpush1.msra.mxu0 0.0
    %912 = vmatprep.subr.mxu0 0.0
    %913 = vmatpush1.msra.mxu0 0.0
    %914 = vmatprep.subr.mxu0 0.0
    %915 = vmatpush1.msra.mxu0 0.0
    %916 = vmatprep.subr.mxu0 0.0
    %917 = vmatpush1.msra.mxu0 0.0
    %918 = vmatprep.mubr.f32.mxu0 0.0
    %v919 = vand.u32 %v46, 4294901760
    %920 = vmatmul.mubr.f32.gmra.mrb[0].mxu0 %v919
    %v921 = vpop.f32.mrb[0].mxu0
    %v922 = vadd.f32 %v754, %v921
    %v923 = vpop.f32.mrb[0].mxu0
    %v924 = vadd.f32 %v756, %v923
    %925 = vdwg.mxu0
    %v926 = vand.u32 %v48, 4294901760
    %927 = vmatprep.subr.mxu0 %v926
    %v928 = vand.u32 %v47, 4294901760
    %929 = vmatpush1.msra.mxu0 %v928
    %v930 = vand.u32 %v56, 4294901760
    %931 = vmatprep.subr.mxu0 %v930
    %v932 = vand.u32 %v55, 4294901760
    %933 = vmatpush1.msra.mxu0 %v932
    %v934 = vand.u32 %v64, 4294901760
    %935 = vmatprep.subr.mxu0 %v934
    %v936 = vand.u32 %v63, 4294901760
    %937 = vmatpush1.msra.mxu0 %v936
    %v938 = vand.u32 %v72, 4294901760
    %939 = vmatprep.subr.mxu0 %v938
    %v940 = vand.u32 %v71, 4294901760
    %941 = vmatpush1.msra.mxu0 %v940
    %v942 = vand.u32 %v80, 4294901760
    %943 = vmatprep.subr.mxu0 %v942
    %v944 = vand.u32 %v79, 4294901760
    %945 = vmatpush1.msra.mxu0 %v944
    %v946 = vand.u32 %v88, 4294901760
    %947 = vmatprep.subr.mxu0 %v946
    %v948 = vand.u32 %v87, 4294901760
    %949 = vmatpush1.msra.mxu0 %v948
    %v950 = vand.u32 %v96, 4294901760
    %951 = vmatprep.subr.mxu0 %v950
    %v952 = vand.u32 %v95, 4294901760
    %953 = vmatpush1.msra.mxu0 %v952
    %v954 = vand.u32 %v104, 4294901760
    %955 = vmatprep.subr.mxu0 %v954
    %v956 = vand.u32 %v103, 4294901760
    %957 = vmatpush1.msra.mxu0 %v956
    %v958 = vand.u32 %v112, 4294901760
    %959 = vmatprep.subr.mxu0 %v958
    %v960 = vand.u32 %v111, 4294901760
    %961 = vmatpush1.msra.mxu0 %v960
    %v962 = vand.u32 %v120, 4294901760
    %963 = vmatprep.subr.mxu0 %v962
    %v964 = vand.u32 %v119, 4294901760
    %965 = vmatpush1.msra.mxu0 %v964
    %v966 = vand.u32 %v128, 4294901760
    %967 = vmatprep.subr.mxu0 %v966
    %v968 = vand.u32 %v127, 4294901760
    %969 = vmatpush1.msra.mxu0 %v968
    %v970 = vand.u32 %v136, 4294901760
    %971 = vmatprep.subr.mxu0 %v970
    %v972 = vand.u32 %v135, 4294901760
    %973 = vmatpush1.msra.mxu0 %v972
    %v974 = vand.u32 %v144, 4294901760
    %975 = vmatprep.subr.mxu0 %v974
    %v976 = vand.u32 %v143, 4294901760
    %977 = vmatpush1.msra.mxu0 %v976
    %v978 = vand.u32 %v152, 4294901760
    %979 = vmatprep.subr.mxu0 %v978
    %v980 = vand.u32 %v151, 4294901760
    %981 = vmatpush1.msra.mxu0 %v980
    %v982 = vand.u32 %v160, 4294901760
    %983 = vmatprep.subr.mxu0 %v982
    %v984 = vand.u32 %v159, 4294901760
    %985 = vmatpush1.msra.mxu0 %v984
    %v986 = vand.u32 %v168, 4294901760
    %987 = vmatprep.subr.mxu0 %v986
    %v988 = vand.u32 %v167, 4294901760
    %989 = vmatpush1.msra.mxu0 %v988
    %990 = vmatprep.subr.mxu0 0.0
    %991 = vmatpush1.msra.mxu0 0.0
    %992 = vmatprep.subr.mxu0 0.0
    %993 = vmatpush1.msra.mxu0 0.0
    %994 = vmatprep.subr.mxu0 0.0
    %995 = vmatpush1.msra.mxu0 0.0
    %996 = vmatprep.subr.mxu0 0.0
    %997 = vmatpush1.msra.mxu0 0.0
    %998 = vmatprep.subr.mxu0 0.0
    %999 = vmatpush1.msra.mxu0 0.0
    %1000 = vmatprep.subr.mxu0 0.0
    %1001 = vmatpush1.msra.mxu0 0.0
    %1002 = vmatprep.subr.mxu0 0.0
    %1003 = vmatpush1.msra.mxu0 0.0
    %1004 = vmatprep.subr.mxu0 0.0
    %1005 = vmatpush1.msra.mxu0 0.0
    %1006 = vmatprep.subr.mxu0 0.0
    %1007 = vmatpush1.msra.mxu0 0.0
    %1008 = vmatprep.subr.mxu0 0.0
    %1009 = vmatpush1.msra.mxu0 0.0
    %1010 = vmatprep.subr.mxu0 0.0
    %1011 = vmatpush1.msra.mxu0 0.0
    %1012 = vmatprep.subr.mxu0 0.0
    %1013 = vmatpush1.msra.mxu0 0.0
    %1014 = vmatprep.subr.mxu0 0.0
    %1015 = vmatpush1.msra.mxu0 0.0
    %1016 = vmatprep.subr.mxu0 0.0
    %1017 = vmatpush1.msra.mxu0 0.0
    %1018 = vmatprep.subr.mxu0 0.0
    %1019 = vmatpush1.msra.mxu0 0.0
    %1020 = vmatprep.subr.mxu0 0.0
    %1021 = vmatpush1.msra.mxu0 0.0
    %1022 = vmatprep.mubr.f32.mxu0 0.0
    %v1023 = vand.u32 %v46, 4294901760
    %1024 = vmatmul.mubr.f32.gmra.mrb[0].mxu0 %v1023
    %v1025 = vpop.f32.mrb[0].mxu0
    %v1026 = vadd.f32 %v922, %v1025
    %v1027 = vpop.f32.mrb[0].mxu0
    %v1028 = vadd.f32 %v924, %v1027
    %1029 = vdwg.mxu0
    %v1030 = vand.u32 %v50, 4294901760
    %1031 = vmatprep.subr.mxu0 %v1030
    %v1032 = vand.u32 %v49, 4294901760
    %1033 = vmatpush1.msra.mxu0 %v1032
    %v1034 = vand.u32 %v58, 4294901760
    %1035 = vmatprep.subr.mxu0 %v1034
    %v1036 = vand.u32 %v57, 4294901760
    %1037 = vmatpush1.msra.mxu0 %v1036
    %v1038 = vand.u32 %v66, 4294901760
    %1039 = vmatprep.subr.mxu0 %v1038
    %v1040 = vand.u32 %v65, 4294901760
    %1041 = vmatpush1.msra.mxu0 %v1040
    %v1042 = vand.u32 %v74, 4294901760
    %1043 = vmatprep.subr.mxu0 %v1042
    %v1044 = vand.u32 %v73, 4294901760
    %1045 = vmatpush1.msra.mxu0 %v1044
    %v1046 = vand.u32 %v82, 4294901760
    %1047 = vmatprep.subr.mxu0 %v1046
    %v1048 = vand.u32 %v81, 4294901760
    %1049 = vmatpush1.msra.mxu0 %v1048
    %v1050 = vand.u32 %v90, 4294901760
    %1051 = vmatprep.subr.mxu0 %v1050
    %v1052 = vand.u32 %v89, 4294901760
    %1053 = vmatpush1.msra.mxu0 %v1052
    %v1054 = vand.u32 %v98, 4294901760
    %1055 = vmatprep.subr.mxu0 %v1054
    %v1056 = vand.u32 %v97, 4294901760
    %1057 = vmatpush1.msra.mxu0 %v1056
    %v1058 = vand.u32 %v106, 4294901760
    %1059 = vmatprep.subr.mxu0 %v1058
    %v1060 = vand.u32 %v105, 4294901760
    %1061 = vmatpush1.msra.mxu0 %v1060
    %v1062 = vand.u32 %v114, 4294901760
    %1063 = vmatprep.subr.mxu0 %v1062
    %v1064 = vand.u32 %v113, 4294901760
    %1065 = vmatpush1.msra.mxu0 %v1064
    %v1066 = vand.u32 %v122, 4294901760
    %1067 = vmatprep.subr.mxu0 %v1066
    %v1068 = vand.u32 %v121, 4294901760
    %1069 = vmatpush1.msra.mxu0 %v1068
    %v1070 = vand.u32 %v130, 4294901760
    %1071 = vmatprep.subr.mxu0 %v1070
    %v1072 = vand.u32 %v129, 4294901760
    %1073 = vmatpush1.msra.mxu0 %v1072
    %v1074 = vand.u32 %v138, 4294901760
    %1075 = vmatprep.subr.mxu0 %v1074
    %v1076 = vand.u32 %v137, 4294901760
    %1077 = vmatpush1.msra.mxu0 %v1076
    %v1078 = vand.u32 %v146, 4294901760
    %1079 = vmatprep.subr.mxu0 %v1078
    %v1080 = vand.u32 %v145, 4294901760
    %1081 = vmatpush1.msra.mxu0 %v1080
    %v1082 = vand.u32 %v154, 4294901760
    %1083 = vmatprep.subr.mxu0 %v1082
    %v1084 = vand.u32 %v153, 4294901760
    %1085 = vmatpush1.msra.mxu0 %v1084
    %v1086 = vand.u32 %v162, 4294901760
    %1087 = vmatprep.subr.mxu0 %v1086
    %v1088 = vand.u32 %v161, 4294901760
    %1089 = vmatpush1.msra.mxu0 %v1088
    %v1090 = vand.u32 %v170, 4294901760
    %1091 = vmatprep.subr.mxu0 %v1090
    %v1092 = vand.u32 %v169, 4294901760
    %1093 = vmatpush1.msra.mxu0 %v1092
    %1094 = vmatprep.subr.mxu0 0.0
    %1095 = vmatpush1.msra.mxu0 0.0
    %1096 = vmatprep.subr.mxu0 0.0
    %1097 = vmatpush1.msra.mxu0 0.0
    %1098 = vmatprep.subr.mxu0 0.0
    %1099 = vmatpush1.msra.mxu0 0.0
    %1100 = vmatprep.subr.mxu0 0.0
    %1101 = vmatpush1.msra.mxu0 0.0
    %1102 = vmatprep.subr.mxu0 0.0
    %1103 = vmatpush1.msra.mxu0 0.0
    %1104 = vmatprep.subr.mxu0 0.0
    %1105 = vmatpush1.msra.mxu0 0.0
    %1106 = vmatprep.subr.mxu0 0.0
    %1107 = vmatpush1.msra.mxu0 0.0
    %1108 = vmatprep.subr.mxu0 0.0
    %1109 = vmatpush1.msra.mxu0 0.0
    %1110 = vmatprep.subr.mxu0 0.0
    %1111 = vmatpush1.msra.mxu0 0.0
    %1112 = vmatprep.subr.mxu0 0.0
    %1113 = vmatpush1.msra.mxu0 0.0
    %1114 = vmatprep.subr.mxu0 0.0
    %1115 = vmatpush1.msra.mxu0 0.0
    %1116 = vmatprep.subr.mxu0 0.0
    %1117 = vmatpush1.msra.mxu0 0.0
    %1118 = vmatprep.subr.mxu0 0.0
    %1119 = vmatpush1.msra.mxu0 0.0
    %1120 = vmatprep.subr.mxu0 0.0
    %1121 = vmatpush1.msra.mxu0 0.0
    %1122 = vmatprep.subr.mxu0 0.0
    %1123 = vmatpush1.msra.mxu0 0.0
    %1124 = vmatprep.subr.mxu0 0.0
    %1125 = vmatpush1.msra.mxu0 0.0
    %1126 = vmatprep.mubr.f32.mxu0 0.0
    %v1127 = vand.u32 %v46, 4294901760
    %v1128 = vsub.f32 %v46, %v1127
    %v1129 = vand.u32 %v1128, 4294901760
    %v1130 = vsub.f32 %v1128, %v1129
    %v1131 = vand.u32 %v1130, 4294901760
    %1132 = vmatmul.mubr.f32.gmra.mrb[0].mxu0 %v1131
    %v1133 = vpop.f32.mrb[0].mxu0
    %v1134 = vadd.f32 0.0, %v1133
    %v1135 = vpop.f32.mrb[0].mxu0
    %v1136 = vadd.f32 0.0, %v1135
    %1137 = vdwg.mxu0
    %v1138 = vand.u32 %v50, 4294901760
    %v1139 = vsub.f32 %v50, %v1138
    %v1140 = vand.u32 %v1139, 4294901760
    %v1141 = vsub.f32 %v1139, %v1140
    %v1142 = vand.u32 %v1141, 4294901760
    %1143 = vmatprep.subr.mxu0 %v1142
    %v1144 = vand.u32 %v49, 4294901760
    %v1145 = vsub.f32 %v49, %v1144
    %v1146 = vand.u32 %v1145, 4294901760
    %v1147 = vsub.f32 %v1145, %v1146
    %v1148 = vand.u32 %v1147, 4294901760
    %1149 = vmatpush1.msra.mxu0 %v1148
    %v1150 = vand.u32 %v58, 4294901760
    %v1151 = vsub.f32 %v58, %v1150
    %v1152 = vand.u32 %v1151, 4294901760
    %v1153 = vsub.f32 %v1151, %v1152
    %v1154 = vand.u32 %v1153, 4294901760
    %1155 = vmatprep.subr.mxu0 %v1154
    %v1156 = vand.u32 %v57, 4294901760
    %v1157 = vsub.f32 %v57, %v1156
    %v1158 = vand.u32 %v1157, 4294901760
    %v1159 = vsub.f32 %v1157, %v1158
    %v1160 = vand.u32 %v1159, 4294901760
    %1161 = vmatpush1.msra.mxu0 %v1160
    %v1162 = vand.u32 %v66, 4294901760
    %v1163 = vsub.f32 %v66, %v1162
    %v1164 = vand.u32 %v1163, 4294901760
    %v1165 = vsub.f32 %v1163, %v1164
    %v1166 = vand.u32 %v1165, 4294901760
    %1167 = vmatprep.subr.mxu0 %v1166
    %v1168 = vand.u32 %v65, 4294901760
    %v1169 = vsub.f32 %v65, %v1168
    %v1170 = vand.u32 %v1169, 4294901760
    %v1171 = vsub.f32 %v1169, %v1170
    %v1172 = vand.u32 %v1171, 4294901760
    %1173 = vmatpush1.msra.mxu0 %v1172
    %v1174 = vand.u32 %v74, 4294901760
    %v1175 = vsub.f32 %v74, %v1174
    %v1176 = vand.u32 %v1175, 4294901760
    %v1177 = vsub.f32 %v1175, %v1176
    %v1178 = vand.u32 %v1177, 4294901760
    %1179 = vmatprep.subr.mxu0 %v1178
    %v1180 = vand.u32 %v73, 4294901760
    %v1181 = vsub.f32 %v73, %v1180
    %v1182 = vand.u32 %v1181, 4294901760
    %v1183 = vsub.f32 %v1181, %v1182
    %v1184 = vand.u32 %v1183, 4294901760
    %1185 = vmatpush1.msra.mxu0 %v1184
    %v1186 = vand.u32 %v82, 4294901760
    %v1187 = vsub.f32 %v82, %v1186
    %v1188 = vand.u32 %v1187, 4294901760
    %v1189 = vsub.f32 %v1187, %v1188
    %v1190 = vand.u32 %v1189, 4294901760
    %1191 = vmatprep.subr.mxu0 %v1190
    %v1192 = vand.u32 %v81, 4294901760
    %v1193 = vsub.f32 %v81, %v1192
    %v1194 = vand.u32 %v1193, 4294901760
    %v1195 = vsub.f32 %v1193, %v1194
    %v1196 = vand.u32 %v1195, 4294901760
    %1197 = vmatpush1.msra.mxu0 %v1196
    %v1198 = vand.u32 %v90, 4294901760
    %v1199 = vsub.f32 %v90, %v1198
    %v1200 = vand.u32 %v1199, 4294901760
    %v1201 = vsub.f32 %v1199, %v1200
    %v1202 = vand.u32 %v1201, 4294901760
    %1203 = vmatprep.subr.mxu0 %v1202
    %v1204 = vand.u32 %v89, 4294901760
    %v1205 = vsub.f32 %v89, %v1204
    %v1206 = vand.u32 %v1205, 4294901760
    %v1207 = vsub.f32 %v1205, %v1206
    %v1208 = vand.u32 %v1207, 4294901760
    %1209 = vmatpush1.msra.mxu0 %v1208
    %v1210 = vand.u32 %v98, 4294901760
    %v1211 = vsub.f32 %v98, %v1210
    %v1212 = vand.u32 %v1211, 4294901760
    %v1213 = vsub.f32 %v1211, %v1212
    %v1214 = vand.u32 %v1213, 4294901760
    %1215 = vmatprep.subr.mxu0 %v1214
    %v1216 = vand.u32 %v97, 4294901760
    %v1217 = vsub.f32 %v97, %v1216
    %v1218 = vand.u32 %v1217, 4294901760
    %v1219 = vsub.f32 %v1217, %v1218
    %v1220 = vand.u32 %v1219, 4294901760
    %1221 = vmatpush1.msra.mxu0 %v1220
    %v1222 = vand.u32 %v106, 4294901760
    %v1223 = vsub.f32 %v106, %v1222
    %v1224 = vand.u32 %v1223, 4294901760
    %v1225 = vsub.f32 %v1223, %v1224
    %v1226 = vand.u32 %v1225, 4294901760
    %1227 = vmatprep.subr.mxu0 %v1226
    %v1228 = vand.u32 %v105, 4294901760
    %v1229 = vsub.f32 %v105, %v1228
    %v1230 = vand.u32 %v1229, 4294901760
    %v1231 = vsub.f32 %v1229, %v1230
    %v1232 = vand.u32 %v1231, 4294901760
    %1233 = vmatpush1.msra.mxu0 %v1232
    %v1234 = vand.u32 %v114, 4294901760
    %v1235 = vsub.f32 %v114, %v1234
    %v1236 = vand.u32 %v1235, 4294901760
    %v1237 = vsub.f32 %v1235, %v1236
    %v1238 = vand.u32 %v1237, 4294901760
    %1239 = vmatprep.subr.mxu0 %v1238
    %v1240 = vand.u32 %v113, 4294901760
    %v1241 = vsub.f32 %v113, %v1240
    %v1242 = vand.u32 %v1241, 4294901760
    %v1243 = vsub.f32 %v1241, %v1242
    %v1244 = vand.u32 %v1243, 4294901760
    %1245 = vmatpush1.msra.mxu0 %v1244
    %v1246 = vand.u32 %v122, 4294901760
    %v1247 = vsub.f32 %v122, %v1246
    %v1248 = vand.u32 %v1247, 4294901760
    %v1249 = vsub.f32 %v1247, %v1248
    %v1250 = vand.u32 %v1249, 4294901760
    %1251 = vmatprep.subr.mxu0 %v1250
    %v1252 = vand.u32 %v121, 4294901760
    %v1253 = vsub.f32 %v121, %v1252
    %v1254 = vand.u32 %v1253, 4294901760
    %v1255 = vsub.f32 %v1253, %v1254
    %v1256 = vand.u32 %v1255, 4294901760
    %1257 = vmatpush1.msra.mxu0 %v1256
    %v1258 = vand.u32 %v130, 4294901760
    %v1259 = vsub.f32 %v130, %v1258
    %v1260 = vand.u32 %v1259, 4294901760
    %v1261 = vsub.f32 %v1259, %v1260
    %v1262 = vand.u32 %v1261, 4294901760
    %1263 = vmatprep.subr.mxu0 %v1262
    %v1264 = vand.u32 %v129, 4294901760
    %v1265 = vsub.f32 %v129, %v1264
    %v1266 = vand.u32 %v1265, 4294901760
    %v1267 = vsub.f32 %v1265, %v1266
    %v1268 = vand.u32 %v1267, 4294901760
    %1269 = vmatpush1.msra.mxu0 %v1268
    %v1270 = vand.u32 %v138, 4294901760
    %v1271 = vsub.f32 %v138, %v1270
    %v1272 = vand.u32 %v1271, 4294901760
    %v1273 = vsub.f32 %v1271, %v1272
    %v1274 = vand.u32 %v1273, 4294901760
    %1275 = vmatprep.subr.mxu0 %v1274
    %v1276 = vand.u32 %v137, 4294901760
    %v1277 = vsub.f32 %v137, %v1276
    %v1278 = vand.u32 %v1277, 4294901760
    %v1279 = vsub.f32 %v1277, %v1278
    %v1280 = vand.u32 %v1279, 4294901760
    %1281 = vmatpush1.msra.mxu0 %v1280
    %v1282 = vand.u32 %v146, 4294901760
    %v1283 = vsub.f32 %v146, %v1282
    %v1284 = vand.u32 %v1283, 4294901760
    %v1285 = vsub.f32 %v1283, %v1284
    %v1286 = vand.u32 %v1285, 4294901760
    %1287 = vmatprep.subr.mxu0 %v1286
    %v1288 = vand.u32 %v145, 4294901760
    %v1289 = vsub.f32 %v145, %v1288
    %v1290 = vand.u32 %v1289, 4294901760
    %v1291 = vsub.f32 %v1289, %v1290
    %v1292 = vand.u32 %v1291, 4294901760
    %1293 = vmatpush1.msra.mxu0 %v1292
    %v1294 = vand.u32 %v154, 4294901760
    %v1295 = vsub.f32 %v154, %v1294
    %v1296 = vand.u32 %v1295, 4294901760
    %v1297 = vsub.f32 %v1295, %v1296
    %v1298 = vand.u32 %v1297, 4294901760
    %1299 = vmatprep.subr.mxu0 %v1298
    %v1300 = vand.u32 %v153, 4294901760
    %v1301 = vsub.f32 %v153, %v1300
    %v1302 = vand.u32 %v1301, 4294901760
    %v1303 = vsub.f32 %v1301, %v1302
    %v1304 = vand.u32 %v1303, 4294901760
    %1305 = vmatpush1.msra.mxu0 %v1304
    %v1306 = vand.u32 %v162, 4294901760
    %v1307 = vsub.f32 %v162, %v1306
    %v1308 = vand.u32 %v1307, 4294901760
    %v1309 = vsub.f32 %v1307, %v1308
    %v1310 = vand.u32 %v1309, 4294901760
    %1311 = vmatprep.subr.mxu0 %v1310
    %v1312 = vand.u32 %v161, 4294901760
    %v1313 = vsub.f32 %v161, %v1312
    %v1314 = vand.u32 %v1313, 4294901760
    %v1315 = vsub.f32 %v1313, %v1314
    %v1316 = vand.u32 %v1315, 4294901760
    %1317 = vmatpush1.msra.mxu0 %v1316
    %v1318 = vand.u32 %v170, 4294901760
    %v1319 = vsub.f32 %v170, %v1318
    %v1320 = vand.u32 %v1319, 4294901760
    %v1321 = vsub.f32 %v1319, %v1320
    %v1322 = vand.u32 %v1321, 4294901760
    %1323 = vmatprep.subr.mxu0 %v1322
    %v1324 = vand.u32 %v169, 4294901760
    %v1325 = vsub.f32 %v169, %v1324
    %v1326 = vand.u32 %v1325, 4294901760
    %v1327 = vsub.f32 %v1325, %v1326
    %v1328 = vand.u32 %v1327, 4294901760
    %1329 = vmatpush1.msra.mxu0 %v1328
    %1330 = vmatprep.subr.mxu0 0.0
    %1331 = vmatpush1.msra.mxu0 0.0
    %1332 = vmatprep.subr.mxu0 0.0
    %1333 = vmatpush1.msra.mxu0 0.0
    %1334 = vmatprep.subr.mxu0 0.0
    %1335 = vmatpush1.msra.mxu0 0.0
    %1336 = vmatprep.subr.mxu0 0.0
    %1337 = vmatpush1.msra.mxu0 0.0
    %1338 = vmatprep.subr.mxu0 0.0
    %1339 = vmatpush1.msra.mxu0 0.0
    %1340 = vmatprep.subr.mxu0 0.0
    %1341 = vmatpush1.msra.mxu0 0.0
    %1342 = vmatprep.subr.mxu0 0.0
    %1343 = vmatpush1.msra.mxu0 0.0
    %1344 = vmatprep.subr.mxu0 0.0
    %1345 = vmatpush1.msra.mxu0 0.0
    %1346 = vmatprep.subr.mxu0 0.0
    %1347 = vmatpush1.msra.mxu0 0.0
    %1348 = vmatprep.subr.mxu0 0.0
    %1349 = vmatpush1.msra.mxu0 0.0
    %1350 = vmatprep.subr.mxu0 0.0
    %1351 = vmatpush1.msra.mxu0 0.0
    %1352 = vmatprep.subr.mxu0 0.0
    %1353 = vmatpush1.msra.mxu0 0.0
    %1354 = vmatprep.subr.mxu0 0.0
    %1355 = vmatpush1.msra.mxu0 0.0
    %1356 = vmatprep.subr.mxu0 0.0
    %1357 = vmatpush1.msra.mxu0 0.0
    %1358 = vmatprep.subr.mxu0 0.0
    %1359 = vmatpush1.msra.mxu0 0.0
    %1360 = vmatprep.subr.mxu0 0.0
    %1361 = vmatpush1.msra.mxu0 0.0
    %1362 = vmatprep.mubr.f32.mxu0 0.0
    %v1363 = vand.u32 %v46, 4294901760
    %1364 = vmatmul.mubr.f32.gmra.mrb[0].mxu0 %v1363
    %v1365 = vpop.f32.mrb[0].mxu0
    %v1366 = vadd.f32 %v1134, %v1365
    %v1367 = vpop.f32.mrb[0].mxu0
    %v1368 = vadd.f32 %v1136, %v1367
    %1369 = vdwg.mxu0
    %v1370 = vand.u32 %v50, 4294901760
    %v1371 = vsub.f32 %v50, %v1370
    %1372 = vmatprep.subr.mxu0 %v1371
    %v1373 = vand.u32 %v49, 4294901760
    %v1374 = vsub.f32 %v49, %v1373
    %1375 = vmatpush1.msra.mxu0 %v1374
    %v1376 = vand.u32 %v58, 4294901760
    %v1377 = vsub.f32 %v58, %v1376
    %1378 = vmatprep.subr.mxu0 %v1377
    %v1379 = vand.u32 %v57, 4294901760
    %v1380 = vsub.f32 %v57, %v1379
    %1381 = vmatpush1.msra.mxu0 %v1380
    %v1382 = vand.u32 %v66, 4294901760
    %v1383 = vsub.f32 %v66, %v1382
    %1384 = vmatprep.subr.mxu0 %v1383
    %v1385 = vand.u32 %v65, 4294901760
    %v1386 = vsub.f32 %v65, %v1385
    %1387 = vmatpush1.msra.mxu0 %v1386
    %v1388 = vand.u32 %v74, 4294901760
    %v1389 = vsub.f32 %v74, %v1388
    %1390 = vmatprep.subr.mxu0 %v1389
    %v1391 = vand.u32 %v73, 4294901760
    %v1392 = vsub.f32 %v73, %v1391
    %1393 = vmatpush1.msra.mxu0 %v1392
    %v1394 = vand.u32 %v82, 4294901760
    %v1395 = vsub.f32 %v82, %v1394
    %1396 = vmatprep.subr.mxu0 %v1395
    %v1397 = vand.u32 %v81, 4294901760
    %v1398 = vsub.f32 %v81, %v1397
    %1399 = vmatpush1.msra.mxu0 %v1398
    %v1400 = vand.u32 %v90, 4294901760
    %v1401 = vsub.f32 %v90, %v1400
    %1402 = vmatprep.subr.mxu0 %v1401
    %v1403 = vand.u32 %v89, 4294901760
    %v1404 = vsub.f32 %v89, %v1403
    %1405 = vmatpush1.msra.mxu0 %v1404
    %v1406 = vand.u32 %v98, 4294901760
    %v1407 = vsub.f32 %v98, %v1406
    %1408 = vmatprep.subr.mxu0 %v1407
    %v1409 = vand.u32 %v97, 4294901760
    %v1410 = vsub.f32 %v97, %v1409
    %1411 = vmatpush1.msra.mxu0 %v1410
    %v1412 = vand.u32 %v106, 4294901760
    %v1413 = vsub.f32 %v106, %v1412
    %1414 = vmatprep.subr.mxu0 %v1413
    %v1415 = vand.u32 %v105, 4294901760
    %v1416 = vsub.f32 %v105, %v1415
    %1417 = vmatpush1.msra.mxu0 %v1416
    %v1418 = vand.u32 %v114, 4294901760
    %v1419 = vsub.f32 %v114, %v1418
    %1420 = vmatprep.subr.mxu0 %v1419
    %v1421 = vand.u32 %v113, 4294901760
    %v1422 = vsub.f32 %v113, %v1421
    %1423 = vmatpush1.msra.mxu0 %v1422
    %v1424 = vand.u32 %v122, 4294901760
    %v1425 = vsub.f32 %v122, %v1424
    %1426 = vmatprep.subr.mxu0 %v1425
    %v1427 = vand.u32 %v121, 4294901760
    %v1428 = vsub.f32 %v121, %v1427
    %1429 = vmatpush1.msra.mxu0 %v1428
    %v1430 = vand.u32 %v130, 4294901760
    %v1431 = vsub.f32 %v130, %v1430
    %1432 = vmatprep.subr.mxu0 %v1431
    %v1433 = vand.u32 %v129, 4294901760
    %v1434 = vsub.f32 %v129, %v1433
    %1435 = vmatpush1.msra.mxu0 %v1434
    %v1436 = vand.u32 %v138, 4294901760
    %v1437 = vsub.f32 %v138, %v1436
    %1438 = vmatprep.subr.mxu0 %v1437
    %v1439 = vand.u32 %v137, 4294901760
    %v1440 = vsub.f32 %v137, %v1439
    %1441 = vmatpush1.msra.mxu0 %v1440
    %v1442 = vand.u32 %v146, 4294901760
    %v1443 = vsub.f32 %v146, %v1442
    %1444 = vmatprep.subr.mxu0 %v1443
    %v1445 = vand.u32 %v145, 4294901760
    %v1446 = vsub.f32 %v145, %v1445
    %1447 = vmatpush1.msra.mxu0 %v1446
    %v1448 = vand.u32 %v154, 4294901760
    %v1449 = vsub.f32 %v154, %v1448
    %1450 = vmatprep.subr.mxu0 %v1449
    %v1451 = vand.u32 %v153, 4294901760
    %v1452 = vsub.f32 %v153, %v1451
    %1453 = vmatpush1.msra.mxu0 %v1452
    %v1454 = vand.u32 %v162, 4294901760
    %v1455 = vsub.f32 %v162, %v1454
    %1456 = vmatprep.subr.mxu0 %v1455
    %v1457 = vand.u32 %v161, 4294901760
    %v1458 = vsub.f32 %v161, %v1457
    %1459 = vmatpush1.msra.mxu0 %v1458
    %v1460 = vand.u32 %v170, 4294901760
    %v1461 = vsub.f32 %v170, %v1460
    %1462 = vmatprep.subr.mxu0 %v1461
    %v1463 = vand.u32 %v169, 4294901760
    %v1464 = vsub.f32 %v169, %v1463
    %1465 = vmatpush1.msra.mxu0 %v1464
    %1466 = vmatprep.subr.mxu0 0.0
    %1467 = vmatpush1.msra.mxu0 0.0
    %1468 = vmatprep.subr.mxu0 0.0
    %1469 = vmatpush1.msra.mxu0 0.0
    %1470 = vmatprep.subr.mxu0 0.0
    %1471 = vmatpush1.msra.mxu0 0.0
    %1472 = vmatprep.subr.mxu0 0.0
    %1473 = vmatpush1.msra.mxu0 0.0
    %1474 = vmatprep.subr.mxu0 0.0
    %1475 = vmatpush1.msra.mxu0 0.0
    %1476 = vmatprep.subr.mxu0 0.0
    %1477 = vmatpush1.msra.mxu0 0.0
    %1478 = vmatprep.subr.mxu0 0.0
    %1479 = vmatpush1.msra.mxu0 0.0
    %1480 = vmatprep.subr.mxu0 0.0
    %1481 = vmatpush1.msra.mxu0 0.0
    %1482 = vmatprep.subr.mxu0 0.0
    %1483 = vmatpush1.msra.mxu0 0.0
    %1484 = vmatprep.subr.mxu0 0.0
    %1485 = vmatpush1.msra.mxu0 0.0
    %1486 = vmatprep.subr.mxu0 0.0
    %1487 = vmatpush1.msra.mxu0 0.0
    %1488 = vmatprep.subr.mxu0 0.0
    %1489 = vmatpush1.msra.mxu0 0.0
    %1490 = vmatprep.subr.mxu0 0.0
    %1491 = vmatpush1.msra.mxu0 0.0
    %1492 = vmatprep.subr.mxu0 0.0
    %1493 = vmatpush1.msra.mxu0 0.0
    %1494 = vmatprep.subr.mxu0 0.0
    %1495 = vmatpush1.msra.mxu0 0.0
    %1496 = vmatprep.subr.mxu0 0.0
    %1497 = vmatpush1.msra.mxu0 0.0
    %1498 = vmatprep.mubr.f32.mxu0 0.0
    %v1499 = vand.u32 %v46, 4294901760
    %v1500 = vsub.f32 %v46, %v1499
    %1501 = vmatmul.mubr.f32.gmra.mrb[0].mxu0 %v1500
    %v1502 = vpop.f32.mrb[0].mxu0
    %v1503 = vadd.f32 %v1366, %v1502
    %v1504 = vpop.f32.mrb[0].mxu0
    %v1505 = vadd.f32 %v1368, %v1504
    %1506 = vdwg.mxu0
    %v1507 = vand.u32 %v50, 4294901760
    %1508 = vmatprep.subr.mxu0 %v1507
    %v1509 = vand.u32 %v49, 4294901760
    %1510 = vmatpush1.msra.mxu0 %v1509
    %v1511 = vand.u32 %v58, 4294901760
    %1512 = vmatprep.subr.mxu0 %v1511
    %v1513 = vand.u32 %v57, 4294901760
    %1514 = vmatpush1.msra.mxu0 %v1513
    %v1515 = vand.u32 %v66, 4294901760
    %1516 = vmatprep.subr.mxu0 %v1515
    %v1517 = vand.u32 %v65, 4294901760
    %1518 = vmatpush1.msra.mxu0 %v1517
    %v1519 = vand.u32 %v74, 4294901760
    %1520 = vmatprep.subr.mxu0 %v1519
    %v1521 = vand.u32 %v73, 4294901760
    %1522 = vmatpush1.msra.mxu0 %v1521
    %v1523 = vand.u32 %v82, 4294901760
    %1524 = vmatprep.subr.mxu0 %v1523
    %v1525 = vand.u32 %v81, 4294901760
    %1526 = vmatpush1.msra.mxu0 %v1525
    %v1527 = vand.u32 %v90, 4294901760
    %1528 = vmatprep.subr.mxu0 %v1527
    %v1529 = vand.u32 %v89, 4294901760
    %1530 = vmatpush1.msra.mxu0 %v1529
    %v1531 = vand.u32 %v98, 4294901760
    %1532 = vmatprep.subr.mxu0 %v1531
    %v1533 = vand.u32 %v97, 4294901760
    %1534 = vmatpush1.msra.mxu0 %v1533
    %v1535 = vand.u32 %v106, 4294901760
    %1536 = vmatprep.subr.mxu0 %v1535
    %v1537 = vand.u32 %v105, 4294901760
    %1538 = vmatpush1.msra.mxu0 %v1537
    %v1539 = vand.u32 %v114, 4294901760
    %1540 = vmatprep.subr.mxu0 %v1539
    %v1541 = vand.u32 %v113, 4294901760
    %1542 = vmatpush1.msra.mxu0 %v1541
    %v1543 = vand.u32 %v122, 4294901760
    %1544 = vmatprep.subr.mxu0 %v1543
    %v1545 = vand.u32 %v121, 4294901760
    %1546 = vmatpush1.msra.mxu0 %v1545
    %v1547 = vand.u32 %v130, 4294901760
    %1548 = vmatprep.subr.mxu0 %v1547
    %v1549 = vand.u32 %v129, 4294901760
    %1550 = vmatpush1.msra.mxu0 %v1549
    %v1551 = vand.u32 %v138, 4294901760
    %1552 = vmatprep.subr.mxu0 %v1551
    %v1553 = vand.u32 %v137, 4294901760
    %1554 = vmatpush1.msra.mxu0 %v1553
    %v1555 = vand.u32 %v146, 4294901760
    %1556 = vmatprep.subr.mxu0 %v1555
    %v1557 = vand.u32 %v145, 4294901760
    %1558 = vmatpush1.msra.mxu0 %v1557
    %v1559 = vand.u32 %v154, 4294901760
    %1560 = vmatprep.subr.mxu0 %v1559
    %v1561 = vand.u32 %v153, 4294901760
    %1562 = vmatpush1.msra.mxu0 %v1561
    %v1563 = vand.u32 %v162, 4294901760
    %1564 = vmatprep.subr.mxu0 %v1563
    %v1565 = vand.u32 %v161, 4294901760
    %1566 = vmatpush1.msra.mxu0 %v1565
    %v1567 = vand.u32 %v170, 4294901760
    %1568 = vmatprep.subr.mxu0 %v1567
    %v1569 = vand.u32 %v169, 4294901760
    %1570 = vmatpush1.msra.mxu0 %v1569
    %1571 = vmatprep.subr.mxu0 0.0
    %1572 = vmatpush1.msra.mxu0 0.0
    %1573 = vmatprep.subr.mxu0 0.0
    %1574 = vmatpush1.msra.mxu0 0.0
    %1575 = vmatprep.subr.mxu0 0.0
    %1576 = vmatpush1.msra.mxu0 0.0
    %1577 = vmatprep.subr.mxu0 0.0
    %1578 = vmatpush1.msra.mxu0 0.0
    %1579 = vmatprep.subr.mxu0 0.0
    %1580 = vmatpush1.msra.mxu0 0.0
    %1581 = vmatprep.subr.mxu0 0.0
    %1582 = vmatpush1.msra.mxu0 0.0
    %1583 = vmatprep.subr.mxu0 0.0
    %1584 = vmatpush1.msra.mxu0 0.0
    %1585 = vmatprep.subr.mxu0 0.0
    %1586 = vmatpush1.msra.mxu0 0.0
    %1587 = vmatprep.subr.mxu0 0.0
    %1588 = vmatpush1.msra.mxu0 0.0
    %1589 = vmatprep.subr.mxu0 0.0
    %1590 = vmatpush1.msra.mxu0 0.0
    %1591 = vmatprep.subr.mxu0 0.0
    %1592 = vmatpush1.msra.mxu0 0.0
    %1593 = vmatprep.subr.mxu0 0.0
    %1594 = vmatpush1.msra.mxu0 0.0
    %1595 = vmatprep.subr.mxu0 0.0
    %1596 = vmatpush1.msra.mxu0 0.0
    %1597 = vmatprep.subr.mxu0 0.0
    %1598 = vmatpush1.msra.mxu0 0.0
    %1599 = vmatprep.subr.mxu0 0.0
    %1600 = vmatpush1.msra.mxu0 0.0
    %1601 = vmatprep.subr.mxu0 0.0
    %1602 = vmatpush1.msra.mxu0 0.0
    %1603 = vmatprep.mubr.f32.mxu0 0.0
    %v1604 = vand.u32 %v46, 4294901760
    %v1605 = vsub.f32 %v46, %v1604
    %v1606 = vand.u32 %v1605, 4294901760
    %1607 = vmatmul.mubr.f32.gmra.mrb[0].mxu0 %v1606
    %v1608 = vpop.f32.mrb[0].mxu0
    %v1609 = vadd.f32 %v1503, %v1608
    %v1610 = vpop.f32.mrb[0].mxu0
    %v1611 = vadd.f32 %v1505, %v1610
    %1612 = vdwg.mxu0
    %v1613 = vand.u32 %v50, 4294901760
    %v1614 = vsub.f32 %v50, %v1613
    %v1615 = vand.u32 %v1614, 4294901760
    %1616 = vmatprep.subr.mxu0 %v1615
    %v1617 = vand.u32 %v49, 4294901760
    %v1618 = vsub.f32 %v49, %v1617
    %v1619 = vand.u32 %v1618, 4294901760
    %1620 = vmatpush1.msra.mxu0 %v1619
    %v1621 = vand.u32 %v58, 4294901760
    %v1622 = vsub.f32 %v58, %v1621
    %v1623 = vand.u32 %v1622, 4294901760
    %1624 = vmatprep.subr.mxu0 %v1623
    %v1625 = vand.u32 %v57, 4294901760
    %v1626 = vsub.f32 %v57, %v1625
    %v1627 = vand.u32 %v1626, 4294901760
    %1628 = vmatpush1.msra.mxu0 %v1627
    %v1629 = vand.u32 %v66, 4294901760
    %v1630 = vsub.f32 %v66, %v1629
    %v1631 = vand.u32 %v1630, 4294901760
    %1632 = vmatprep.subr.mxu0 %v1631
    %v1633 = vand.u32 %v65, 4294901760
    %v1634 = vsub.f32 %v65, %v1633
    %v1635 = vand.u32 %v1634, 4294901760
    %1636 = vmatpush1.msra.mxu0 %v1635
    %v1637 = vand.u32 %v74, 4294901760
    %v1638 = vsub.f32 %v74, %v1637
    %v1639 = vand.u32 %v1638, 4294901760
    %1640 = vmatprep.subr.mxu0 %v1639
    %v1641 = vand.u32 %v73, 4294901760
    %v1642 = vsub.f32 %v73, %v1641
    %v1643 = vand.u32 %v1642, 4294901760
    %1644 = vmatpush1.msra.mxu0 %v1643
    %v1645 = vand.u32 %v82, 4294901760
    %v1646 = vsub.f32 %v82, %v1645
    %v1647 = vand.u32 %v1646, 4294901760
    %1648 = vmatprep.subr.mxu0 %v1647
    %v1649 = vand.u32 %v81, 4294901760
    %v1650 = vsub.f32 %v81, %v1649
    %v1651 = vand.u32 %v1650, 4294901760
    %1652 = vmatpush1.msra.mxu0 %v1651
    %v1653 = vand.u32 %v90, 4294901760
    %v1654 = vsub.f32 %v90, %v1653
    %v1655 = vand.u32 %v1654, 4294901760
    %1656 = vmatprep.subr.mxu0 %v1655
    %v1657 = vand.u32 %v89, 4294901760
    %v1658 = vsub.f32 %v89, %v1657
    %v1659 = vand.u32 %v1658, 4294901760
    %1660 = vmatpush1.msra.mxu0 %v1659
    %v1661 = vand.u32 %v98, 4294901760
    %v1662 = vsub.f32 %v98, %v1661
    %v1663 = vand.u32 %v1662, 4294901760
    %1664 = vmatprep.subr.mxu0 %v1663
    %v1665 = vand.u32 %v97, 4294901760
    %v1666 = vsub.f32 %v97, %v1665
    %v1667 = vand.u32 %v1666, 4294901760
    %1668 = vmatpush1.msra.mxu0 %v1667
    %v1669 = vand.u32 %v106, 4294901760
    %v1670 = vsub.f32 %v106, %v1669
    %v1671 = vand.u32 %v1670, 4294901760
    %1672 = vmatprep.subr.mxu0 %v1671
    %v1673 = vand.u32 %v105, 4294901760
    %v1674 = vsub.f32 %v105, %v1673
    %v1675 = vand.u32 %v1674, 4294901760
    %1676 = vmatpush1.msra.mxu0 %v1675
    %v1677 = vand.u32 %v114, 4294901760
    %v1678 = vsub.f32 %v114, %v1677
    %v1679 = vand.u32 %v1678, 4294901760
    %1680 = vmatprep.subr.mxu0 %v1679
    %v1681 = vand.u32 %v113, 4294901760
    %v1682 = vsub.f32 %v113, %v1681
    %v1683 = vand.u32 %v1682, 4294901760
    %1684 = vmatpush1.msra.mxu0 %v1683
    %v1685 = vand.u32 %v122, 4294901760
    %v1686 = vsub.f32 %v122, %v1685
    %v1687 = vand.u32 %v1686, 4294901760
    %1688 = vmatprep.subr.mxu0 %v1687
    %v1689 = vand.u32 %v121, 4294901760
    %v1690 = vsub.f32 %v121, %v1689
    %v1691 = vand.u32 %v1690, 4294901760
    %1692 = vmatpush1.msra.mxu0 %v1691
    %v1693 = vand.u32 %v130, 4294901760
    %v1694 = vsub.f32 %v130, %v1693
    %v1695 = vand.u32 %v1694, 4294901760
    %1696 = vmatprep.subr.mxu0 %v1695
    %v1697 = vand.u32 %v129, 4294901760
    %v1698 = vsub.f32 %v129, %v1697
    %v1699 = vand.u32 %v1698, 4294901760
    %1700 = vmatpush1.msra.mxu0 %v1699
    %v1701 = vand.u32 %v138, 4294901760
    %v1702 = vsub.f32 %v138, %v1701
    %v1703 = vand.u32 %v1702, 4294901760
    %1704 = vmatprep.subr.mxu0 %v1703
    %v1705 = vand.u32 %v137, 4294901760
    %v1706 = vsub.f32 %v137, %v1705
    %v1707 = vand.u32 %v1706, 4294901760
    %1708 = vmatpush1.msra.mxu0 %v1707
    %v1709 = vand.u32 %v146, 4294901760
    %v1710 = vsub.f32 %v146, %v1709
    %v1711 = vand.u32 %v1710, 4294901760
    %1712 = vmatprep.subr.mxu0 %v1711
    %v1713 = vand.u32 %v145, 4294901760
    %v1714 = vsub.f32 %v145, %v1713
    %v1715 = vand.u32 %v1714, 4294901760
    %1716 = vmatpush1.msra.mxu0 %v1715
    %v1717 = vand.u32 %v154, 4294901760
    %v1718 = vsub.f32 %v154, %v1717
    %v1719 = vand.u32 %v1718, 4294901760
    %1720 = vmatprep.subr.mxu0 %v1719
    %v1721 = vand.u32 %v153, 4294901760
    %v1722 = vsub.f32 %v153, %v1721
    %v1723 = vand.u32 %v1722, 4294901760
    %1724 = vmatpush1.msra.mxu0 %v1723
    %v1725 = vand.u32 %v162, 4294901760
    %v1726 = vsub.f32 %v162, %v1725
    %v1727 = vand.u32 %v1726, 4294901760
    %1728 = vmatprep.subr.mxu0 %v1727
    %v1729 = vand.u32 %v161, 4294901760
    %v1730 = vsub.f32 %v161, %v1729
    %v1731 = vand.u32 %v1730, 4294901760
    %1732 = vmatpush1.msra.mxu0 %v1731
    %v1733 = vand.u32 %v170, 4294901760
    %v1734 = vsub.f32 %v170, %v1733
    %v1735 = vand.u32 %v1734, 4294901760
    %1736 = vmatprep.subr.mxu0 %v1735
    %v1737 = vand.u32 %v169, 4294901760
    %v1738 = vsub.f32 %v169, %v1737
    %v1739 = vand.u32 %v1738, 4294901760
    %1740 = vmatpush1.msra.mxu0 %v1739
    %1741 = vmatprep.subr.mxu0 0.0
    %1742 = vmatpush1.msra.mxu0 0.0
    %1743 = vmatprep.subr.mxu0 0.0
    %1744 = vmatpush1.msra.mxu0 0.0
    %1745 = vmatprep.subr.mxu0 0.0
    %1746 = vmatpush1.msra.mxu0 0.0
    %1747 = vmatprep.subr.mxu0 0.0
    %1748 = vmatpush1.msra.mxu0 0.0
    %1749 = vmatprep.subr.mxu0 0.0
    %1750 = vmatpush1.msra.mxu0 0.0
    %1751 = vmatprep.subr.mxu0 0.0
    %1752 = vmatpush1.msra.mxu0 0.0
    %1753 = vmatprep.subr.mxu0 0.0
    %1754 = vmatpush1.msra.mxu0 0.0
    %1755 = vmatprep.subr.mxu0 0.0
    %1756 = vmatpush1.msra.mxu0 0.0
    %1757 = vmatprep.subr.mxu0 0.0
    %1758 = vmatpush1.msra.mxu0 0.0
    %1759 = vmatprep.subr.mxu0 0.0
    %1760 = vmatpush1.msra.mxu0 0.0
    %1761 = vmatprep.subr.mxu0 0.0
    %1762 = vmatpush1.msra.mxu0 0.0
    %1763 = vmatprep.subr.mxu0 0.0
    %1764 = vmatpush1.msra.mxu0 0.0
    %1765 = vmatprep.subr.mxu0 0.0
    %1766 = vmatpush1.msra.mxu0 0.0
    %1767 = vmatprep.subr.mxu0 0.0
    %1768 = vmatpush1.msra.mxu0 0.0
    %1769 = vmatprep.subr.mxu0 0.0
    %1770 = vmatpush1.msra.mxu0 0.0
    %1771 = vmatprep.subr.mxu0 0.0
    %1772 = vmatpush1.msra.mxu0 0.0
    %1773 = vmatprep.mubr.f32.mxu0 0.0
    %v1774 = vand.u32 %v46, 4294901760
    %1775 = vmatmul.mubr.f32.gmra.mrb[0].mxu0 %v1774
    %v1776 = vpop.f32.mrb[0].mxu0
    %v1777 = vadd.f32 %v1609, %v1776
    %v1778 = vpop.f32.mrb[0].mxu0
    %v1779 = vadd.f32 %v1611, %v1778
    %1780 = vdwg.mxu0
    %v1781 = vand.u32 %v50, 4294901760
    %1782 = vmatprep.subr.mxu0 %v1781
    %v1783 = vand.u32 %v49, 4294901760
    %1784 = vmatpush1.msra.mxu0 %v1783
    %v1785 = vand.u32 %v58, 4294901760
    %1786 = vmatprep.subr.mxu0 %v1785
    %v1787 = vand.u32 %v57, 4294901760
    %1788 = vmatpush1.msra.mxu0 %v1787
    %v1789 = vand.u32 %v66, 4294901760
    %1790 = vmatprep.subr.mxu0 %v1789
    %v1791 = vand.u32 %v65, 4294901760
    %1792 = vmatpush1.msra.mxu0 %v1791
    %v1793 = vand.u32 %v74, 4294901760
    %1794 = vmatprep.subr.mxu0 %v1793
    %v1795 = vand.u32 %v73, 4294901760
    %1796 = vmatpush1.msra.mxu0 %v1795
    %v1797 = vand.u32 %v82, 4294901760
    %1798 = vmatprep.subr.mxu0 %v1797
    %v1799 = vand.u32 %v81, 4294901760
    %1800 = vmatpush1.msra.mxu0 %v1799
    %v1801 = vand.u32 %v90, 4294901760
    %1802 = vmatprep.subr.mxu0 %v1801
    %v1803 = vand.u32 %v89, 4294901760
    %1804 = vmatpush1.msra.mxu0 %v1803
    %v1805 = vand.u32 %v98, 4294901760
    %1806 = vmatprep.subr.mxu0 %v1805
    %v1807 = vand.u32 %v97, 4294901760
    %1808 = vmatpush1.msra.mxu0 %v1807
    %v1809 = vand.u32 %v106, 4294901760
    %1810 = vmatprep.subr.mxu0 %v1809
    %v1811 = vand.u32 %v105, 4294901760
    %1812 = vmatpush1.msra.mxu0 %v1811
    %v1813 = vand.u32 %v114, 4294901760
    %1814 = vmatprep.subr.mxu0 %v1813
    %v1815 = vand.u32 %v113, 4294901760
    %1816 = vmatpush1.msra.mxu0 %v1815
    %v1817 = vand.u32 %v122, 4294901760
    %1818 = vmatprep.subr.mxu0 %v1817
    %v1819 = vand.u32 %v121, 4294901760
    %1820 = vmatpush1.msra.mxu0 %v1819
    %v1821 = vand.u32 %v130, 4294901760
    %1822 = vmatprep.subr.mxu0 %v1821
    %v1823 = vand.u32 %v129, 4294901760
    %1824 = vmatpush1.msra.mxu0 %v1823
    %v1825 = vand.u32 %v138, 4294901760
    %1826 = vmatprep.subr.mxu0 %v1825
    %v1827 = vand.u32 %v137, 4294901760
    %1828 = vmatpush1.msra.mxu0 %v1827
    %v1829 = vand.u32 %v146, 4294901760
    %1830 = vmatprep.subr.mxu0 %v1829
    %v1831 = vand.u32 %v145, 4294901760
    %1832 = vmatpush1.msra.mxu0 %v1831
    %v1833 = vand.u32 %v154, 4294901760
    %1834 = vmatprep.subr.mxu0 %v1833
    %v1835 = vand.u32 %v153, 4294901760
    %1836 = vmatpush1.msra.mxu0 %v1835
    %v1837 = vand.u32 %v162, 4294901760
    %1838 = vmatprep.subr.mxu0 %v1837
    %v1839 = vand.u32 %v161, 4294901760
    %1840 = vmatpush1.msra.mxu0 %v1839
    %v1841 = vand.u32 %v170, 4294901760
    %1842 = vmatprep.subr.mxu0 %v1841
    %v1843 = vand.u32 %v169, 4294901760
    %1844 = vmatpush1.msra.mxu0 %v1843
    %1845 = vmatprep.subr.mxu0 0.0
    %1846 = vmatpush1.msra.mxu0 0.0
    %1847 = vmatprep.subr.mxu0 0.0
    %1848 = vmatpush1.msra.mxu0 0.0
    %1849 = vmatprep.subr.mxu0 0.0
    %1850 = vmatpush1.msra.mxu0 0.0
    %1851 = vmatprep.subr.mxu0 0.0
    %1852 = vmatpush1.msra.mxu0 0.0
    %1853 = vmatprep.subr.mxu0 0.0
    %1854 = vmatpush1.msra.mxu0 0.0
    %1855 = vmatprep.subr.mxu0 0.0
    %1856 = vmatpush1.msra.mxu0 0.0
    %1857 = vmatprep.subr.mxu0 0.0
    %1858 = vmatpush1.msra.mxu0 0.0
    %1859 = vmatprep.subr.mxu0 0.0
    %1860 = vmatpush1.msra.mxu0 0.0
    %1861 = vmatprep.subr.mxu0 0.0
    %1862 = vmatpush1.msra.mxu0 0.0
    %1863 = vmatprep.subr.mxu0 0.0
    %1864 = vmatpush1.msra.mxu0 0.0
    %1865 = vmatprep.subr.mxu0 0.0
    %1866 = vmatpush1.msra.mxu0 0.0
    %1867 = vmatprep.subr.mxu0 0.0
    %1868 = vmatpush1.msra.mxu0 0.0
    %1869 = vmatprep.subr.mxu0 0.0
    %1870 = vmatpush1.msra.mxu0 0.0
    %1871 = vmatprep.subr.mxu0 0.0
    %1872 = vmatpush1.msra.mxu0 0.0
    %1873 = vmatprep.subr.mxu0 0.0
    %1874 = vmatpush1.msra.mxu0 0.0
    %1875 = vmatprep.subr.mxu0 0.0
    %1876 = vmatpush1.msra.mxu0 0.0
    %1877 = vmatprep.mubr.f32.mxu0 0.0
    %v1878 = vand.u32 %v46, 4294901760
    %1879 = vmatmul.mubr.f32.gmra.mrb[0].mxu0 %v1878
    %v1880 = vpop.f32.mrb[0].mxu0
    %v1881 = vadd.f32 %v1777, %v1880
    %v1882 = vpop.f32.mrb[0].mxu0
    %v1883 = vadd.f32 %v1779, %v1882
    %1884 = vdwg.mxu0
    %v1885 = vand.u32 %v52, 4294901760
    %1886 = vmatprep.subr.mxu0 %v1885
    %v1887 = vand.u32 %v51, 4294901760
    %1888 = vmatpush1.msra.mxu0 %v1887
    %v1889 = vand.u32 %v60, 4294901760
    %1890 = vmatprep.subr.mxu0 %v1889
    %v1891 = vand.u32 %v59, 4294901760
    %1892 = vmatpush1.msra.mxu0 %v1891
    %v1893 = vand.u32 %v68, 4294901760
    %1894 = vmatprep.subr.mxu0 %v1893
    %v1895 = vand.u32 %v67, 4294901760
    %1896 = vmatpush1.msra.mxu0 %v1895
    %v1897 = vand.u32 %v76, 4294901760
    %1898 = vmatprep.subr.mxu0 %v1897
    %v1899 = vand.u32 %v75, 4294901760
    %1900 = vmatpush1.msra.mxu0 %v1899
    %v1901 = vand.u32 %v84, 4294901760
    %1902 = vmatprep.subr.mxu0 %v1901
    %v1903 = vand.u32 %v83, 4294901760
    %1904 = vmatpush1.msra.mxu0 %v1903
    %v1905 = vand.u32 %v92, 4294901760
    %1906 = vmatprep.subr.mxu0 %v1905
    %v1907 = vand.u32 %v91, 4294901760
    %1908 = vmatpush1.msra.mxu0 %v1907
    %v1909 = vand.u32 %v100, 4294901760
    %1910 = vmatprep.subr.mxu0 %v1909
    %v1911 = vand.u32 %v99, 4294901760
    %1912 = vmatpush1.msra.mxu0 %v1911
    %v1913 = vand.u32 %v108, 4294901760
    %1914 = vmatprep.subr.mxu0 %v1913
    %v1915 = vand.u32 %v107, 4294901760
    %1916 = vmatpush1.msra.mxu0 %v1915
    %v1917 = vand.u32 %v116, 4294901760
    %1918 = vmatprep.subr.mxu0 %v1917
    %v1919 = vand.u32 %v115, 4294901760
    %1920 = vmatpush1.msra.mxu0 %v1919
    %v1921 = vand.u32 %v124, 4294901760
    %1922 = vmatprep.subr.mxu0 %v1921
    %v1923 = vand.u32 %v123, 4294901760
    %1924 = vmatpush1.msra.mxu0 %v1923
    %v1925 = vand.u32 %v132, 4294901760
    %1926 = vmatprep.subr.mxu0 %v1925
    %v1927 = vand.u32 %v131, 4294901760
    %1928 = vmatpush1.msra.mxu0 %v1927
    %v1929 = vand.u32 %v140, 4294901760
    %1930 = vmatprep.subr.mxu0 %v1929
    %v1931 = vand.u32 %v139, 4294901760
    %1932 = vmatpush1.msra.mxu0 %v1931
    %v1933 = vand.u32 %v148, 4294901760
    %1934 = vmatprep.subr.mxu0 %v1933
    %v1935 = vand.u32 %v147, 4294901760
    %1936 = vmatpush1.msra.mxu0 %v1935
    %v1937 = vand.u32 %v156, 4294901760
    %1938 = vmatprep.subr.mxu0 %v1937
    %v1939 = vand.u32 %v155, 4294901760
    %1940 = vmatpush1.msra.mxu0 %v1939
    %v1941 = vand.u32 %v164, 4294901760
    %1942 = vmatprep.subr.mxu0 %v1941
    %v1943 = vand.u32 %v163, 4294901760
    %1944 = vmatpush1.msra.mxu0 %v1943
    %v1945 = vand.u32 %v172, 4294901760
    %1946 = vmatprep.subr.mxu0 %v1945
    %v1947 = vand.u32 %v171, 4294901760
    %1948 = vmatpush1.msra.mxu0 %v1947
    %1949 = vmatprep.subr.mxu0 0.0
    %1950 = vmatpush1.msra.mxu0 0.0
    %1951 = vmatprep.subr.mxu0 0.0
    %1952 = vmatpush1.msra.mxu0 0.0
    %1953 = vmatprep.subr.mxu0 0.0
    %1954 = vmatpush1.msra.mxu0 0.0
    %1955 = vmatprep.subr.mxu0 0.0
    %1956 = vmatpush1.msra.mxu0 0.0
    %1957 = vmatprep.subr.mxu0 0.0
    %1958 = vmatpush1.msra.mxu0 0.0
    %1959 = vmatprep.subr.mxu0 0.0
    %1960 = vmatpush1.msra.mxu0 0.0
    %1961 = vmatprep.subr.mxu0 0.0
    %1962 = vmatpush1.msra.mxu0 0.0
    %1963 = vmatprep.subr.mxu0 0.0
    %1964 = vmatpush1.msra.mxu0 0.0
    %1965 = vmatprep.subr.mxu0 0.0
    %1966 = vmatpush1.msra.mxu0 0.0
    %1967 = vmatprep.subr.mxu0 0.0
    %1968 = vmatpush1.msra.mxu0 0.0
    %1969 = vmatprep.subr.mxu0 0.0
    %1970 = vmatpush1.msra.mxu0 0.0
    %1971 = vmatprep.subr.mxu0 0.0
    %1972 = vmatpush1.msra.mxu0 0.0
    %1973 = vmatprep.subr.mxu0 0.0
    %1974 = vmatpush1.msra.mxu0 0.0
    %1975 = vmatprep.subr.mxu0 0.0
    %1976 = vmatpush1.msra.mxu0 0.0
    %1977 = vmatprep.subr.mxu0 0.0
    %1978 = vmatpush1.msra.mxu0 0.0
    %1979 = vmatprep.subr.mxu0 0.0
    %1980 = vmatpush1.msra.mxu0 0.0
    %1981 = vmatprep.mubr.f32.mxu0 0.0
    %v1982 = vand.u32 %v46, 4294901760
    %v1983 = vsub.f32 %v46, %v1982
    %v1984 = vand.u32 %v1983, 4294901760
    %v1985 = vsub.f32 %v1983, %v1984
    %v1986 = vand.u32 %v1985, 4294901760
    %1987 = vmatmul.mubr.f32.gmra.mrb[0].mxu0 %v1986
    %v1988 = vpop.f32.mrb[0].mxu0
    %v1989 = vadd.f32 0.0, %v1988
    %v1990 = vpop.f32.mrb[0].mxu0
    %v1991 = vadd.f32 0.0, %v1990
    %1992 = vdwg.mxu0
    %v1993 = vand.u32 %v52, 4294901760
    %v1994 = vsub.f32 %v52, %v1993
    %v1995 = vand.u32 %v1994, 4294901760
    %v1996 = vsub.f32 %v1994, %v1995
    %v1997 = vand.u32 %v1996, 4294901760
    %1998 = vmatprep.subr.mxu0 %v1997
    %v1999 = vand.u32 %v51, 4294901760
    %v2000 = vsub.f32 %v51, %v1999
    %v2001 = vand.u32 %v2000, 4294901760
    %v2002 = vsub.f32 %v2000, %v2001
    %v2003 = vand.u32 %v2002, 4294901760
    %2004 = vmatpush1.msra.mxu0 %v2003
    %v2005 = vand.u32 %v60, 4294901760
    %v2006 = vsub.f32 %v60, %v2005
    %v2007 = vand.u32 %v2006, 4294901760
    %v2008 = vsub.f32 %v2006, %v2007
    %v2009 = vand.u32 %v2008, 4294901760
    %2010 = vmatprep.subr.mxu0 %v2009
    %v2011 = vand.u32 %v59, 4294901760
    %v2012 = vsub.f32 %v59, %v2011
    %v2013 = vand.u32 %v2012, 4294901760
    %v2014 = vsub.f32 %v2012, %v2013
    %v2015 = vand.u32 %v2014, 4294901760
    %2016 = vmatpush1.msra.mxu0 %v2015
    %v2017 = vand.u32 %v68, 4294901760
    %v2018 = vsub.f32 %v68, %v2017
    %v2019 = vand.u32 %v2018, 4294901760
    %v2020 = vsub.f32 %v2018, %v2019
    %v2021 = vand.u32 %v2020, 4294901760
    %2022 = vmatprep.subr.mxu0 %v2021
    %v2023 = vand.u32 %v67, 4294901760
    %v2024 = vsub.f32 %v67, %v2023
    %v2025 = vand.u32 %v2024, 4294901760
    %v2026 = vsub.f32 %v2024, %v2025
    %v2027 = vand.u32 %v2026, 4294901760
    %2028 = vmatpush1.msra.mxu0 %v2027
    %v2029 = vand.u32 %v76, 4294901760
    %v2030 = vsub.f32 %v76, %v2029
    %v2031 = vand.u32 %v2030, 4294901760
    %v2032 = vsub.f32 %v2030, %v2031
    %v2033 = vand.u32 %v2032, 4294901760
    %2034 = vmatprep.subr.mxu0 %v2033
    %v2035 = vand.u32 %v75, 4294901760
    %v2036 = vsub.f32 %v75, %v2035
    %v2037 = vand.u32 %v2036, 4294901760
    %v2038 = vsub.f32 %v2036, %v2037
    %v2039 = vand.u32 %v2038, 4294901760
    %2040 = vmatpush1.msra.mxu0 %v2039
    %v2041 = vand.u32 %v84, 4294901760
    %v2042 = vsub.f32 %v84, %v2041
    %v2043 = vand.u32 %v2042, 4294901760
    %v2044 = vsub.f32 %v2042, %v2043
    %v2045 = vand.u32 %v2044, 4294901760
    %2046 = vmatprep.subr.mxu0 %v2045
    %v2047 = vand.u32 %v83, 4294901760
    %v2048 = vsub.f32 %v83, %v2047
    %v2049 = vand.u32 %v2048, 4294901760
    %v2050 = vsub.f32 %v2048, %v2049
    %v2051 = vand.u32 %v2050, 4294901760
    %2052 = vmatpush1.msra.mxu0 %v2051
    %v2053 = vand.u32 %v92, 4294901760
    %v2054 = vsub.f32 %v92, %v2053
    %v2055 = vand.u32 %v2054, 4294901760
    %v2056 = vsub.f32 %v2054, %v2055
    %v2057 = vand.u32 %v2056, 4294901760
    %2058 = vmatprep.subr.mxu0 %v2057
    %v2059 = vand.u32 %v91, 4294901760
    %v2060 = vsub.f32 %v91, %v2059
    %v2061 = vand.u32 %v2060, 4294901760
    %v2062 = vsub.f32 %v2060, %v2061
    %v2063 = vand.u32 %v2062, 4294901760
    %2064 = vmatpush1.msra.mxu0 %v2063
    %v2065 = vand.u32 %v100, 4294901760
    %v2066 = vsub.f32 %v100, %v2065
    %v2067 = vand.u32 %v2066, 4294901760
    %v2068 = vsub.f32 %v2066, %v2067
    %v2069 = vand.u32 %v2068, 4294901760
    %2070 = vmatprep.subr.mxu0 %v2069
    %v2071 = vand.u32 %v99, 4294901760
    %v2072 = vsub.f32 %v99, %v2071
    %v2073 = vand.u32 %v2072, 4294901760
    %v2074 = vsub.f32 %v2072, %v2073
    %v2075 = vand.u32 %v2074, 4294901760
    %2076 = vmatpush1.msra.mxu0 %v2075
    %v2077 = vand.u32 %v108, 4294901760
    %v2078 = vsub.f32 %v108, %v2077
    %v2079 = vand.u32 %v2078, 4294901760
    %v2080 = vsub.f32 %v2078, %v2079
    %v2081 = vand.u32 %v2080, 4294901760
    %2082 = vmatprep.subr.mxu0 %v2081
    %v2083 = vand.u32 %v107, 4294901760
    %v2084 = vsub.f32 %v107, %v2083
    %v2085 = vand.u32 %v2084, 4294901760
    %v2086 = vsub.f32 %v2084, %v2085
    %v2087 = vand.u32 %v2086, 4294901760
    %2088 = vmatpush1.msra.mxu0 %v2087
    %v2089 = vand.u32 %v116, 4294901760
    %v2090 = vsub.f32 %v116, %v2089
    %v2091 = vand.u32 %v2090, 4294901760
    %v2092 = vsub.f32 %v2090, %v2091
    %v2093 = vand.u32 %v2092, 4294901760
    %2094 = vmatprep.subr.mxu0 %v2093
    %v2095 = vand.u32 %v115, 4294901760
    %v2096 = vsub.f32 %v115, %v2095
    %v2097 = vand.u32 %v2096, 4294901760
    %v2098 = vsub.f32 %v2096, %v2097
    %v2099 = vand.u32 %v2098, 4294901760
    %2100 = vmatpush1.msra.mxu0 %v2099
    %v2101 = vand.u32 %v124, 4294901760
    %v2102 = vsub.f32 %v124, %v2101
    %v2103 = vand.u32 %v2102, 4294901760
    %v2104 = vsub.f32 %v2102, %v2103
    %v2105 = vand.u32 %v2104, 4294901760
    %2106 = vmatprep.subr.mxu0 %v2105
    %v2107 = vand.u32 %v123, 4294901760
    %v2108 = vsub.f32 %v123, %v2107
    %v2109 = vand.u32 %v2108, 4294901760
    %v2110 = vsub.f32 %v2108, %v2109
    %v2111 = vand.u32 %v2110, 4294901760
    %2112 = vmatpush1.msra.mxu0 %v2111
    %v2113 = vand.u32 %v132, 4294901760
    %v2114 = vsub.f32 %v132, %v2113
    %v2115 = vand.u32 %v2114, 4294901760
    %v2116 = vsub.f32 %v2114, %v2115
    %v2117 = vand.u32 %v2116, 4294901760
    %2118 = vmatprep.subr.mxu0 %v2117
    %v2119 = vand.u32 %v131, 4294901760
    %v2120 = vsub.f32 %v131, %v2119
    %v2121 = vand.u32 %v2120, 4294901760
    %v2122 = vsub.f32 %v2120, %v2121
    %v2123 = vand.u32 %v2122, 4294901760
    %2124 = vmatpush1.msra.mxu0 %v2123
    %v2125 = vand.u32 %v140, 4294901760
    %v2126 = vsub.f32 %v140, %v2125
    %v2127 = vand.u32 %v2126, 4294901760
    %v2128 = vsub.f32 %v2126, %v2127
    %v2129 = vand.u32 %v2128, 4294901760
    %2130 = vmatprep.subr.mxu0 %v2129
    %v2131 = vand.u32 %v139, 4294901760
    %v2132 = vsub.f32 %v139, %v2131
    %v2133 = vand.u32 %v2132, 4294901760
    %v2134 = vsub.f32 %v2132, %v2133
    %v2135 = vand.u32 %v2134, 4294901760
    %2136 = vmatpush1.msra.mxu0 %v2135
    %v2137 = vand.u32 %v148, 4294901760
    %v2138 = vsub.f32 %v148, %v2137
    %v2139 = vand.u32 %v2138, 4294901760
    %v2140 = vsub.f32 %v2138, %v2139
    %v2141 = vand.u32 %v2140, 4294901760
    %2142 = vmatprep.subr.mxu0 %v2141
    %v2143 = vand.u32 %v147, 4294901760
    %v2144 = vsub.f32 %v147, %v2143
    %v2145 = vand.u32 %v2144, 4294901760
    %v2146 = vsub.f32 %v2144, %v2145
    %v2147 = vand.u32 %v2146, 4294901760
    %2148 = vmatpush1.msra.mxu0 %v2147
    %v2149 = vand.u32 %v156, 4294901760
    %v2150 = vsub.f32 %v156, %v2149
    %v2151 = vand.u32 %v2150, 4294901760
    %v2152 = vsub.f32 %v2150, %v2151
    %v2153 = vand.u32 %v2152, 4294901760
    %2154 = vmatprep.subr.mxu0 %v2153
    %v2155 = vand.u32 %v155, 4294901760
    %v2156 = vsub.f32 %v155, %v2155
    %v2157 = vand.u32 %v2156, 4294901760
    %v2158 = vsub.f32 %v2156, %v2157
    %v2159 = vand.u32 %v2158, 4294901760
    %2160 = vmatpush1.msra.mxu0 %v2159
    %v2161 = vand.u32 %v164, 4294901760
    %v2162 = vsub.f32 %v164, %v2161
    %v2163 = vand.u32 %v2162, 4294901760
    %v2164 = vsub.f32 %v2162, %v2163
    %v2165 = vand.u32 %v2164, 4294901760
    %2166 = vmatprep.subr.mxu0 %v2165
    %v2167 = vand.u32 %v163, 4294901760
    %v2168 = vsub.f32 %v163, %v2167
    %v2169 = vand.u32 %v2168, 4294901760
    %v2170 = vsub.f32 %v2168, %v2169
    %v2171 = vand.u32 %v2170, 4294901760
    %2172 = vmatpush1.msra.mxu0 %v2171
    %v2173 = vand.u32 %v172, 4294901760
    %v2174 = vsub.f32 %v172, %v2173
    %v2175 = vand.u32 %v2174, 4294901760
    %v2176 = vsub.f32 %v2174, %v2175
    %v2177 = vand.u32 %v2176, 4294901760
    %2178 = vmatprep.subr.mxu0 %v2177
    %v2179 = vand.u32 %v171, 4294901760
    %v2180 = vsub.f32 %v171, %v2179
    %v2181 = vand.u32 %v2180, 4294901760
    %v2182 = vsub.f32 %v2180, %v2181
    %v2183 = vand.u32 %v2182, 4294901760
    %2184 = vmatpush1.msra.mxu0 %v2183
    %2185 = vmatprep.subr.mxu0 0.0
    %2186 = vmatpush1.msra.mxu0 0.0
    %2187 = vmatprep.subr.mxu0 0.0
    %2188 = vmatpush1.msra.mxu0 0.0
    %2189 = vmatprep.subr.mxu0 0.0
    %2190 = vmatpush1.msra.mxu0 0.0
    %2191 = vmatprep.subr.mxu0 0.0
    %2192 = vmatpush1.msra.mxu0 0.0
    %2193 = vmatprep.subr.mxu0 0.0
    %2194 = vmatpush1.msra.mxu0 0.0
    %2195 = vmatprep.subr.mxu0 0.0
    %2196 = vmatpush1.msra.mxu0 0.0
    %2197 = vmatprep.subr.mxu0 0.0
    %2198 = vmatpush1.msra.mxu0 0.0
    %2199 = vmatprep.subr.mxu0 0.0
    %2200 = vmatpush1.msra.mxu0 0.0
    %2201 = vmatprep.subr.mxu0 0.0
    %2202 = vmatpush1.msra.mxu0 0.0
    %2203 = vmatprep.subr.mxu0 0.0
    %2204 = vmatpush1.msra.mxu0 0.0
    %2205 = vmatprep.subr.mxu0 0.0
    %2206 = vmatpush1.msra.mxu0 0.0
    %2207 = vmatprep.subr.mxu0 0.0
    %2208 = vmatpush1.msra.mxu0 0.0
    %2209 = vmatprep.subr.mxu0 0.0
    %2210 = vmatpush1.msra.mxu0 0.0
    %2211 = vmatprep.subr.mxu0 0.0
    %2212 = vmatpush1.msra.mxu0 0.0
    %2213 = vmatprep.subr.mxu0 0.0
    %2214 = vmatpush1.msra.mxu0 0.0
    %2215 = vmatprep.subr.mxu0 0.0
    %2216 = vmatpush1.msra.mxu0 0.0
    %2217 = vmatprep.mubr.f32.mxu0 0.0
    %v2218 = vand.u32 %v46, 4294901760
    %2219 = vmatmul.mubr.f32.gmra.mrb[0].mxu0 %v2218
    %v2220 = vpop.f32.mrb[0].mxu0
    %v2221 = vadd.f32 %v1989, %v2220
    %v2222 = vpop.f32.mrb[0].mxu0
    %v2223 = vadd.f32 %v1991, %v2222
    %2224 = vdwg.mxu0
    %v2225 = vand.u32 %v52, 4294901760
    %v2226 = vsub.f32 %v52, %v2225
    %2227 = vmatprep.subr.mxu0 %v2226
    %v2228 = vand.u32 %v51, 4294901760
    %v2229 = vsub.f32 %v51, %v2228
    %2230 = vmatpush1.msra.mxu0 %v2229
    %v2231 = vand.u32 %v60, 4294901760
    %v2232 = vsub.f32 %v60, %v2231
    %2233 = vmatprep.subr.mxu0 %v2232
    %v2234 = vand.u32 %v59, 4294901760
    %v2235 = vsub.f32 %v59, %v2234
    %2236 = vmatpush1.msra.mxu0 %v2235
    %v2237 = vand.u32 %v68, 4294901760
    %v2238 = vsub.f32 %v68, %v2237
    %2239 = vmatprep.subr.mxu0 %v2238
    %v2240 = vand.u32 %v67, 4294901760
    %v2241 = vsub.f32 %v67, %v2240
    %2242 = vmatpush1.msra.mxu0 %v2241
    %v2243 = vand.u32 %v76, 4294901760
    %v2244 = vsub.f32 %v76, %v2243
    %2245 = vmatprep.subr.mxu0 %v2244
    %v2246 = vand.u32 %v75, 4294901760
    %v2247 = vsub.f32 %v75, %v2246
    %2248 = vmatpush1.msra.mxu0 %v2247
    %v2249 = vand.u32 %v84, 4294901760
    %v2250 = vsub.f32 %v84, %v2249
    %2251 = vmatprep.subr.mxu0 %v2250
    %v2252 = vand.u32 %v83, 4294901760
    %v2253 = vsub.f32 %v83, %v2252
    %2254 = vmatpush1.msra.mxu0 %v2253
    %v2255 = vand.u32 %v92, 4294901760
    %v2256 = vsub.f32 %v92, %v2255
    %2257 = vmatprep.subr.mxu0 %v2256
    %v2258 = vand.u32 %v91, 4294901760
    %v2259 = vsub.f32 %v91, %v2258
    %2260 = vmatpush1.msra.mxu0 %v2259
    %v2261 = vand.u32 %v100, 4294901760
    %v2262 = vsub.f32 %v100, %v2261
    %2263 = vmatprep.subr.mxu0 %v2262
    %v2264 = vand.u32 %v99, 4294901760
    %v2265 = vsub.f32 %v99, %v2264
    %2266 = vmatpush1.msra.mxu0 %v2265
    %v2267 = vand.u32 %v108, 4294901760
    %v2268 = vsub.f32 %v108, %v2267
    %2269 = vmatprep.subr.mxu0 %v2268
    %v2270 = vand.u32 %v107, 4294901760
    %v2271 = vsub.f32 %v107, %v2270
    %2272 = vmatpush1.msra.mxu0 %v2271
    %v2273 = vand.u32 %v116, 4294901760
    %v2274 = vsub.f32 %v116, %v2273
    %2275 = vmatprep.subr.mxu0 %v2274
    %v2276 = vand.u32 %v115, 4294901760
    %v2277 = vsub.f32 %v115, %v2276
    %2278 = vmatpush1.msra.mxu0 %v2277
    %v2279 = vand.u32 %v124, 4294901760
    %v2280 = vsub.f32 %v124, %v2279
    %2281 = vmatprep.subr.mxu0 %v2280
    %v2282 = vand.u32 %v123, 4294901760
    %v2283 = vsub.f32 %v123, %v2282
    %2284 = vmatpush1.msra.mxu0 %v2283
    %v2285 = vand.u32 %v132, 4294901760
    %v2286 = vsub.f32 %v132, %v2285
    %2287 = vmatprep.subr.mxu0 %v2286
    %v2288 = vand.u32 %v131, 4294901760
    %v2289 = vsub.f32 %v131, %v2288
    %2290 = vmatpush1.msra.mxu0 %v2289
    %v2291 = vand.u32 %v140, 4294901760
    %v2292 = vsub.f32 %v140, %v2291
    %2293 = vmatprep.subr.mxu0 %v2292
    %v2294 = vand.u32 %v139, 4294901760
    %v2295 = vsub.f32 %v139, %v2294
    %2296 = vmatpush1.msra.mxu0 %v2295
    %v2297 = vand.u32 %v148, 4294901760
    %v2298 = vsub.f32 %v148, %v2297
    %2299 = vmatprep.subr.mxu0 %v2298
    %v2300 = vand.u32 %v147, 4294901760
    %v2301 = vsub.f32 %v147, %v2300
    %2302 = vmatpush1.msra.mxu0 %v2301
    %v2303 = vand.u32 %v156, 4294901760
    %v2304 = vsub.f32 %v156, %v2303
    %2305 = vmatprep.subr.mxu0 %v2304
    %v2306 = vand.u32 %v155, 4294901760
    %v2307 = vsub.f32 %v155, %v2306
    %2308 = vmatpush1.msra.mxu0 %v2307
    %v2309 = vand.u32 %v164, 4294901760
    %v2310 = vsub.f32 %v164, %v2309
    %2311 = vmatprep.subr.mxu0 %v2310
    %v2312 = vand.u32 %v163, 4294901760
    %v2313 = vsub.f32 %v163, %v2312
    %2314 = vmatpush1.msra.mxu0 %v2313
    %v2315 = vand.u32 %v172, 4294901760
    %v2316 = vsub.f32 %v172, %v2315
    %2317 = vmatprep.subr.mxu0 %v2316
    %v2318 = vand.u32 %v171, 4294901760
    %v2319 = vsub.f32 %v171, %v2318
    %2320 = vmatpush1.msra.mxu0 %v2319
    %2321 = vmatprep.subr.mxu0 0.0
    %2322 = vmatpush1.msra.mxu0 0.0
    %2323 = vmatprep.subr.mxu0 0.0
    %2324 = vmatpush1.msra.mxu0 0.0
    %2325 = vmatprep.subr.mxu0 0.0
    %2326 = vmatpush1.msra.mxu0 0.0
    %2327 = vmatprep.subr.mxu0 0.0
    %2328 = vmatpush1.msra.mxu0 0.0
    %2329 = vmatprep.subr.mxu0 0.0
    %2330 = vmatpush1.msra.mxu0 0.0
    %2331 = vmatprep.subr.mxu0 0.0
    %2332 = vmatpush1.msra.mxu0 0.0
    %2333 = vmatprep.subr.mxu0 0.0
    %2334 = vmatpush1.msra.mxu0 0.0
    %2335 = vmatprep.subr.mxu0 0.0
    %2336 = vmatpush1.msra.mxu0 0.0
    %2337 = vmatprep.subr.mxu0 0.0
    %2338 = vmatpush1.msra.mxu0 0.0
    %2339 = vmatprep.subr.mxu0 0.0
    %2340 = vmatpush1.msra.mxu0 0.0
    %2341 = vmatprep.subr.mxu0 0.0
    %2342 = vmatpush1.msra.mxu0 0.0
    %2343 = vmatprep.subr.mxu0 0.0
    %2344 = vmatpush1.msra.mxu0 0.0
    %2345 = vmatprep.subr.mxu0 0.0
    %2346 = vmatpush1.msra.mxu0 0.0
    %2347 = vmatprep.subr.mxu0 0.0
    %2348 = vmatpush1.msra.mxu0 0.0
    %2349 = vmatprep.subr.mxu0 0.0
    %2350 = vmatpush1.msra.mxu0 0.0
    %2351 = vmatprep.subr.mxu0 0.0
    %2352 = vmatpush1.msra.mxu0 0.0
    %2353 = vmatprep.mubr.f32.mxu0 0.0
    %v2354 = vand.u32 %v46, 4294901760
    %v2355 = vsub.f32 %v46, %v2354
    %2356 = vmatmul.mubr.f32.gmra.mrb[0].mxu0 %v2355
    %v2357 = vpop.f32.mrb[0].mxu0
    %v2358 = vadd.f32 %v2221, %v2357
    %v2359 = vpop.f32.mrb[0].mxu0
    %v2360 = vadd.f32 %v2223, %v2359
    %2361 = vdwg.mxu0
    %v2362 = vand.u32 %v52, 4294901760
    %2363 = vmatprep.subr.mxu0 %v2362
    %v2364 = vand.u32 %v51, 4294901760
    %2365 = vmatpush1.msra.mxu0 %v2364
    %v2366 = vand.u32 %v60, 4294901760
    %2367 = vmatprep.subr.mxu0 %v2366
    %v2368 = vand.u32 %v59, 4294901760
    %2369 = vmatpush1.msra.mxu0 %v2368
    %v2370 = vand.u32 %v68, 4294901760
    %2371 = vmatprep.subr.mxu0 %v2370
    %v2372 = vand.u32 %v67, 4294901760
    %2373 = vmatpush1.msra.mxu0 %v2372
    %v2374 = vand.u32 %v76, 4294901760
    %2375 = vmatprep.subr.mxu0 %v2374
    %v2376 = vand.u32 %v75, 4294901760
    %2377 = vmatpush1.msra.mxu0 %v2376
    %v2378 = vand.u32 %v84, 4294901760
    %2379 = vmatprep.subr.mxu0 %v2378
    %v2380 = vand.u32 %v83, 4294901760
    %2381 = vmatpush1.msra.mxu0 %v2380
    %v2382 = vand.u32 %v92, 4294901760
    %2383 = vmatprep.subr.mxu0 %v2382
    %v2384 = vand.u32 %v91, 4294901760
    %2385 = vmatpush1.msra.mxu0 %v2384
    %v2386 = vand.u32 %v100, 4294901760
    %2387 = vmatprep.subr.mxu0 %v2386
    %v2388 = vand.u32 %v99, 4294901760
    %2389 = vmatpush1.msra.mxu0 %v2388
    %v2390 = vand.u32 %v108, 4294901760
    %2391 = vmatprep.subr.mxu0 %v2390
    %v2392 = vand.u32 %v107, 4294901760
    %2393 = vmatpush1.msra.mxu0 %v2392
    %v2394 = vand.u32 %v116, 4294901760
    %2395 = vmatprep.subr.mxu0 %v2394
    %v2396 = vand.u32 %v115, 4294901760
    %2397 = vmatpush1.msra.mxu0 %v2396
    %v2398 = vand.u32 %v124, 4294901760
    %2399 = vmatprep.subr.mxu0 %v2398
    %v2400 = vand.u32 %v123, 4294901760
    %2401 = vmatpush1.msra.mxu0 %v2400
    %v2402 = vand.u32 %v132, 4294901760
    %2403 = vmatprep.subr.mxu0 %v2402
    %v2404 = vand.u32 %v131, 4294901760
    %2405 = vmatpush1.msra.mxu0 %v2404
    %v2406 = vand.u32 %v140, 4294901760
    %2407 = vmatprep.subr.mxu0 %v2406
    %v2408 = vand.u32 %v139, 4294901760
    %2409 = vmatpush1.msra.mxu0 %v2408
    %v2410 = vand.u32 %v148, 4294901760
    %2411 = vmatprep.subr.mxu0 %v2410
    %v2412 = vand.u32 %v147, 4294901760
    %2413 = vmatpush1.msra.mxu0 %v2412
    %v2414 = vand.u32 %v156, 4294901760
    %2415 = vmatprep.subr.mxu0 %v2414
    %v2416 = vand.u32 %v155, 4294901760
    %2417 = vmatpush1.msra.mxu0 %v2416
    %v2418 = vand.u32 %v164, 4294901760
    %2419 = vmatprep.subr.mxu0 %v2418
    %v2420 = vand.u32 %v163, 4294901760
    %2421 = vmatpush1.msra.mxu0 %v2420
    %v2422 = vand.u32 %v172, 4294901760
    %2423 = vmatprep.subr.mxu0 %v2422
    %v2424 = vand.u32 %v171, 4294901760
    %2425 = vmatpush1.msra.mxu0 %v2424
    %2426 = vmatprep.subr.mxu0 0.0
    %2427 = vmatpush1.msra.mxu0 0.0
    %2428 = vmatprep.subr.mxu0 0.0
    %2429 = vmatpush1.msra.mxu0 0.0
    %2430 = vmatprep.subr.mxu0 0.0
    %2431 = vmatpush1.msra.mxu0 0.0
    %2432 = vmatprep.subr.mxu0 0.0
    %2433 = vmatpush1.msra.mxu0 0.0
    %2434 = vmatprep.subr.mxu0 0.0
    %2435 = vmatpush1.msra.mxu0 0.0
    %2436 = vmatprep.subr.mxu0 0.0
    %2437 = vmatpush1.msra.mxu0 0.0
    %2438 = vmatprep.subr.mxu0 0.0
    %2439 = vmatpush1.msra.mxu0 0.0
    %2440 = vmatprep.subr.mxu0 0.0
    %2441 = vmatpush1.msra.mxu0 0.0
    %2442 = vmatprep.subr.mxu0 0.0
    %2443 = vmatpush1.msra.mxu0 0.0
    %2444 = vmatprep.subr.mxu0 0.0
    %2445 = vmatpush1.msra.mxu0 0.0
    %2446 = vmatprep.subr.mxu0 0.0
    %2447 = vmatpush1.msra.mxu0 0.0
    %2448 = vmatprep.subr.mxu0 0.0
    %2449 = vmatpush1.msra.mxu0 0.0
    %2450 = vmatprep.subr.mxu0 0.0
    %2451 = vmatpush1.msra.mxu0 0.0
    %2452 = vmatprep.subr.mxu0 0.0
    %2453 = vmatpush1.msra.mxu0 0.0
    %2454 = vmatprep.subr.mxu0 0.0
    %2455 = vmatpush1.msra.mxu0 0.0
    %2456 = vmatprep.subr.mxu0 0.0
    %2457 = vmatpush1.msra.mxu0 0.0
    %2458 = vmatprep.mubr.f32.mxu0 0.0
    %v2459 = vand.u32 %v46, 4294901760
    %v2460 = vsub.f32 %v46, %v2459
    %v2461 = vand.u32 %v2460, 4294901760
    %2462 = vmatmul.mubr.f32.gmra.mrb[0].mxu0 %v2461
    %v2463 = vpop.f32.mrb[0].mxu0
    %v2464 = vadd.f32 %v2358, %v2463
    %v2465 = vpop.f32.mrb[0].mxu0
    %v2466 = vadd.f32 %v2360, %v2465
    %2467 = vdwg.mxu0
    %v2468 = vand.u32 %v52, 4294901760
    %v2469 = vsub.f32 %v52, %v2468
    %v2470 = vand.u32 %v2469, 4294901760
    %2471 = vmatprep.subr.mxu0 %v2470
    %v2472 = vand.u32 %v51, 4294901760
    %v2473 = vsub.f32 %v51, %v2472
    %v2474 = vand.u32 %v2473, 4294901760
    %2475 = vmatpush1.msra.mxu0 %v2474
    %v2476 = vand.u32 %v60, 4294901760
    %v2477 = vsub.f32 %v60, %v2476
    %v2478 = vand.u32 %v2477, 4294901760
    %2479 = vmatprep.subr.mxu0 %v2478
    %v2480 = vand.u32 %v59, 4294901760
    %v2481 = vsub.f32 %v59, %v2480
    %v2482 = vand.u32 %v2481, 4294901760
    %2483 = vmatpush1.msra.mxu0 %v2482
    %v2484 = vand.u32 %v68, 4294901760
    %v2485 = vsub.f32 %v68, %v2484
    %v2486 = vand.u32 %v2485, 4294901760
    %2487 = vmatprep.subr.mxu0 %v2486
    %v2488 = vand.u32 %v67, 4294901760
    %v2489 = vsub.f32 %v67, %v2488
    %v2490 = vand.u32 %v2489, 4294901760
    %2491 = vmatpush1.msra.mxu0 %v2490
    %v2492 = vand.u32 %v76, 4294901760
    %v2493 = vsub.f32 %v76, %v2492
    %v2494 = vand.u32 %v2493, 4294901760
    %2495 = vmatprep.subr.mxu0 %v2494
    %v2496 = vand.u32 %v75, 4294901760
    %v2497 = vsub.f32 %v75, %v2496
    %v2498 = vand.u32 %v2497, 4294901760
    %2499 = vmatpush1.msra.mxu0 %v2498
    %v2500 = vand.u32 %v84, 4294901760
    %v2501 = vsub.f32 %v84, %v2500
    %v2502 = vand.u32 %v2501, 4294901760
    %2503 = vmatprep.subr.mxu0 %v2502
    %v2504 = vand.u32 %v83, 4294901760
    %v2505 = vsub.f32 %v83, %v2504
    %v2506 = vand.u32 %v2505, 4294901760
    %2507 = vmatpush1.msra.mxu0 %v2506
    %v2508 = vand.u32 %v92, 4294901760
    %v2509 = vsub.f32 %v92, %v2508
    %v2510 = vand.u32 %v2509, 4294901760
    %2511 = vmatprep.subr.mxu0 %v2510
    %v2512 = vand.u32 %v91, 4294901760
    %v2513 = vsub.f32 %v91, %v2512
    %v2514 = vand.u32 %v2513, 4294901760
    %2515 = vmatpush1.msra.mxu0 %v2514
    %v2516 = vand.u32 %v100, 4294901760
    %v2517 = vsub.f32 %v100, %v2516
    %v2518 = vand.u32 %v2517, 4294901760
    %2519 = vmatprep.subr.mxu0 %v2518
    %v2520 = vand.u32 %v99, 4294901760
    %v2521 = vsub.f32 %v99, %v2520
    %v2522 = vand.u32 %v2521, 4294901760
    %2523 = vmatpush1.msra.mxu0 %v2522
    %v2524 = vand.u32 %v108, 4294901760
    %v2525 = vsub.f32 %v108, %v2524
    %v2526 = vand.u32 %v2525, 4294901760
    %2527 = vmatprep.subr.mxu0 %v2526
    %v2528 = vand.u32 %v107, 4294901760
    %v2529 = vsub.f32 %v107, %v2528
    %v2530 = vand.u32 %v2529, 4294901760
    %2531 = vmatpush1.msra.mxu0 %v2530
    %v2532 = vand.u32 %v116, 4294901760
    %v2533 = vsub.f32 %v116, %v2532
    %v2534 = vand.u32 %v2533, 4294901760
    %2535 = vmatprep.subr.mxu0 %v2534
    %v2536 = vand.u32 %v115, 4294901760
    %v2537 = vsub.f32 %v115, %v2536
    %v2538 = vand.u32 %v2537, 4294901760
    %2539 = vmatpush1.msra.mxu0 %v2538
    %v2540 = vand.u32 %v124, 4294901760
    %v2541 = vsub.f32 %v124, %v2540
    %v2542 = vand.u32 %v2541, 4294901760
    %2543 = vmatprep.subr.mxu0 %v2542
    %v2544 = vand.u32 %v123, 4294901760
    %v2545 = vsub.f32 %v123, %v2544
    %v2546 = vand.u32 %v2545, 4294901760
    %2547 = vmatpush1.msra.mxu0 %v2546
    %v2548 = vand.u32 %v132, 4294901760
    %v2549 = vsub.f32 %v132, %v2548
    %v2550 = vand.u32 %v2549, 4294901760
    %2551 = vmatprep.subr.mxu0 %v2550
    %v2552 = vand.u32 %v131, 4294901760
    %v2553 = vsub.f32 %v131, %v2552
    %v2554 = vand.u32 %v2553, 4294901760
    %2555 = vmatpush1.msra.mxu0 %v2554
    %v2556 = vand.u32 %v140, 4294901760
    %v2557 = vsub.f32 %v140, %v2556
    %v2558 = vand.u32 %v2557, 4294901760
    %2559 = vmatprep.subr.mxu0 %v2558
    %v2560 = vand.u32 %v139, 4294901760
    %v2561 = vsub.f32 %v139, %v2560
    %v2562 = vand.u32 %v2561, 4294901760
    %2563 = vmatpush1.msra.mxu0 %v2562
    %v2564 = vand.u32 %v148, 4294901760
    %v2565 = vsub.f32 %v148, %v2564
    %v2566 = vand.u32 %v2565, 4294901760
    %2567 = vmatprep.subr.mxu0 %v2566
    %v2568 = vand.u32 %v147, 4294901760
    %v2569 = vsub.f32 %v147, %v2568
    %v2570 = vand.u32 %v2569, 4294901760
    %2571 = vmatpush1.msra.mxu0 %v2570
    %v2572 = vand.u32 %v156, 4294901760
    %v2573 = vsub.f32 %v156, %v2572
    %v2574 = vand.u32 %v2573, 4294901760
    %2575 = vmatprep.subr.mxu0 %v2574
    %v2576 = vand.u32 %v155, 4294901760
    %v2577 = vsub.f32 %v155, %v2576
    %v2578 = vand.u32 %v2577, 4294901760
    %2579 = vmatpush1.msra.mxu0 %v2578
    %v2580 = vand.u32 %v164, 4294901760
    %v2581 = vsub.f32 %v164, %v2580
    %v2582 = vand.u32 %v2581, 4294901760
    %2583 = vmatprep.subr.mxu0 %v2582
    %v2584 = vand.u32 %v163, 4294901760
    %v2585 = vsub.f32 %v163, %v2584
    %v2586 = vand.u32 %v2585, 4294901760
    %2587 = vmatpush1.msra.mxu0 %v2586
    %v2588 = vand.u32 %v172, 4294901760
    %v2589 = vsub.f32 %v172, %v2588
    %v2590 = vand.u32 %v2589, 4294901760
    %2591 = vmatprep.subr.mxu0 %v2590
    %v2592 = vand.u32 %v171, 4294901760
    %v2593 = vsub.f32 %v171, %v2592
    %v2594 = vand.u32 %v2593, 4294901760
    %2595 = vmatpush1.msra.mxu0 %v2594
    %2596 = vmatprep.subr.mxu0 0.0
    %2597 = vmatpush1.msra.mxu0 0.0
    %2598 = vmatprep.subr.mxu0 0.0
    %2599 = vmatpush1.msra.mxu0 0.0
    %2600 = vmatprep.subr.mxu0 0.0
    %2601 = vmatpush1.msra.mxu0 0.0
    %2602 = vmatprep.subr.mxu0 0.0
    %2603 = vmatpush1.msra.mxu0 0.0
    %2604 = vmatprep.subr.mxu0 0.0
    %2605 = vmatpush1.msra.mxu0 0.0
    %2606 = vmatprep.subr.mxu0 0.0
    %2607 = vmatpush1.msra.mxu0 0.0
    %2608 = vmatprep.subr.mxu0 0.0
    %2609 = vmatpush1.msra.mxu0 0.0
    %2610 = vmatprep.subr.mxu0 0.0
    %2611 = vmatpush1.msra.mxu0 0.0
    %2612 = vmatprep.subr.mxu0 0.0
    %2613 = vmatpush1.msra.mxu0 0.0
    %2614 = vmatprep.subr.mxu0 0.0
    %2615 = vmatpush1.msra.mxu0 0.0
    %2616 = vmatprep.subr.mxu0 0.0
    %2617 = vmatpush1.msra.mxu0 0.0
    %2618 = vmatprep.subr.mxu0 0.0
    %2619 = vmatpush1.msra.mxu0 0.0
    %2620 = vmatprep.subr.mxu0 0.0
    %2621 = vmatpush1.msra.mxu0 0.0
    %2622 = vmatprep.subr.mxu0 0.0
    %2623 = vmatpush1.msra.mxu0 0.0
    %2624 = vmatprep.subr.mxu0 0.0
    %2625 = vmatpush1.msra.mxu0 0.0
    %2626 = vmatprep.subr.mxu0 0.0
    %2627 = vmatpush1.msra.mxu0 0.0
    %2628 = vmatprep.mubr.f32.mxu0 0.0
    %v2629 = vand.u32 %v46, 4294901760
    %2630 = vmatmul.mubr.f32.gmra.mrb[0].mxu0 %v2629
    %v2631 = vpop.f32.mrb[0].mxu0
    %v2632 = vadd.f32 %v2464, %v2631
    %v2633 = vpop.f32.mrb[0].mxu0
    %v2634 = vadd.f32 %v2466, %v2633
    %2635 = vdwg.mxu0
    %v2636 = vand.u32 %v52, 4294901760
    %2637 = vmatprep.subr.mxu0 %v2636
    %v2638 = vand.u32 %v51, 4294901760
    %2639 = vmatpush1.msra.mxu0 %v2638
    %v2640 = vand.u32 %v60, 4294901760
    %2641 = vmatprep.subr.mxu0 %v2640
    %v2642 = vand.u32 %v59, 4294901760
    %2643 = vmatpush1.msra.mxu0 %v2642
    %v2644 = vand.u32 %v68, 4294901760
    %2645 = vmatprep.subr.mxu0 %v2644
    %v2646 = vand.u32 %v67, 4294901760
    %2647 = vmatpush1.msra.mxu0 %v2646
    %v2648 = vand.u32 %v76, 4294901760
    %2649 = vmatprep.subr.mxu0 %v2648
    %v2650 = vand.u32 %v75, 4294901760
    %2651 = vmatpush1.msra.mxu0 %v2650
    %v2652 = vand.u32 %v84, 4294901760
    %2653 = vmatprep.subr.mxu0 %v2652
    %v2654 = vand.u32 %v83, 4294901760
    %2655 = vmatpush1.msra.mxu0 %v2654
    %v2656 = vand.u32 %v92, 4294901760
    %2657 = vmatprep.subr.mxu0 %v2656
    %v2658 = vand.u32 %v91, 4294901760
    %2659 = vmatpush1.msra.mxu0 %v2658
    %v2660 = vand.u32 %v100, 4294901760
    %2661 = vmatprep.subr.mxu0 %v2660
    %v2662 = vand.u32 %v99, 4294901760
    %2663 = vmatpush1.msra.mxu0 %v2662
    %v2664 = vand.u32 %v108, 4294901760
    %2665 = vmatprep.subr.mxu0 %v2664
    %v2666 = vand.u32 %v107, 4294901760
    %2667 = vmatpush1.msra.mxu0 %v2666
    %v2668 = vand.u32 %v116, 4294901760
    %2669 = vmatprep.subr.mxu0 %v2668
    %v2670 = vand.u32 %v115, 4294901760
    %2671 = vmatpush1.msra.mxu0 %v2670
    %v2672 = vand.u32 %v124, 4294901760
    %2673 = vmatprep.subr.mxu0 %v2672
    %v2674 = vand.u32 %v123, 4294901760
    %2675 = vmatpush1.msra.mxu0 %v2674
    %v2676 = vand.u32 %v132, 4294901760
    %2677 = vmatprep.subr.mxu0 %v2676
    %v2678 = vand.u32 %v131, 4294901760
    %2679 = vmatpush1.msra.mxu0 %v2678
    %v2680 = vand.u32 %v140, 4294901760
    %2681 = vmatprep.subr.mxu0 %v2680
    %v2682 = vand.u32 %v139, 4294901760
    %2683 = vmatpush1.msra.mxu0 %v2682
    %v2684 = vand.u32 %v148, 4294901760
    %2685 = vmatprep.subr.mxu0 %v2684
    %v2686 = vand.u32 %v147, 4294901760
    %2687 = vmatpush1.msra.mxu0 %v2686
    %v2688 = vand.u32 %v156, 4294901760
    %2689 = vmatprep.subr.mxu0 %v2688
    %v2690 = vand.u32 %v155, 4294901760
    %2691 = vmatpush1.msra.mxu0 %v2690
    %v2692 = vand.u32 %v164, 4294901760
    %2693 = vmatprep.subr.mxu0 %v2692
    %v2694 = vand.u32 %v163, 4294901760
    %2695 = vmatpush1.msra.mxu0 %v2694
    %v2696 = vand.u32 %v172, 4294901760
    %2697 = vmatprep.subr.mxu0 %v2696
    %v2698 = vand.u32 %v171, 4294901760
    %2699 = vmatpush1.msra.mxu0 %v2698
    %2700 = vmatprep.subr.mxu0 0.0
    %2701 = vmatpush1.msra.mxu0 0.0
    %2702 = vmatprep.subr.mxu0 0.0
    %2703 = vmatpush1.msra.mxu0 0.0
    %2704 = vmatprep.subr.mxu0 0.0
    %2705 = vmatpush1.msra.mxu0 0.0
    %2706 = vmatprep.subr.mxu0 0.0
    %2707 = vmatpush1.msra.mxu0 0.0
    %2708 = vmatprep.subr.mxu0 0.0
    %2709 = vmatpush1.msra.mxu0 0.0
    %2710 = vmatprep.subr.mxu0 0.0
    %2711 = vmatpush1.msra.mxu0 0.0
    %2712 = vmatprep.subr.mxu0 0.0
    %2713 = vmatpush1.msra.mxu0 0.0
    %2714 = vmatprep.subr.mxu0 0.0
    %2715 = vmatpush1.msra.mxu0 0.0
    %2716 = vmatprep.subr.mxu0 0.0
    %2717 = vmatpush1.msra.mxu0 0.0
    %2718 = vmatprep.subr.mxu0 0.0
    %2719 = vmatpush1.msra.mxu0 0.0
    %2720 = vmatprep.subr.mxu0 0.0
    %2721 = vmatpush1.msra.mxu0 0.0
    %2722 = vmatprep.subr.mxu0 0.0
    %2723 = vmatpush1.msra.mxu0 0.0
    %2724 = vmatprep.subr.mxu0 0.0
    %2725 = vmatpush1.msra.mxu0 0.0
    %2726 = vmatprep.subr.mxu0 0.0
    %2727 = vmatpush1.msra.mxu0 0.0
    %2728 = vmatprep.subr.mxu0 0.0
    %2729 = vmatpush1.msra.mxu0 0.0
    %2730 = vmatprep.subr.mxu0 0.0
    %2731 = vmatpush1.msra.mxu0 0.0
    %2732 = vmatprep.mubr.f32.mxu0 0.0
    %v2733 = vand.u32 %v46, 4294901760
    %2734 = vmatmul.mubr.f32.gmra.mrb[0].mxu0 %v2733
    %v2735 = vpop.f32.mrb[0].mxu0
    %v2736 = vadd.f32 %v2632, %v2735
    %v2737 = vpop.f32.mrb[0].mxu0
    %v2738 = vadd.f32 %v2634, %v2737
    %2739 = vdwg.mxu0
    %v2740 = vand.u32 %v54, 4294901760
    %2741 = vmatprep.subr.mxu0 %v2740
    %v2742 = vand.u32 %v53, 4294901760
    %2743 = vmatpush1.msra.mxu0 %v2742
    %v2744 = vand.u32 %v62, 4294901760
    %2745 = vmatprep.subr.mxu0 %v2744
    %v2746 = vand.u32 %v61, 4294901760
    %2747 = vmatpush1.msra.mxu0 %v2746
    %v2748 = vand.u32 %v70, 4294901760
    %2749 = vmatprep.subr.mxu0 %v2748
    %v2750 = vand.u32 %v69, 4294901760
    %2751 = vmatpush1.msra.mxu0 %v2750
    %v2752 = vand.u32 %v78, 4294901760
    %2753 = vmatprep.subr.mxu0 %v2752
    %v2754 = vand.u32 %v77, 4294901760
    %2755 = vmatpush1.msra.mxu0 %v2754
    %v2756 = vand.u32 %v86, 4294901760
    %2757 = vmatprep.subr.mxu0 %v2756
    %v2758 = vand.u32 %v85, 4294901760
    %2759 = vmatpush1.msra.mxu0 %v2758
    %v2760 = vand.u32 %v94, 4294901760
    %2761 = vmatprep.subr.mxu0 %v2760
    %v2762 = vand.u32 %v93, 4294901760
    %2763 = vmatpush1.msra.mxu0 %v2762
    %v2764 = vand.u32 %v102, 4294901760
    %2765 = vmatprep.subr.mxu0 %v2764
    %v2766 = vand.u32 %v101, 4294901760
    %2767 = vmatpush1.msra.mxu0 %v2766
    %v2768 = vand.u32 %v110, 4294901760
    %2769 = vmatprep.subr.mxu0 %v2768
    %v2770 = vand.u32 %v109, 4294901760
    %2771 = vmatpush1.msra.mxu0 %v2770
    %v2772 = vand.u32 %v118, 4294901760
    %2773 = vmatprep.subr.mxu0 %v2772
    %v2774 = vand.u32 %v117, 4294901760
    %2775 = vmatpush1.msra.mxu0 %v2774
    %v2776 = vand.u32 %v126, 4294901760
    %2777 = vmatprep.subr.mxu0 %v2776
    %v2778 = vand.u32 %v125, 4294901760
    %2779 = vmatpush1.msra.mxu0 %v2778
    %v2780 = vand.u32 %v134, 4294901760
    %2781 = vmatprep.subr.mxu0 %v2780
    %v2782 = vand.u32 %v133, 4294901760
    %2783 = vmatpush1.msra.mxu0 %v2782
    %v2784 = vand.u32 %v142, 4294901760
    %2785 = vmatprep.subr.mxu0 %v2784
    %v2786 = vand.u32 %v141, 4294901760
    %2787 = vmatpush1.msra.mxu0 %v2786
    %v2788 = vand.u32 %v150, 4294901760
    %2789 = vmatprep.subr.mxu0 %v2788
    %v2790 = vand.u32 %v149, 4294901760
    %2791 = vmatpush1.msra.mxu0 %v2790
    %v2792 = vand.u32 %v158, 4294901760
    %2793 = vmatprep.subr.mxu0 %v2792
    %v2794 = vand.u32 %v157, 4294901760
    %2795 = vmatpush1.msra.mxu0 %v2794
    %v2796 = vand.u32 %v166, 4294901760
    %2797 = vmatprep.subr.mxu0 %v2796
    %v2798 = vand.u32 %v165, 4294901760
    %2799 = vmatpush1.msra.mxu0 %v2798
    %v2800 = vand.u32 %v174, 4294901760
    %2801 = vmatprep.subr.mxu0 %v2800
    %v2802 = vand.u32 %v173, 4294901760
    %2803 = vmatpush1.msra.mxu0 %v2802
    %2804 = vmatprep.subr.mxu0 0.0
    %2805 = vmatpush1.msra.mxu0 0.0
    %2806 = vmatprep.subr.mxu0 0.0
    %2807 = vmatpush1.msra.mxu0 0.0
    %2808 = vmatprep.subr.mxu0 0.0
    %2809 = vmatpush1.msra.mxu0 0.0
    %2810 = vmatprep.subr.mxu0 0.0
    %2811 = vmatpush1.msra.mxu0 0.0
    %2812 = vmatprep.subr.mxu0 0.0
    %2813 = vmatpush1.msra.mxu0 0.0
    %2814 = vmatprep.subr.mxu0 0.0
    %2815 = vmatpush1.msra.mxu0 0.0
    %2816 = vmatprep.subr.mxu0 0.0
    %2817 = vmatpush1.msra.mxu0 0.0
    %2818 = vmatprep.subr.mxu0 0.0
    %2819 = vmatpush1.msra.mxu0 0.0
    %2820 = vmatprep.subr.mxu0 0.0
    %2821 = vmatpush1.msra.mxu0 0.0
    %2822 = vmatprep.subr.mxu0 0.0
    %2823 = vmatpush1.msra.mxu0 0.0
    %2824 = vmatprep.subr.mxu0 0.0
    %2825 = vmatpush1.msra.mxu0 0.0
    %2826 = vmatprep.subr.mxu0 0.0
    %2827 = vmatpush1.msra.mxu0 0.0
    %2828 = vmatprep.subr.mxu0 0.0
    %2829 = vmatpush1.msra.mxu0 0.0
    %2830 = vmatprep.subr.mxu0 0.0
    %2831 = vmatpush1.msra.mxu0 0.0
    %2832 = vmatprep.subr.mxu0 0.0
    %2833 = vmatpush1.msra.mxu0 0.0
    %2834 = vmatprep.subr.mxu0 0.0
    %2835 = vmatpush1.msra.mxu0 0.0
    %2836 = vmatprep.mubr.f32.mxu0 0.0
    %v2837 = vand.u32 %v46, 4294901760
    %v2838 = vsub.f32 %v46, %v2837
    %v2839 = vand.u32 %v2838, 4294901760
    %v2840 = vsub.f32 %v2838, %v2839
    %v2841 = vand.u32 %v2840, 4294901760
    %2842 = vmatmul.mubr.f32.gmra.mrb[0].mxu0 %v2841
    %v2843 = vpop.f32.mrb[0].mxu0
    %v2844 = vadd.f32 0.0, %v2843
    %v2845 = vpop.f32.mrb[0].mxu0
    %v2846 = vadd.f32 0.0, %v2845
    %2847 = vdwg.mxu0
    %v2848 = vand.u32 %v54, 4294901760
    %v2849 = vsub.f32 %v54, %v2848
    %v2850 = vand.u32 %v2849, 4294901760
    %v2851 = vsub.f32 %v2849, %v2850
    %v2852 = vand.u32 %v2851, 4294901760
    %2853 = vmatprep.subr.mxu0 %v2852
    %v2854 = vand.u32 %v53, 4294901760
    %v2855 = vsub.f32 %v53, %v2854
    %v2856 = vand.u32 %v2855, 4294901760
    %v2857 = vsub.f32 %v2855, %v2856
    %v2858 = vand.u32 %v2857, 4294901760
    %2859 = vmatpush1.msra.mxu0 %v2858
    %v2860 = vand.u32 %v62, 4294901760
    %v2861 = vsub.f32 %v62, %v2860
    %v2862 = vand.u32 %v2861, 4294901760
    %v2863 = vsub.f32 %v2861, %v2862
    %v2864 = vand.u32 %v2863, 4294901760
    %2865 = vmatprep.subr.mxu0 %v2864
    %v2866 = vand.u32 %v61, 4294901760
    %v2867 = vsub.f32 %v61, %v2866
    %v2868 = vand.u32 %v2867, 4294901760
    %v2869 = vsub.f32 %v2867, %v2868
    %v2870 = vand.u32 %v2869, 4294901760
    %2871 = vmatpush1.msra.mxu0 %v2870
    %v2872 = vand.u32 %v70, 4294901760
    %v2873 = vsub.f32 %v70, %v2872
    %v2874 = vand.u32 %v2873, 4294901760
    %v2875 = vsub.f32 %v2873, %v2874
    %v2876 = vand.u32 %v2875, 4294901760
    %2877 = vmatprep.subr.mxu0 %v2876
    %v2878 = vand.u32 %v69, 4294901760
    %v2879 = vsub.f32 %v69, %v2878
    %v2880 = vand.u32 %v2879, 4294901760
    %v2881 = vsub.f32 %v2879, %v2880
    %v2882 = vand.u32 %v2881, 4294901760
    %2883 = vmatpush1.msra.mxu0 %v2882
    %v2884 = vand.u32 %v78, 4294901760
    %v2885 = vsub.f32 %v78, %v2884
    %v2886 = vand.u32 %v2885, 4294901760
    %v2887 = vsub.f32 %v2885, %v2886
    %v2888 = vand.u32 %v2887, 4294901760
    %2889 = vmatprep.subr.mxu0 %v2888
    %v2890 = vand.u32 %v77, 4294901760
    %v2891 = vsub.f32 %v77, %v2890
    %v2892 = vand.u32 %v2891, 4294901760
    %v2893 = vsub.f32 %v2891, %v2892
    %v2894 = vand.u32 %v2893, 4294901760
    %2895 = vmatpush1.msra.mxu0 %v2894
    %v2896 = vand.u32 %v86, 4294901760
    %v2897 = vsub.f32 %v86, %v2896
    %v2898 = vand.u32 %v2897, 4294901760
    %v2899 = vsub.f32 %v2897, %v2898
    %v2900 = vand.u32 %v2899, 4294901760
    %2901 = vmatprep.subr.mxu0 %v2900
    %v2902 = vand.u32 %v85, 4294901760
    %v2903 = vsub.f32 %v85, %v2902
    %v2904 = vand.u32 %v2903, 4294901760
    %v2905 = vsub.f32 %v2903, %v2904
    %v2906 = vand.u32 %v2905, 4294901760
    %2907 = vmatpush1.msra.mxu0 %v2906
    %v2908 = vand.u32 %v94, 4294901760
    %v2909 = vsub.f32 %v94, %v2908
    %v2910 = vand.u32 %v2909, 4294901760
    %v2911 = vsub.f32 %v2909, %v2910
    %v2912 = vand.u32 %v2911, 4294901760
    %2913 = vmatprep.subr.mxu0 %v2912
    %v2914 = vand.u32 %v93, 4294901760
    %v2915 = vsub.f32 %v93, %v2914
    %v2916 = vand.u32 %v2915, 4294901760
    %v2917 = vsub.f32 %v2915, %v2916
    %v2918 = vand.u32 %v2917, 4294901760
    %2919 = vmatpush1.msra.mxu0 %v2918
    %v2920 = vand.u32 %v102, 4294901760
    %v2921 = vsub.f32 %v102, %v2920
    %v2922 = vand.u32 %v2921, 4294901760
    %v2923 = vsub.f32 %v2921, %v2922
    %v2924 = vand.u32 %v2923, 4294901760
    %2925 = vmatprep.subr.mxu0 %v2924
    %v2926 = vand.u32 %v101, 4294901760
    %v2927 = vsub.f32 %v101, %v2926
    %v2928 = vand.u32 %v2927, 4294901760
    %v2929 = vsub.f32 %v2927, %v2928
    %v2930 = vand.u32 %v2929, 4294901760
    %2931 = vmatpush1.msra.mxu0 %v2930
    %v2932 = vand.u32 %v110, 4294901760
    %v2933 = vsub.f32 %v110, %v2932
    %v2934 = vand.u32 %v2933, 4294901760
    %v2935 = vsub.f32 %v2933, %v2934
    %v2936 = vand.u32 %v2935, 4294901760
    %2937 = vmatprep.subr.mxu0 %v2936
    %v2938 = vand.u32 %v109, 4294901760
    %v2939 = vsub.f32 %v109, %v2938
    %v2940 = vand.u32 %v2939, 4294901760
    %v2941 = vsub.f32 %v2939, %v2940
    %v2942 = vand.u32 %v2941, 4294901760
    %2943 = vmatpush1.msra.mxu0 %v2942
    %v2944 = vand.u32 %v118, 4294901760
    %v2945 = vsub.f32 %v118, %v2944
    %v2946 = vand.u32 %v2945, 4294901760
    %v2947 = vsub.f32 %v2945, %v2946
    %v2948 = vand.u32 %v2947, 4294901760
    %2949 = vmatprep.subr.mxu0 %v2948
    %v2950 = vand.u32 %v117, 4294901760
    %v2951 = vsub.f32 %v117, %v2950
    %v2952 = vand.u32 %v2951, 4294901760
    %v2953 = vsub.f32 %v2951, %v2952
    %v2954 = vand.u32 %v2953, 4294901760
    %2955 = vmatpush1.msra.mxu0 %v2954
    %v2956 = vand.u32 %v126, 4294901760
    %v2957 = vsub.f32 %v126, %v2956
    %v2958 = vand.u32 %v2957, 4294901760
    %v2959 = vsub.f32 %v2957, %v2958
    %v2960 = vand.u32 %v2959, 4294901760
    %2961 = vmatprep.subr.mxu0 %v2960
    %v2962 = vand.u32 %v125, 4294901760
    %v2963 = vsub.f32 %v125, %v2962
    %v2964 = vand.u32 %v2963, 4294901760
    %v2965 = vsub.f32 %v2963, %v2964
    %v2966 = vand.u32 %v2965, 4294901760
    %2967 = vmatpush1.msra.mxu0 %v2966
    %v2968 = vand.u32 %v134, 4294901760
    %v2969 = vsub.f32 %v134, %v2968
    %v2970 = vand.u32 %v2969, 4294901760
    %v2971 = vsub.f32 %v2969, %v2970
    %v2972 = vand.u32 %v2971, 4294901760
    %2973 = vmatprep.subr.mxu0 %v2972
    %v2974 = vand.u32 %v133, 4294901760
    %v2975 = vsub.f32 %v133, %v2974
    %v2976 = vand.u32 %v2975, 4294901760
    %v2977 = vsub.f32 %v2975, %v2976
    %v2978 = vand.u32 %v2977, 4294901760
    %2979 = vmatpush1.msra.mxu0 %v2978
    %v2980 = vand.u32 %v142, 4294901760
    %v2981 = vsub.f32 %v142, %v2980
    %v2982 = vand.u32 %v2981, 4294901760
    %v2983 = vsub.f32 %v2981, %v2982
    %v2984 = vand.u32 %v2983, 4294901760
    %2985 = vmatprep.subr.mxu0 %v2984
    %v2986 = vand.u32 %v141, 4294901760
    %v2987 = vsub.f32 %v141, %v2986
    %v2988 = vand.u32 %v2987, 4294901760
    %v2989 = vsub.f32 %v2987, %v2988
    %v2990 = vand.u32 %v2989, 4294901760
    %2991 = vmatpush1.msra.mxu0 %v2990
    %v2992 = vand.u32 %v150, 4294901760
    %v2993 = vsub.f32 %v150, %v2992
    %v2994 = vand.u32 %v2993, 4294901760
    %v2995 = vsub.f32 %v2993, %v2994
    %v2996 = vand.u32 %v2995, 4294901760
    %2997 = vmatprep.subr.mxu0 %v2996
    %v2998 = vand.u32 %v149, 4294901760
    %v2999 = vsub.f32 %v149, %v2998
    %v3000 = vand.u32 %v2999, 4294901760
    %v3001 = vsub.f32 %v2999, %v3000
    %v3002 = vand.u32 %v3001, 4294901760
    %3003 = vmatpush1.msra.mxu0 %v3002
    %v3004 = vand.u32 %v158, 4294901760
    %v3005 = vsub.f32 %v158, %v3004
    %v3006 = vand.u32 %v3005, 4294901760
    %v3007 = vsub.f32 %v3005, %v3006
    %v3008 = vand.u32 %v3007, 4294901760
    %3009 = vmatprep.subr.mxu0 %v3008
    %v3010 = vand.u32 %v157, 4294901760
    %v3011 = vsub.f32 %v157, %v3010
    %v3012 = vand.u32 %v3011, 4294901760
    %v3013 = vsub.f32 %v3011, %v3012
    %v3014 = vand.u32 %v3013, 4294901760
    %3015 = vmatpush1.msra.mxu0 %v3014
    %v3016 = vand.u32 %v166, 4294901760
    %v3017 = vsub.f32 %v166, %v3016
    %v3018 = vand.u32 %v3017, 4294901760
    %v3019 = vsub.f32 %v3017, %v3018
    %v3020 = vand.u32 %v3019, 4294901760
    %3021 = vmatprep.subr.mxu0 %v3020
    %v3022 = vand.u32 %v165, 4294901760
    %v3023 = vsub.f32 %v165, %v3022
    %v3024 = vand.u32 %v3023, 4294901760
    %v3025 = vsub.f32 %v3023, %v3024
    %v3026 = vand.u32 %v3025, 4294901760
    %3027 = vmatpush1.msra.mxu0 %v3026
    %v3028 = vand.u32 %v174, 4294901760
    %v3029 = vsub.f32 %v174, %v3028
    %v3030 = vand.u32 %v3029, 4294901760
    %v3031 = vsub.f32 %v3029, %v3030
    %v3032 = vand.u32 %v3031, 4294901760
    %3033 = vmatprep.subr.mxu0 %v3032
    %v3034 = vand.u32 %v173, 4294901760
    %v3035 = vsub.f32 %v173, %v3034
    %v3036 = vand.u32 %v3035, 4294901760
    %v3037 = vsub.f32 %v3035, %v3036
    %v3038 = vand.u32 %v3037, 4294901760
    %3039 = vmatpush1.msra.mxu0 %v3038
    %3040 = vmatprep.subr.mxu0 0.0
    %3041 = vmatpush1.msra.mxu0 0.0
    %3042 = vmatprep.subr.mxu0 0.0
    %3043 = vmatpush1.msra.mxu0 0.0
    %3044 = vmatprep.subr.mxu0 0.0
    %3045 = vmatpush1.msra.mxu0 0.0
    %3046 = vmatprep.subr.mxu0 0.0
    %3047 = vmatpush1.msra.mxu0 0.0
    %3048 = vmatprep.subr.mxu0 0.0
    %3049 = vmatpush1.msra.mxu0 0.0
    %3050 = vmatprep.subr.mxu0 0.0
    %3051 = vmatpush1.msra.mxu0 0.0
    %3052 = vmatprep.subr.mxu0 0.0
    %3053 = vmatpush1.msra.mxu0 0.0
    %3054 = vmatprep.subr.mxu0 0.0
    %3055 = vmatpush1.msra.mxu0 0.0
    %3056 = vmatprep.subr.mxu0 0.0
    %3057 = vmatpush1.msra.mxu0 0.0
    %3058 = vmatprep.subr.mxu0 0.0
    %3059 = vmatpush1.msra.mxu0 0.0
    %3060 = vmatprep.subr.mxu0 0.0
    %3061 = vmatpush1.msra.mxu0 0.0
    %3062 = vmatprep.subr.mxu0 0.0
    %3063 = vmatpush1.msra.mxu0 0.0
    %3064 = vmatprep.subr.mxu0 0.0
    %3065 = vmatpush1.msra.mxu0 0.0
    %3066 = vmatprep.subr.mxu0 0.0
    %3067 = vmatpush1.msra.mxu0 0.0
    %3068 = vmatprep.subr.mxu0 0.0
    %3069 = vmatpush1.msra.mxu0 0.0
    %3070 = vmatprep.subr.mxu0 0.0
    %3071 = vmatpush1.msra.mxu0 0.0
    %3072 = vmatprep.mubr.f32.mxu0 0.0
    %v3073 = vand.u32 %v46, 4294901760
    %3074 = vmatmul.mubr.f32.gmra.mrb[0].mxu0 %v3073
    %v3075 = vpop.f32.mrb[0].mxu0
    %v3076 = vadd.f32 %v2844, %v3075
    %v3077 = vpop.f32.mrb[0].mxu0
    %v3078 = vadd.f32 %v2846, %v3077
    %3079 = vdwg.mxu0
    %v3080 = vand.u32 %v54, 4294901760
    %v3081 = vsub.f32 %v54, %v3080
    %3082 = vmatprep.subr.mxu0 %v3081
    %v3083 = vand.u32 %v53, 4294901760
    %v3084 = vsub.f32 %v53, %v3083
    %3085 = vmatpush1.msra.mxu0 %v3084
    %v3086 = vand.u32 %v62, 4294901760
    %v3087 = vsub.f32 %v62, %v3086
    %3088 = vmatprep.subr.mxu0 %v3087
    %v3089 = vand.u32 %v61, 4294901760
    %v3090 = vsub.f32 %v61, %v3089
    %3091 = vmatpush1.msra.mxu0 %v3090
    %v3092 = vand.u32 %v70, 4294901760
    %v3093 = vsub.f32 %v70, %v3092
    %3094 = vmatprep.subr.mxu0 %v3093
    %v3095 = vand.u32 %v69, 4294901760
    %v3096 = vsub.f32 %v69, %v3095
    %3097 = vmatpush1.msra.mxu0 %v3096
    %v3098 = vand.u32 %v78, 4294901760
    %v3099 = vsub.f32 %v78, %v3098
    %3100 = vmatprep.subr.mxu0 %v3099
    %v3101 = vand.u32 %v77, 4294901760
    %v3102 = vsub.f32 %v77, %v3101
    %3103 = vmatpush1.msra.mxu0 %v3102
    %v3104 = vand.u32 %v86, 4294901760
    %v3105 = vsub.f32 %v86, %v3104
    %3106 = vmatprep.subr.mxu0 %v3105
    %v3107 = vand.u32 %v85, 4294901760
    %v3108 = vsub.f32 %v85, %v3107
    %3109 = vmatpush1.msra.mxu0 %v3108
    %v3110 = vand.u32 %v94, 4294901760
    %v3111 = vsub.f32 %v94, %v3110
    %3112 = vmatprep.subr.mxu0 %v3111
    %v3113 = vand.u32 %v93, 4294901760
    %v3114 = vsub.f32 %v93, %v3113
    %3115 = vmatpush1.msra.mxu0 %v3114
    %v3116 = vand.u32 %v102, 4294901760
    %v3117 = vsub.f32 %v102, %v3116
    %3118 = vmatprep.subr.mxu0 %v3117
    %v3119 = vand.u32 %v101, 4294901760
    %v3120 = vsub.f32 %v101, %v3119
    %3121 = vmatpush1.msra.mxu0 %v3120
    %v3122 = vand.u32 %v110, 4294901760
    %v3123 = vsub.f32 %v110, %v3122
    %3124 = vmatprep.subr.mxu0 %v3123
    %v3125 = vand.u32 %v109, 4294901760
    %v3126 = vsub.f32 %v109, %v3125
    %3127 = vmatpush1.msra.mxu0 %v3126
    %v3128 = vand.u32 %v118, 4294901760
    %v3129 = vsub.f32 %v118, %v3128
    %3130 = vmatprep.subr.mxu0 %v3129
    %v3131 = vand.u32 %v117, 4294901760
    %v3132 = vsub.f32 %v117, %v3131
    %3133 = vmatpush1.msra.mxu0 %v3132
    %v3134 = vand.u32 %v126, 4294901760
    %v3135 = vsub.f32 %v126, %v3134
    %3136 = vmatprep.subr.mxu0 %v3135
    %v3137 = vand.u32 %v125, 4294901760
    %v3138 = vsub.f32 %v125, %v3137
    %3139 = vmatpush1.msra.mxu0 %v3138
    %v3140 = vand.u32 %v134, 4294901760
    %v3141 = vsub.f32 %v134, %v3140
    %3142 = vmatprep.subr.mxu0 %v3141
    %v3143 = vand.u32 %v133, 4294901760
    %v3144 = vsub.f32 %v133, %v3143
    %3145 = vmatpush1.msra.mxu0 %v3144
    %v3146 = vand.u32 %v142, 4294901760
    %v3147 = vsub.f32 %v142, %v3146
    %3148 = vmatprep.subr.mxu0 %v3147
    %v3149 = vand.u32 %v141, 4294901760
    %v3150 = vsub.f32 %v141, %v3149
    %3151 = vmatpush1.msra.mxu0 %v3150
    %v3152 = vand.u32 %v150, 4294901760
    %v3153 = vsub.f32 %v150, %v3152
    %3154 = vmatprep.subr.mxu0 %v3153
    %v3155 = vand.u32 %v149, 4294901760
    %v3156 = vsub.f32 %v149, %v3155
    %3157 = vmatpush1.msra.mxu0 %v3156
    %v3158 = vand.u32 %v158, 4294901760
    %v3159 = vsub.f32 %v158, %v3158
    %3160 = vmatprep.subr.mxu0 %v3159
    %v3161 = vand.u32 %v157, 4294901760
    %v3162 = vsub.f32 %v157, %v3161
    %3163 = vmatpush1.msra.mxu0 %v3162
    %v3164 = vand.u32 %v166, 4294901760
    %v3165 = vsub.f32 %v166, %v3164
    %3166 = vmatprep.subr.mxu0 %v3165
    %v3167 = vand.u32 %v165, 4294901760
    %v3168 = vsub.f32 %v165, %v3167
    %3169 = vmatpush1.msra.mxu0 %v3168
    %v3170 = vand.u32 %v174, 4294901760
    %v3171 = vsub.f32 %v174, %v3170
    %3172 = vmatprep.subr.mxu0 %v3171
    %v3173 = vand.u32 %v173, 4294901760
    %v3174 = vsub.f32 %v173, %v3173
    %3175 = vmatpush1.msra.mxu0 %v3174
    %3176 = vmatprep.subr.mxu0 0.0
    %3177 = vmatpush1.msra.mxu0 0.0
    %3178 = vmatprep.subr.mxu0 0.0
    %3179 = vmatpush1.msra.mxu0 0.0
    %3180 = vmatprep.subr.mxu0 0.0
    %3181 = vmatpush1.msra.mxu0 0.0
    %3182 = vmatprep.subr.mxu0 0.0
    %3183 = vmatpush1.msra.mxu0 0.0
    %3184 = vmatprep.subr.mxu0 0.0
    %3185 = vmatpush1.msra.mxu0 0.0
    %3186 = vmatprep.subr.mxu0 0.0
    %3187 = vmatpush1.msra.mxu0 0.0
    %3188 = vmatprep.subr.mxu0 0.0
    %3189 = vmatpush1.msra.mxu0 0.0
    %3190 = vmatprep.subr.mxu0 0.0
    %3191 = vmatpush1.msra.mxu0 0.0
    %3192 = vmatprep.subr.mxu0 0.0
    %3193 = vmatpush1.msra.mxu0 0.0
    %3194 = vmatprep.subr.mxu0 0.0
    %3195 = vmatpush1.msra.mxu0 0.0
    %3196 = vmatprep.subr.mxu0 0.0
    %3197 = vmatpush1.msra.mxu0 0.0
    %3198 = vmatprep.subr.mxu0 0.0
    %3199 = vmatpush1.msra.mxu0 0.0
    %3200 = vmatprep.subr.mxu0 0.0
    %3201 = vmatpush1.msra.mxu0 0.0
    %3202 = vmatprep.subr.mxu0 0.0
    %3203 = vmatpush1.msra.mxu0 0.0
    %3204 = vmatprep.subr.mxu0 0.0
    %3205 = vmatpush1.msra.mxu0 0.0
    %3206 = vmatprep.subr.mxu0 0.0
    %3207 = vmatpush1.msra.mxu0 0.0
    %3208 = vmatprep.mubr.f32.mxu0 0.0
    %v3209 = vand.u32 %v46, 4294901760
    %v3210 = vsub.f32 %v46, %v3209
    %3211 = vmatmul.mubr.f32.gmra.mrb[0].mxu0 %v3210
    %v3212 = vpop.f32.mrb[0].mxu0
    %v3213 = vadd.f32 %v3076, %v3212
    %v3214 = vpop.f32.mrb[0].mxu0
    %v3215 = vadd.f32 %v3078, %v3214
    %3216 = vdwg.mxu0
    %v3217 = vand.u32 %v54, 4294901760
    %3218 = vmatprep.subr.mxu0 %v3217
    %v3219 = vand.u32 %v53, 4294901760
    %3220 = vmatpush1.msra.mxu0 %v3219
    %v3221 = vand.u32 %v62, 4294901760
    %3222 = vmatprep.subr.mxu0 %v3221
    %v3223 = vand.u32 %v61, 4294901760
    %3224 = vmatpush1.msra.mxu0 %v3223
    %v3225 = vand.u32 %v70, 4294901760
    %3226 = vmatprep.subr.mxu0 %v3225
    %v3227 = vand.u32 %v69, 4294901760
    %3228 = vmatpush1.msra.mxu0 %v3227
    %v3229 = vand.u32 %v78, 4294901760
    %3230 = vmatprep.subr.mxu0 %v3229
    %v3231 = vand.u32 %v77, 4294901760
    %3232 = vmatpush1.msra.mxu0 %v3231
    %v3233 = vand.u32 %v86, 4294901760
    %3234 = vmatprep.subr.mxu0 %v3233
    %v3235 = vand.u32 %v85, 4294901760
    %3236 = vmatpush1.msra.mxu0 %v3235
    %v3237 = vand.u32 %v94, 4294901760
    %3238 = vmatprep.subr.mxu0 %v3237
    %v3239 = vand.u32 %v93, 4294901760
    %3240 = vmatpush1.msra.mxu0 %v3239
    %v3241 = vand.u32 %v102, 4294901760
    %3242 = vmatprep.subr.mxu0 %v3241
    %v3243 = vand.u32 %v101, 4294901760
    %3244 = vmatpush1.msra.mxu0 %v3243
    %v3245 = vand.u32 %v110, 4294901760
    %3246 = vmatprep.subr.mxu0 %v3245
    %v3247 = vand.u32 %v109, 4294901760
    %3248 = vmatpush1.msra.mxu0 %v3247
    %v3249 = vand.u32 %v118, 4294901760
    %3250 = vmatprep.subr.mxu0 %v3249
    %v3251 = vand.u32 %v117, 4294901760
    %3252 = vmatpush1.msra.mxu0 %v3251
    %v3253 = vand.u32 %v126, 4294901760
    %3254 = vmatprep.subr.mxu0 %v3253
    %v3255 = vand.u32 %v125, 4294901760
    %3256 = vmatpush1.msra.mxu0 %v3255
    %v3257 = vand.u32 %v134, 4294901760
    %3258 = vmatprep.subr.mxu0 %v3257
    %v3259 = vand.u32 %v133, 4294901760
    %3260 = vmatpush1.msra.mxu0 %v3259
    %v3261 = vand.u32 %v142, 4294901760
    %3262 = vmatprep.subr.mxu0 %v3261
    %v3263 = vand.u32 %v141, 4294901760
    %3264 = vmatpush1.msra.mxu0 %v3263
    %v3265 = vand.u32 %v150, 4294901760
    %3266 = vmatprep.subr.mxu0 %v3265
    %v3267 = vand.u32 %v149, 4294901760
    %3268 = vmatpush1.msra.mxu0 %v3267
    %v3269 = vand.u32 %v158, 4294901760
    %3270 = vmatprep.subr.mxu0 %v3269
    %v3271 = vand.u32 %v157, 4294901760
    %3272 = vmatpush1.msra.mxu0 %v3271
    %v3273 = vand.u32 %v166, 4294901760
    %3274 = vmatprep.subr.mxu0 %v3273
    %v3275 = vand.u32 %v165, 4294901760
    %3276 = vmatpush1.msra.mxu0 %v3275
    %v3277 = vand.u32 %v174, 4294901760
    %3278 = vmatprep.subr.mxu0 %v3277
    %v3279 = vand.u32 %v173, 4294901760
    %3280 = vmatpush1.msra.mxu0 %v3279
    %3281 = vmatprep.subr.mxu0 0.0
    %3282 = vmatpush1.msra.mxu0 0.0
    %3283 = vmatprep.subr.mxu0 0.0
    %3284 = vmatpush1.msra.mxu0 0.0
    %3285 = vmatprep.subr.mxu0 0.0
    %3286 = vmatpush1.msra.mxu0 0.0
    %3287 = vmatprep.subr.mxu0 0.0
    %3288 = vmatpush1.msra.mxu0 0.0
    %3289 = vmatprep.subr.mxu0 0.0
    %3290 = vmatpush1.msra.mxu0 0.0
    %3291 = vmatprep.subr.mxu0 0.0
    %3292 = vmatpush1.msra.mxu0 0.0
    %3293 = vmatprep.subr.mxu0 0.0
    %3294 = vmatpush1.msra.mxu0 0.0
    %3295 = vmatprep.subr.mxu0 0.0
    %3296 = vmatpush1.msra.mxu0 0.0
    %3297 = vmatprep.subr.mxu0 0.0
    %3298 = vmatpush1.msra.mxu0 0.0
    %3299 = vmatprep.subr.mxu0 0.0
    %3300 = vmatpush1.msra.mxu0 0.0
    %3301 = vmatprep.subr.mxu0 0.0
    %3302 = vmatpush1.msra.mxu0 0.0
    %3303 = vmatprep.subr.mxu0 0.0
    %3304 = vmatpush1.msra.mxu0 0.0
    %3305 = vmatprep.subr.mxu0 0.0
    %3306 = vmatpush1.msra.mxu0 0.0
    %3307 = vmatprep.subr.mxu0 0.0
    %3308 = vmatpush1.msra.mxu0 0.0
    %3309 = vmatprep.subr.mxu0 0.0
    %3310 = vmatpush1.msra.mxu0 0.0
    %3311 = vmatprep.subr.mxu0 0.0
    %3312 = vmatpush1.msra.mxu0 0.0
    %3313 = vmatprep.mubr.f32.mxu0 0.0
    %v3314 = vand.u32 %v46, 4294901760
    %v3315 = vsub.f32 %v46, %v3314
    %v3316 = vand.u32 %v3315, 4294901760
    %3317 = vmatmul.mubr.f32.gmra.mrb[0].mxu0 %v3316
    %v3318 = vpop.f32.mrb[0].mxu0
    %v3319 = vadd.f32 %v3213, %v3318
    %v3320 = vpop.f32.mrb[0].mxu0
    %v3321 = vadd.f32 %v3215, %v3320
    %3322 = vdwg.mxu0
    %v3323 = vand.u32 %v54, 4294901760
    %v3324 = vsub.f32 %v54, %v3323
    %v3325 = vand.u32 %v3324, 4294901760
    %3326 = vmatprep.subr.mxu0 %v3325
    %v3327 = vand.u32 %v53, 4294901760
    %v3328 = vsub.f32 %v53, %v3327
    %v3329 = vand.u32 %v3328, 4294901760
    %3330 = vmatpush1.msra.mxu0 %v3329
    %v3331 = vand.u32 %v62, 4294901760
    %v3332 = vsub.f32 %v62, %v3331
    %v3333 = vand.u32 %v3332, 4294901760
    %3334 = vmatprep.subr.mxu0 %v3333
    %v3335 = vand.u32 %v61, 4294901760
    %v3336 = vsub.f32 %v61, %v3335
    %v3337 = vand.u32 %v3336, 4294901760
    %3338 = vmatpush1.msra.mxu0 %v3337
    %v3339 = vand.u32 %v70, 4294901760
    %v3340 = vsub.f32 %v70, %v3339
    %v3341 = vand.u32 %v3340, 4294901760
    %3342 = vmatprep.subr.mxu0 %v3341
    %v3343 = vand.u32 %v69, 4294901760
    %v3344 = vsub.f32 %v69, %v3343
    %v3345 = vand.u32 %v3344, 4294901760
    %3346 = vmatpush1.msra.mxu0 %v3345
    %v3347 = vand.u32 %v78, 4294901760
    %v3348 = vsub.f32 %v78, %v3347
    %v3349 = vand.u32 %v3348, 4294901760
    %3350 = vmatprep.subr.mxu0 %v3349
    %v3351 = vand.u32 %v77, 4294901760
    %v3352 = vsub.f32 %v77, %v3351
    %v3353 = vand.u32 %v3352, 4294901760
    %3354 = vmatpush1.msra.mxu0 %v3353
    %v3355 = vand.u32 %v86, 4294901760
    %v3356 = vsub.f32 %v86, %v3355
    %v3357 = vand.u32 %v3356, 4294901760
    %3358 = vmatprep.subr.mxu0 %v3357
    %v3359 = vand.u32 %v85, 4294901760
    %v3360 = vsub.f32 %v85, %v3359
    %v3361 = vand.u32 %v3360, 4294901760
    %3362 = vmatpush1.msra.mxu0 %v3361
    %v3363 = vand.u32 %v94, 4294901760
    %v3364 = vsub.f32 %v94, %v3363
    %v3365 = vand.u32 %v3364, 4294901760
    %3366 = vmatprep.subr.mxu0 %v3365
    %v3367 = vand.u32 %v93, 4294901760
    %v3368 = vsub.f32 %v93, %v3367
    %v3369 = vand.u32 %v3368, 4294901760
    %3370 = vmatpush1.msra.mxu0 %v3369
    %v3371 = vand.u32 %v102, 4294901760
    %v3372 = vsub.f32 %v102, %v3371
    %v3373 = vand.u32 %v3372, 4294901760
    %3374 = vmatprep.subr.mxu0 %v3373
    %v3375 = vand.u32 %v101, 4294901760
    %v3376 = vsub.f32 %v101, %v3375
    %v3377 = vand.u32 %v3376, 4294901760
    %3378 = vmatpush1.msra.mxu0 %v3377
    %v3379 = vand.u32 %v110, 4294901760
    %v3380 = vsub.f32 %v110, %v3379
    %v3381 = vand.u32 %v3380, 4294901760
    %3382 = vmatprep.subr.mxu0 %v3381
    %v3383 = vand.u32 %v109, 4294901760
    %v3384 = vsub.f32 %v109, %v3383
    %v3385 = vand.u32 %v3384, 4294901760
    %3386 = vmatpush1.msra.mxu0 %v3385
    %v3387 = vand.u32 %v118, 4294901760
    %v3388 = vsub.f32 %v118, %v3387
    %v3389 = vand.u32 %v3388, 4294901760
    %3390 = vmatprep.subr.mxu0 %v3389
    %v3391 = vand.u32 %v117, 4294901760
    %v3392 = vsub.f32 %v117, %v3391
    %v3393 = vand.u32 %v3392, 4294901760
    %3394 = vmatpush1.msra.mxu0 %v3393
    %v3395 = vand.u32 %v126, 4294901760
    %v3396 = vsub.f32 %v126, %v3395
    %v3397 = vand.u32 %v3396, 4294901760
    %3398 = vmatprep.subr.mxu0 %v3397
    %v3399 = vand.u32 %v125, 4294901760
    %v3400 = vsub.f32 %v125, %v3399
    %v3401 = vand.u32 %v3400, 4294901760
    %3402 = vmatpush1.msra.mxu0 %v3401
    %v3403 = vand.u32 %v134, 4294901760
    %v3404 = vsub.f32 %v134, %v3403
    %v3405 = vand.u32 %v3404, 4294901760
    %3406 = vmatprep.subr.mxu0 %v3405
    %v3407 = vand.u32 %v133, 4294901760
    %v3408 = vsub.f32 %v133, %v3407
    %v3409 = vand.u32 %v3408, 4294901760
    %3410 = vmatpush1.msra.mxu0 %v3409
    %v3411 = vand.u32 %v142, 4294901760
    %v3412 = vsub.f32 %v142, %v3411
    %v3413 = vand.u32 %v3412, 4294901760
    %3414 = vmatprep.subr.mxu0 %v3413
    %v3415 = vand.u32 %v141, 4294901760
    %v3416 = vsub.f32 %v141, %v3415
    %v3417 = vand.u32 %v3416, 4294901760
    %3418 = vmatpush1.msra.mxu0 %v3417
    %v3419 = vand.u32 %v150, 4294901760
    %v3420 = vsub.f32 %v150, %v3419
    %v3421 = vand.u32 %v3420, 4294901760
    %3422 = vmatprep.subr.mxu0 %v3421
    %v3423 = vand.u32 %v149, 4294901760
    %v3424 = vsub.f32 %v149, %v3423
    %v3425 = vand.u32 %v3424, 4294901760
    %3426 = vmatpush1.msra.mxu0 %v3425
    %v3427 = vand.u32 %v158, 4294901760
    %v3428 = vsub.f32 %v158, %v3427
    %v3429 = vand.u32 %v3428, 4294901760
    %3430 = vmatprep.subr.mxu0 %v3429
    %v3431 = vand.u32 %v157, 4294901760
    %v3432 = vsub.f32 %v157, %v3431
    %v3433 = vand.u32 %v3432, 4294901760
    %3434 = vmatpush1.msra.mxu0 %v3433
    %v3435 = vand.u32 %v166, 4294901760
    %v3436 = vsub.f32 %v166, %v3435
    %v3437 = vand.u32 %v3436, 4294901760
    %3438 = vmatprep.subr.mxu0 %v3437
    %v3439 = vand.u32 %v165, 4294901760
    %v3440 = vsub.f32 %v165, %v3439
    %v3441 = vand.u32 %v3440, 4294901760
    %3442 = vmatpush1.msra.mxu0 %v3441
    %v3443 = vand.u32 %v174, 4294901760
    %v3444 = vsub.f32 %v174, %v3443
    %v3445 = vand.u32 %v3444, 4294901760
    %3446 = vmatprep.subr.mxu0 %v3445
    %v3447 = vand.u32 %v173, 4294901760
    %v3448 = vsub.f32 %v173, %v3447
    %v3449 = vand.u32 %v3448, 4294901760
    %3450 = vmatpush1.msra.mxu0 %v3449
    %3451 = vmatprep.subr.mxu0 0.0
    %3452 = vmatpush1.msra.mxu0 0.0
    %3453 = vmatprep.subr.mxu0 0.0
    %3454 = vmatpush1.msra.mxu0 0.0
    %3455 = vmatprep.subr.mxu0 0.0
    %3456 = vmatpush1.msra.mxu0 0.0
    %3457 = vmatprep.subr.mxu0 0.0
    %3458 = vmatpush1.msra.mxu0 0.0
    %3459 = vmatprep.subr.mxu0 0.0
    %3460 = vmatpush1.msra.mxu0 0.0
    %3461 = vmatprep.subr.mxu0 0.0
    %3462 = vmatpush1.msra.mxu0 0.0
    %3463 = vmatprep.subr.mxu0 0.0
    %3464 = vmatpush1.msra.mxu0 0.0
    %3465 = vmatprep.subr.mxu0 0.0
    %3466 = vmatpush1.msra.mxu0 0.0
    %3467 = vmatprep.subr.mxu0 0.0
    %3468 = vmatpush1.msra.mxu0 0.0
    %3469 = vmatprep.subr.mxu0 0.0
    %3470 = vmatpush1.msra.mxu0 0.0
    %3471 = vmatprep.subr.mxu0 0.0
    %3472 = vmatpush1.msra.mxu0 0.0
    %3473 = vmatprep.subr.mxu0 0.0
    %3474 = vmatpush1.msra.mxu0 0.0
    %3475 = vmatprep.subr.mxu0 0.0
    %3476 = vmatpush1.msra.mxu0 0.0
    %3477 = vmatprep.subr.mxu0 0.0
    %3478 = vmatpush1.msra.mxu0 0.0
    %3479 = vmatprep.subr.mxu0 0.0
    %3480 = vmatpush1.msra.mxu0 0.0
    %3481 = vmatprep.subr.mxu0 0.0
    %3482 = vmatpush1.msra.mxu0 0.0
    %3483 = vmatprep.mubr.f32.mxu0 0.0
    %v3484 = vand.u32 %v46, 4294901760
    %3485 = vmatmul.mubr.f32.gmra.mrb[0].mxu0 %v3484
    %v3486 = vpop.f32.mrb[0].mxu0
    %v3487 = vadd.f32 %v3319, %v3486
    %v3488 = vpop.f32.mrb[0].mxu0
    %v3489 = vadd.f32 %v3321, %v3488
    %3490 = vdwg.mxu0
    %v3491 = vand.u32 %v54, 4294901760
    %3492 = vmatprep.subr.mxu0 %v3491
    %v3493 = vand.u32 %v53, 4294901760
    %3494 = vmatpush1.msra.mxu0 %v3493
    %v3495 = vand.u32 %v62, 4294901760
    %3496 = vmatprep.subr.mxu0 %v3495
    %v3497 = vand.u32 %v61, 4294901760
    %3498 = vmatpush1.msra.mxu0 %v3497
    %v3499 = vand.u32 %v70, 4294901760
    %3500 = vmatprep.subr.mxu0 %v3499
    %v3501 = vand.u32 %v69, 4294901760
    %3502 = vmatpush1.msra.mxu0 %v3501
    %v3503 = vand.u32 %v78, 4294901760
    %3504 = vmatprep.subr.mxu0 %v3503
    %v3505 = vand.u32 %v77, 4294901760
    %3506 = vmatpush1.msra.mxu0 %v3505
    %v3507 = vand.u32 %v86, 4294901760
    %3508 = vmatprep.subr.mxu0 %v3507
    %v3509 = vand.u32 %v85, 4294901760
    %3510 = vmatpush1.msra.mxu0 %v3509
    %v3511 = vand.u32 %v94, 4294901760
    %3512 = vmatprep.subr.mxu0 %v3511
    %v3513 = vand.u32 %v93, 4294901760
    %3514 = vmatpush1.msra.mxu0 %v3513
    %v3515 = vand.u32 %v102, 4294901760
    %3516 = vmatprep.subr.mxu0 %v3515
    %v3517 = vand.u32 %v101, 4294901760
    %3518 = vmatpush1.msra.mxu0 %v3517
    %v3519 = vand.u32 %v110, 4294901760
    %3520 = vmatprep.subr.mxu0 %v3519
    %v3521 = vand.u32 %v109, 4294901760
    %3522 = vmatpush1.msra.mxu0 %v3521
    %v3523 = vand.u32 %v118, 4294901760
    %3524 = vmatprep.subr.mxu0 %v3523
    %v3525 = vand.u32 %v117, 4294901760
    %3526 = vmatpush1.msra.mxu0 %v3525
    %v3527 = vand.u32 %v126, 4294901760
    %3528 = vmatprep.subr.mxu0 %v3527
    %v3529 = vand.u32 %v125, 4294901760
    %3530 = vmatpush1.msra.mxu0 %v3529
    %v3531 = vand.u32 %v134, 4294901760
    %3532 = vmatprep.subr.mxu0 %v3531
    %v3533 = vand.u32 %v133, 4294901760
    %3534 = vmatpush1.msra.mxu0 %v3533
    %v3535 = vand.u32 %v142, 4294901760
    %3536 = vmatprep.subr.mxu0 %v3535
    %v3537 = vand.u32 %v141, 4294901760
    %3538 = vmatpush1.msra.mxu0 %v3537
    %v3539 = vand.u32 %v150, 4294901760
    %3540 = vmatprep.subr.mxu0 %v3539
    %v3541 = vand.u32 %v149, 4294901760
    %3542 = vmatpush1.msra.mxu0 %v3541
    %v3543 = vand.u32 %v158, 4294901760
    %3544 = vmatprep.subr.mxu0 %v3543
    %v3545 = vand.u32 %v157, 4294901760
    %3546 = vmatpush1.msra.mxu0 %v3545
    %v3547 = vand.u32 %v166, 4294901760
    %3548 = vmatprep.subr.mxu0 %v3547
    %v3549 = vand.u32 %v165, 4294901760
    %3550 = vmatpush1.msra.mxu0 %v3549
    %v3551 = vand.u32 %v174, 4294901760
    %3552 = vmatprep.subr.mxu0 %v3551
    %v3553 = vand.u32 %v173, 4294901760
    %3554 = vmatpush1.msra.mxu0 %v3553
    %3555 = vmatprep.subr.mxu0 0.0
    %3556 = vmatpush1.msra.mxu0 0.0
    %3557 = vmatprep.subr.mxu0 0.0
    %3558 = vmatpush1.msra.mxu0 0.0
    %3559 = vmatprep.subr.mxu0 0.0
    %3560 = vmatpush1.msra.mxu0 0.0
    %3561 = vmatprep.subr.mxu0 0.0
    %3562 = vmatpush1.msra.mxu0 0.0
    %3563 = vmatprep.subr.mxu0 0.0
    %3564 = vmatpush1.msra.mxu0 0.0
    %3565 = vmatprep.subr.mxu0 0.0
    %3566 = vmatpush1.msra.mxu0 0.0
    %3567 = vmatprep.subr.mxu0 0.0
    %3568 = vmatpush1.msra.mxu0 0.0
    %3569 = vmatprep.subr.mxu0 0.0
    %3570 = vmatpush1.msra.mxu0 0.0
    %3571 = vmatprep.subr.mxu0 0.0
    %3572 = vmatpush1.msra.mxu0 0.0
    %3573 = vmatprep.subr.mxu0 0.0
    %3574 = vmatpush1.msra.mxu0 0.0
    %3575 = vmatprep.subr.mxu0 0.0
    %3576 = vmatpush1.msra.mxu0 0.0
    %3577 = vmatprep.subr.mxu0 0.0
    %3578 = vmatpush1.msra.mxu0 0.0
    %3579 = vmatprep.subr.mxu0 0.0
    %3580 = vmatpush1.msra.mxu0 0.0
    %3581 = vmatprep.subr.mxu0 0.0
    %3582 = vmatpush1.msra.mxu0 0.0
    %3583 = vmatprep.subr.mxu0 0.0
    %3584 = vmatpush1.msra.mxu0 0.0
    %3585 = vmatprep.subr.mxu0 0.0
    %3586 = vmatpush1.msra.mxu0 0.0
    %3587 = vmatprep.mubr.f32.mxu0 0.0
    %v3588 = vand.u32 %v46, 4294901760
    %3589 = vmatmul.mubr.f32.gmra.mrb[0].mxu0 %v3588
    %v3590 = vpop.f32.mrb[0].mxu0
    %v3591 = vadd.f32 %v3487, %v3590
    %v3592 = vpop.f32.mrb[0].mxu0
    %v3593 = vadd.f32 %v3489, %v3592
    %3594 = vdwg.mxu0
    %v3595 = vmul.f32 %v1026, %v46
    %3596 = vadd.xlane.f32.xlu0 %v3595
    %v3597 = vpop.xlane.xlu0 %3596
    %v3598 = vmul.f32 %v1028, %v46
    %3599 = vadd.xlane.f32.xlu0 %v3598
    %v3600 = vpop.xlane.xlu0 %3599
    %v3601 = vmul.f32 %v1881, %v46
    %3602 = vadd.xlane.f32.xlu0 %v3601
    %v3603 = vpop.xlane.xlu0 %3602
    %v3604 = vmul.f32 %v1883, %v46
    %3605 = vadd.xlane.f32.xlu0 %v3604
    %v3606 = vpop.xlane.xlu0 %3605
    %v3607 = vmul.f32 %v2736, %v46
    %3608 = vadd.xlane.f32.xlu0 %v3607
    %v3609 = vpop.xlane.xlu0 %3608
    %v3610 = vmul.f32 %v2738, %v46
    %3611 = vadd.xlane.f32.xlu0 %v3610
    %v3612 = vpop.xlane.xlu0 %3611
    %v3613 = vmul.f32 %v3591, %v46
    %3614 = vadd.xlane.f32.xlu0 %v3613
    %v3615 = vpop.xlane.xlu0 %3614
    %v3616 = vmul.f32 %v3593, %v46
    %3617 = vadd.xlane.f32.xlu0 %v3616
    %v3618 = vpop.xlane.xlu0 %3617
    %v3619 = vmin.f32 %v3597, %v3600
    %v3620 = vmin.f32 %v3603, %v3606
    %v3621 = vmin.f32 %v3609, %v3612
    %v3622 = vmin.f32 %v3615, %v3618
    %v3623 = vmin.f32 %v3619, %v3620
    %v3624 = vmin.f32 %v3621, %v3622
    %v3625 = vmin.f32 %v3623, %v3624
    %s3626 = smul.u32 0, 8
    %v3627 = vlaneseq
    %v3628 = vshrl.u32 %v3627, 7
    %v3629 = vstv %s3626
    %v3630 = vadd.s32 %v3629, %v3628
    %vm3631 = vcmp.lt.s32.totalorder %v3630, 2
    %v3632 = vsel %vm3631, %v3625, 0.0
    %v3633 = vrot.slane %v3632, 4
    %v3634 = vadd.f32 %v3632, %v3633
    %v3635 = vrot.slane %v3634, 2
    %v3636 = vadd.f32 %v3634, %v3635
    %v3637 = vrot.slane %v3636, 1
    %v3638 = vadd.f32 %v3636, %v3637
    %v3639 = vmul.f32 %v3638, 0.5
    %vm3640 = vcmask 0
    %3641 = vst.msk [vmem:[#allocation8] sm:$0x1] %vm3640, %v3639
    // Predicated region
    $region18: #{tpu_custom_call.1} parent=1 // pred_check
      _
    $region19: #{tpu_custom_call.1} parent=1 // pred_check_branch
      %3643 = sbr.rel (0) target = $region21
    $region20: #{tpu_custom_call.1} parent=1 // pred_region
      %s3645 = ssub.s32 16, 16
      %3646 = vsyncadd [#allocation5], %s3645
      %s3648 = sshll.u32 [#allocation8], 4
      %s3649 = int_to_ptr.vmem [resolvable:$true] %s3648
      %3651 = dma.vmem_to_hbm [thread:$0]  %s3649, 16, %s2, [#allocation5]
    $region21: #{tpu_custom_call.1} parent=1 // pred_fallthru
      _
    // Predicated region
    $region22: #{tpu_custom_call.1} parent=1 // pred_check
      _
    $region23: #{tpu_custom_call.1} parent=1 // pred_check_branch
      %3653 = sbr.rel (0) target = $region25
    $region24: #{tpu_custom_call.1} parent=1 // pred_region
      %3654 = dma.done [#allocation5], 16
    $region25: #{tpu_custom_call.1} parent=1 // pred_fallthru
      _
    %3655 = vsyncpa [#allocation4], 1
    %3656 = vsyncpa [#allocation7], 1
    %3657 = vsyncpa [#allocation5], 1

</llo_original>
